<compile_context>
chip_gen: v7x
topology: tpu7x:2x2x1
jax: 0.10.0
libtpu: 0.0.40
codegen_flags: <defaults>
</compile_context>

<pallas_src>
import functools
import numpy as np
import jax
import jax.numpy as jnp
from jax.experimental import pallas as pl
from jax.experimental.pallas import tpu as pltpu

# Atom feature vocabulary sizes from ogb.utils.features (AtomEncoder).
FULL_ATOM_FEATURE_DIMS = [119, 5, 12, 12, 10, 6, 6, 2, 2]

EDGE_BLOCK = 128          # edges per vectorized min/max reduction step
MINMAX_SENTINEL = 1e30    # masked-reduce identity (every node has >= 1 incoming edge here)


def pna_net_kernel(x_ref, gsrc_ref, gdst_ref, deg_ref, pool_ref,
                   wpre_i_ref, wpre_j_ref, bpre_ref,
                   wpost_x_ref, wpost_id_ref, wpost_amp_ref, wpost_att_ref,
                   bpost_ref, wlin_ref, blin_ref, bnsc_ref, bnsh_ref,
                   wmlp_ref, bmlp_ref, out_ref, *, num_layers, avg_deg_log):
    f32 = jnp.float32
    bf16 = jnp.bfloat16

    x = x_ref[...]                     # [N, F]  node features after AtomEncoder (f32)
    gsrc = gsrc_ref[...]               # [E, N]  bf16 one-hot of source node per edge
    gdst = gdst_ref[...]               # [E, N]  bf16 one-hot of target node per edge
    deg = deg_ref[...]                 # [N, 1]  in-degree, clamped >= 1 (f32)

    E, N = gsrc.shape
    F = x.shape[1]

    # ---- loop-invariant terms, hoisted out of the layer loop ------------------
    inv_deg = pl.reciprocal(deg, approx=True)                       # 1 / deg
    log_deg = jnp.log(deg + 1.0)
    scale_amp = log_deg * (1.0 / avg_deg_log)                       # amplification scaler
    scale_att = avg_deg_log * pl.reciprocal(log_deg, approx=True)   # attenuation scaler
    sdst = gdst.astype(f32).T                                       # [N, E] scatter matrix (in-kernel)
    edge_mask3 = gdst[:, :, None] > 0.5                             # [E, N, 1] destination mask

    for l in range(num_layers):                                     # static unrolled layer loop
        x_res = x
        x_b = x.astype(bf16)

        # ---- gather x_i (target) / x_j (source) via one-hot bf16 matmuls (MXU) ----
        x_j = jnp.dot(gsrc, x_b, preferred_element_type=f32)        # [E, F]
        x_i = jnp.dot(gdst, x_b, preferred_element_type=f32)        # [E, F]

        # ---- message = pre_nn(concat[x_i, x_j]) as two lane-dense GEMMs -----------
        msg = (jnp.dot(x_i, wpre_i_ref[l], preferred_element_type=f32)
               + jnp.dot(x_j, wpre_j_ref[l], preferred_element_type=f32)
               + bpre_ref[l])                                       # [E, F]

        # ---- mean / std aggregators via scatter matmuls (MXU) ---------------------
        s1 = jnp.dot(sdst, msg, preferred_element_type=f32)         # sum       [N, F]
        s2 = jnp.dot(sdst, msg * msg, preferred_element_type=f32)   # sum of sq [N, F]
        mean = s1 * inv_deg
        var = s2 * inv_deg - mean * mean
        std = jnp.sqrt(jnp.maximum(var, 0.0) + 1e-5)

        # ---- min / max: block-vectorized masked reduce over edge chunks -----------
        mmin = jnp.full((N, F), MINMAX_SENTINEL, dtype=f32)
        mmax = jnp.full((N, F), -MINMAX_SENTINEL, dtype=f32)
        for e0 in range(0, E, EDGE_BLOCK):                          # static chunk loop
            e1 = min(e0 + EDGE_BLOCK, E)
            m3 = edge_mask3[e0:e1]                                  # [Eb, N, 1] bool
            c3 = msg[e0:e1, None, :]                                # [Eb, 1, F]
            mmin = jnp.minimum(
                mmin, jnp.min(jnp.where(m3, c3, MINMAX_SENTINEL), axis=0))
            mmax = jnp.maximum(
                mmax, jnp.max(jnp.where(m3, c3, -MINMAX_SENTINEL), axis=0))

        # ---- aggregators stacked lane-dense: [N, 4F] (4F = 128 lanes at F=32) -----
        agg = jnp.concatenate([mean, mmin, mmax, std], axis=-1)     # [N, 4F]

        # ---- post_nn(concat[x, agg, agg*amp, agg*att]) as 4 summed GEMMs ----------
        out = (jnp.dot(x, wpost_x_ref[l], preferred_element_type=f32)
               + jnp.dot(agg, wpost_id_ref[l], preferred_element_type=f32)
               + jnp.dot(agg * scale_amp, wpost_amp_ref[l], preferred_element_type=f32)
               + jnp.dot(agg * scale_att, wpost_att_ref[l], preferred_element_type=f32)
               + bpost_ref[l])                                      # [N, F]
        out = jnp.dot(out, wlin_ref[l], preferred_element_type=f32) + blin_ref[l]

        # ---- folded BatchNorm (eval) + ReLU + residual ----------------------------
        out = out * bnsc_ref[l] + bnsh_ref[l]
        x = x_res + jnp.maximum(out, 0.0)
        # F.dropout(..., training=False) is an identity -> nothing to do.

    # ---- global_mean_pool + final Linear ------------------------------------------
    pooled = jnp.dot(pool_ref[...], x, preferred_element_type=f32)          # [G, F]
    out_ref[...] = (jnp.dot(pooled, wmlp_ref[...], preferred_element_type=f32)
                    + bmlp_ref[...])


def init_params(key, hid, out_c, num_layers):
    keys = iter(jax.random.split(key, 32))

    def nrm(shape, scale=0.05):
        return scale * jax.random.normal(next(keys), shape, dtype=jnp.float32)

    return dict(
        emb=[nrm((d, hid), 0.1) for d in FULL_ATOM_FEATURE_DIMS],
        wpre=nrm((num_layers, 2 * hid, hid)),
        bpre=nrm((num_layers, 1, hid)),
        wpost=nrm((num_layers, 13 * hid, hid)),
        bpost=nrm((num_layers, 1, hid)),
        wlin=nrm((num_layers, hid, hid)),
        blin=nrm((num_layers, 1, hid)),
        bng=1.0 + nrm((num_layers, 1, hid)),
        bnb=nrm((num_layers, 1, hid)),
        bnm=nrm((num_layers, 1, hid)),
        bnv=1.0 + jnp.abs(nrm((num_layers, 1, hid))),
        wmlp=nrm((hid, out_c)),
        bmlp=nrm((1, out_c)),
    )


def pna_net_forward(params, x_atoms, edge_index, batch, num_graphs,
                    avg_deg_log, num_layers):
    # AtomEncoder: sum of per-feature embedding lookups (data-dependent gather -> JAX glue).
    # TODO(synk): the integer embedding gather has no clean in-kernel Pallas equivalent at
    # this size; it stays on the host side.
    x0 = sum(params['emb'][i][x_atoms[:, i]] for i in range(x_atoms.shape[1]))
    x0 = x0.astype(jnp.float32)
    N = x0.shape[0]
    hid = params['wmlp'].shape[0]
    out_c = params['wmlp'].shape[1]
    src, dst = edge_index[0], edge_index[1]

    # One-hot gather matrices stored in bf16 (exact 0/1): halves DMA + VMEM for the
    # dominant [E, N] buffers.  The [N, E] scatter matrix is derived inside the kernel.
    gsrc = jax.nn.one_hot(src, N, dtype=jnp.bfloat16)               # [E, N]
    gdst = jax.nn.one_hot(dst, N, dtype=jnp.bfloat16)               # [E, N]
    deg = jnp.maximum(jnp.sum(gdst.astype(jnp.float32), axis=0), 1.0)[:, None]   # [N, 1]

    counts = jnp.maximum(
        jax.ops.segment_sum(jnp.ones((N,), jnp.float32), batch, num_graphs), 1.0)
    pool = jax.nn.one_hot(batch, num_graphs, dtype=jnp.float32).T / counts[:, None]  # [G, N]

    # Split the concat-weights into lane-dense blocks (host-side, free).
    wpre_i = params['wpre'][:, :hid, :]                  # rows for x_i
    wpre_j = params['wpre'][:, hid:, :]                  # rows for x_j
    wpost_x = params['wpost'][:, :hid, :]                # rows for x
    wpost_id = params['wpost'][:, hid:5 * hid, :]        # rows for agg (identity scaler)
    wpost_amp = params['wpost'][:, 5 * hid:9 * hid, :]   # rows for agg * amplification
    wpost_att = params['wpost'][:, 9 * hid:13 * hid, :]  # rows for agg * attenuation
    # Fold eval-mode BatchNorm into a single scale + shift.
    bn_scale = params['bng'] * jax.lax.rsqrt(params['bnv'] + 1e-5)
    bn_shift = params['bnb'] - params['bnm'] * bn_scale

    kernel = functools.partial(pna_net_kernel,
                               num_layers=num_layers,
                               avg_deg_log=float(avg_deg_log))
    vmem = pl.BlockSpec(memory_space=pltpu.MemorySpace.VMEM)
    args = (x0, gsrc, gdst, deg, pool,
            wpre_i, wpre_j, params['bpre'],
            wpost_x, wpost_id, wpost_amp, wpost_att, params['bpost'],
            params['wlin'], params['blin'], bn_scale, bn_shift,
            params['wmlp'], params['bmlp'])
    return pl.pallas_call(
        kernel,
        out_shape=jax.ShapeDtypeStruct((num_graphs, out_c), jnp.float32),
        in_specs=[vmem] * len(args),
        out_specs=vmem,
        compiler_params=pltpu.CompilerParams(
            vmem_limit_bytes=32 * 1024 * 1024),   # above v5e's 16 MiB default scoped limit
    )(*args)


def reference_forward(params, x_atoms, edge_index, batch, num_graphs,
                      avg_deg_log, num_layers):
    """Pure-JAX reference of the same forward pass (for correctness check)."""
    x = sum(params['emb'][i][x_atoms[:, i]] for i in range(x_atoms.shape[1])).astype(jnp.float32)
    N = x.shape[0]
    src, dst = edge_index[0], edge_index[1]
    deg = jnp.maximum(
        jax.ops.segment_sum(jnp.ones_like(dst, jnp.float32), dst, N), 1.0)[:, None]
    log_deg = jnp.log(deg + 1.0)
    for l in range(num_layers):
        x_res = x
        h = jnp.concatenate([x[dst], x[src]], axis=-1)
        msg = h @ params['wpre'][l] + params['bpre'][l]
        mean = jax.ops.segment_sum(msg, dst, N) / deg
        mean2 = jax.ops.segment_sum(msg * msg, dst, N) / deg
        std = jnp.sqrt(jnp.maximum(mean2 - mean * mean, 0.0) + 1e-5)
        mmin = jax.ops.segment_min(msg, dst, N)
        mmax = jax.ops.segment_max(msg, dst, N)
        agg = jnp.concatenate([mean, mmin, mmax, std], axis=-1)
        scaled = jnp.concatenate(
            [agg, agg * (log_deg / avg_deg_log), agg * (avg_deg_log / log_deg)], axis=-1)
        feat = jnp.concatenate([x, scaled], axis=-1)
        out = feat @ params['wpost'][l] + params['bpost'][l]
        out = out @ params['wlin'][l] + params['blin'][l]
        out = (out - params['bnm'][l]) * jax.lax.rsqrt(params['bnv'][l] + 1e-5) \
              * params['bng'][l] + params['bnb'][l]
        out = jnp.maximum(out, 0.0)
        x = x_res + out
    counts = jnp.maximum(
        jax.ops.segment_sum(jnp.ones((N,), jnp.float32), batch, num_graphs), 1.0)
    pooled = jax.ops.segment_sum(x, batch, num_graphs) / counts[:, None]
    return pooled @ params['wmlp'] + params['bmlp']


if __name__ == "__main__":
    HID, OUT_C, NUM_LAYERS, DROPOUT = 32, 8, 2, 0.1   # dropout inactive (eval mode)
    N, G = 16, 2                                       # 2 graphs of 8 nodes each
    NODES_PER_G = N // G

    key = jax.random.PRNGKey(0)
    k_param, k_x, k_e1, k_e2 = jax.random.split(key, 4)

    # --- synthetic graph: per-graph ring (every node gets >=1 incoming edge) + random edges
    nodes = np.arange(N)
    graph_of = nodes // NODES_PER_G
    ring_src = nodes
    ring_dst = (nodes + 1) % NODES_PER_G + graph_of * NODES_PER_G
    extra_src = np.asarray(jax.random.randint(k_e1, (16,), 0, N, dtype=jnp.int32))
    extra_off = np.asarray(jax.random.randint(k_e2, (16,), 0, NODES_PER_G, dtype=jnp.int32))
    extra_dst = (extra_src // NODES_PER_G) * NODES_PER_G + extra_off
    edge_index = jnp.asarray(
        np.stack([np.concatenate([ring_src, extra_src]),
                  np.concatenate([ring_dst, extra_dst])]), dtype=jnp.int32)
    batch = jnp.asarray(graph_of, dtype=jnp.int32)

    # --- synthetic integer atom features [N, 9]
    ks = jax.random.split(k_x, len(FULL_ATOM_FEATURE_DIMS))
    x_atoms = jnp.stack(
        [jax.random.randint(ks[i], (N,), 0, d, dtype=jnp.int32)
         for i, d in enumerate(FULL_ATOM_FEATURE_DIMS)], axis=1)

    # --- `deg` histogram argument of PNA_Net -> avg log-degree scalar used by the scalers
    in_deg = np.bincount(np.asarray(edge_index[1]), minlength=N)
    deg_hist = np.bincount(in_deg).astype(np.float64)
    bins = np.arange(len(deg_hist), dtype=np.float64)
    avg_deg_log = float((np.log(bins + 1.0) * deg_hist).sum() / deg_hist.sum())

    params = init_params(k_param, HID, OUT_C, NUM_LAYERS)

    out = pna_net_forward(params, x_atoms, edge_index, batch, G, avg_deg_log, NUM_LAYERS)
    out = jax.block_until_ready(out)

    ref = jax.block_until_ready(
        reference_forward(params, x_atoms, edge_index, batch, G, avg_deg_log, NUM_LAYERS))
    np.testing.assert_allclose(np.asarray(out), np.asarray(ref), rtol=2e-2, atol=2e-2)

    print("KERNEL_OK")
</pallas_src>

<mosaic_0001>
module attributes {stable_mosaic.version = 11 : i64} {
  func.func @pna_net_kernel(%arg0: memref<16x32xf32, #tpu.memory_space<vmem>>, %arg1: memref<32x16xbf16, #tpu.memory_space<vmem>>, %arg2: memref<32x16xbf16, #tpu.memory_space<vmem>>, %arg3: memref<16x1xf32, #tpu.memory_space<vmem>>, %arg4: memref<2x16xf32, #tpu.memory_space<vmem>>, %arg5: memref<2x32x32xf32, #tpu.memory_space<vmem>>, %arg6: memref<2x32x32xf32, #tpu.memory_space<vmem>>, %arg7: memref<2x1x32xf32, #tpu.memory_space<vmem>>, %arg8: memref<2x32x32xf32, #tpu.memory_space<vmem>>, %arg9: memref<2x128x32xf32, #tpu.memory_space<vmem>>, %arg10: memref<2x128x32xf32, #tpu.memory_space<vmem>>, %arg11: memref<2x128x32xf32, #tpu.memory_space<vmem>>, %arg12: memref<2x1x32xf32, #tpu.memory_space<vmem>>, %arg13: memref<2x32x32xf32, #tpu.memory_space<vmem>>, %arg14: memref<2x1x32xf32, #tpu.memory_space<vmem>>, %arg15: memref<2x1x32xf32, #tpu.memory_space<vmem>>, %arg16: memref<2x1x32xf32, #tpu.memory_space<vmem>>, %arg17: memref<32x8xf32, #tpu.memory_space<vmem>>, %arg18: memref<1x8xf32, #tpu.memory_space<vmem>>, %arg19: memref<2x8xf32, #tpu.memory_space<vmem>>) attributes {dimension_semantics = [], scalar_prefetch = 0 : i64, scratch_operands = 0 : i64, tpu.core_type = #tpu.core_type<tc>} {
    %c0 = arith.constant 0 : index
    %c0_0 = arith.constant 0 : index
    %0 = vector.load %arg0[%c0, %c0_0] : memref<16x32xf32, #tpu.memory_space<vmem>>, vector<16x32xf32>
    %c0_1 = arith.constant 0 : index
    %c0_2 = arith.constant 0 : index
    %1 = vector.load %arg1[%c0_1, %c0_2] : memref<32x16xbf16, #tpu.memory_space<vmem>>, vector<32x16xbf16>
    %c0_3 = arith.constant 0 : index
    %c0_4 = arith.constant 0 : index
    %2 = vector.load %arg2[%c0_3, %c0_4] : memref<32x16xbf16, #tpu.memory_space<vmem>>, vector<32x16xbf16>
    %c0_5 = arith.constant 0 : index
    %c0_6 = arith.constant 0 : index
    %3 = vector.load %arg3[%c0_5, %c0_6] : memref<16x1xf32, #tpu.memory_space<vmem>>, vector<16x1xf32>
    %4 = tpu.reciprocal %3 {approx = true} : vector<16x1xf32> -> vector<16x1xf32>
    %cst = arith.constant 1.000000e+00 : f32
    %5 = vector.broadcast %cst : f32 to vector<16x1xf32>
    %6 = arith.addf %3, %5 : vector<16x1xf32>
    %7 = math.log %6 : vector<16x1xf32>
    %cst_7 = arith.constant 0.949002683 : f32
    %8 = vector.broadcast %cst_7 : f32 to vector<16x1xf32>
    %9 = arith.mulf %7, %8 : vector<16x1xf32>
    %10 = tpu.reciprocal %7 {approx = true} : vector<16x1xf32> -> vector<16x1xf32>
    %cst_8 = arith.constant 1.05373776 : f32
    %11 = vector.broadcast %cst_8 : f32 to vector<16x1xf32>
    %12 = arith.mulf %11, %10 : vector<16x1xf32>
    %13 = arith.extf %2 : vector<32x16xbf16> to vector<32x16xf32>
    %14 = tpu.transpose %13, [1, 0] : vector<32x16xf32> -> vector<16x32xf32>
    %15 = vector.shape_cast %2 : vector<32x16xbf16> to vector<32x16x1xbf16>
    %cst_9 = arith.constant 5.000000e-01 : bf16
    %16 = vector.broadcast %cst_9 : bf16 to vector<32x16x1xbf16>
    %17 = arith.cmpf ogt, %15, %16 : vector<32x16x1xbf16>
    %18 = arith.truncf %0 : vector<16x32xf32> to vector<16x32xbf16>
    %cst_10 = arith.constant dense<0.000000e+00> : vector<32x32xf32>
    %19 = tpu.matmul %1, %18, %cst_10 {dimension_numbers = #tpu.dot_dimension_numbers<[1], [0], [0], [1], [0, 0, 1, 1], [], []>} : vector<32x16xbf16>, vector<16x32xbf16>, vector<32x32xf32> -> vector<32x32xf32>
    %cst_11 = arith.constant dense<0.000000e+00> : vector<32x32xf32>
    %20 = tpu.matmul %2, %18, %cst_11 {dimension_numbers = #tpu.dot_dimension_numbers<[1], [0], [0], [1], [0, 0, 1, 1], [], []>} : vector<32x16xbf16>, vector<16x32xbf16>, vector<32x32xf32> -> vector<32x32xf32>
    %c0_12 = arith.constant 0 : index
    %c0_13 = arith.constant 0 : index
    %c0_14 = arith.constant 0 : index
    %21 = vector.load %arg5[%c0_12, %c0_13, %c0_14] : memref<2x32x32xf32, #tpu.memory_space<vmem>>, vector<1x32x32xf32>
    %22 = vector.shape_cast %21 : vector<1x32x32xf32> to vector<32x32xf32>
    %cst_15 = arith.constant dense<0.000000e+00> : vector<32x32xf32>
    %23 = tpu.matmul %20, %22, %cst_15 {dimension_numbers = #tpu.dot_dimension_numbers<[1], [0], [0], [1], [0, 0, 1, 1], [], []>} : vector<32x32xf32>, vector<32x32xf32>, vector<32x32xf32> -> vector<32x32xf32>
    %c0_16 = arith.constant 0 : index
    %c0_17 = arith.constant 0 : index
    %c0_18 = arith.constant 0 : index
    %24 = vector.load %arg6[%c0_16, %c0_17, %c0_18] : memref<2x32x32xf32, #tpu.memory_space<vmem>>, vector<1x32x32xf32>
    %25 = vector.shape_cast %24 : vector<1x32x32xf32> to vector<32x32xf32>
    %cst_19 = arith.constant dense<0.000000e+00> : vector<32x32xf32>
    %26 = tpu.matmul %19, %25, %cst_19 {dimension_numbers = #tpu.dot_dimension_numbers<[1], [0], [0], [1], [0, 0, 1, 1], [], []>} : vector<32x32xf32>, vector<32x32xf32>, vector<32x32xf32> -> vector<32x32xf32>
    %27 = arith.addf %23, %26 : vector<32x32xf32>
    %c0_20 = arith.constant 0 : index
    %c0_21 = arith.constant 0 : index
    %c0_22 = arith.constant 0 : index
    %28 = vector.load %arg7[%c0_20, %c0_21, %c0_22] : memref<2x1x32xf32, #tpu.memory_space<vmem>>, vector<1x1x32xf32>
    %29 = vector.shape_cast %28 : vector<1x1x32xf32> to vector<1x32xf32>
    %30 = vector.broadcast %29 : vector<1x32xf32> to vector<32x32xf32>
    %31 = arith.addf %27, %30 : vector<32x32xf32>
    %cst_23 = arith.constant dense<0.000000e+00> : vector<16x32xf32>
    %32 = tpu.matmul %14, %31, %cst_23 {dimension_numbers = #tpu.dot_dimension_numbers<[1], [0], [0], [1], [0, 0, 1, 1], [], []>} : vector<16x32xf32>, vector<32x32xf32>, vector<16x32xf32> -> vector<16x32xf32>
    %33 = arith.mulf %31, %31 : vector<32x32xf32>
    %cst_24 = arith.constant dense<0.000000e+00> : vector<16x32xf32>
    %34 = tpu.matmul %14, %33, %cst_24 {dimension_numbers = #tpu.dot_dimension_numbers<[1], [0], [0], [1], [0, 0, 1, 1], [], []>} : vector<16x32xf32>, vector<32x32xf32>, vector<16x32xf32> -> vector<16x32xf32>
    %35 = vector.broadcast %4 : vector<16x1xf32> to vector<16x32xf32>
    %36 = arith.mulf %32, %35 : vector<16x32xf32>
    %37 = vector.broadcast %4 : vector<16x1xf32> to vector<16x32xf32>
    %38 = arith.mulf %34, %37 : vector<16x32xf32>
    %39 = arith.mulf %36, %36 : vector<16x32xf32>
    %40 = arith.subf %38, %39 : vector<16x32xf32>
    %cst_25 = arith.constant 0.000000e+00 : f32
    %41 = vector.broadcast %cst_25 : f32 to vector<16x32xf32>
    %42 = arith.maximumf %40, %41 : vector<16x32xf32>
    %cst_26 = arith.constant 9.99999974E-6 : f32
    %43 = vector.broadcast %cst_26 : f32 to vector<16x32xf32>
    %44 = arith.addf %42, %43 : vector<16x32xf32>
    %45 = math.sqrt %44 : vector<16x32xf32>
    %cst_27 = arith.constant 1.000000e+30 : f32
    %46 = vector.broadcast %cst_27 : f32 to vector<16x32xf32>
    %cst_28 = arith.constant -1.000000e+30 : f32
    %47 = vector.broadcast %cst_28 : f32 to vector<16x32xf32>
    %48 = vector.shape_cast %31 : vector<32x32xf32> to vector<32x1x32xf32>
    %cst_29 = arith.constant 1.000000e+30 : f32
    %49 = vector.shape_cast %17 : vector<32x16x1xi1> to vector<32x16x1xi1>
    %50 = vector.broadcast %49 : vector<32x16x1xi1> to vector<32x16x32xi1>
    %51 = vector.shape_cast %48 : vector<32x1x32xf32> to vector<32x1x32xf32>
    %52 = vector.broadcast %51 : vector<32x1x32xf32> to vector<32x16x32xf32>
    %53 = vector.broadcast %cst_29 : f32 to vector<32x16x32xf32>
    %54 = arith.select %50, %52, %53 : vector<32x16x32xi1>, vector<32x16x32xf32>
    %cst_30 = arith.constant dense<0x7F800000> : vector<16x32xf32>
    %55 = vector.multi_reduction <minimumf>, %54, %cst_30 [0] : vector<32x16x32xf32> to vector<16x32xf32>
    %56 = arith.minimumf %46, %55 : vector<16x32xf32>
    %cst_31 = arith.constant -1.000000e+30 : f32
    %57 = vector.shape_cast %17 : vector<32x16x1xi1> to vector<32x16x1xi1>
    %58 = vector.broadcast %57 : vector<32x16x1xi1> to vector<32x16x32xi1>
    %59 = vector.shape_cast %48 : vector<32x1x32xf32> to vector<32x1x32xf32>
    %60 = vector.broadcast %59 : vector<32x1x32xf32> to vector<32x16x32xf32>
    %61 = vector.broadcast %cst_31 : f32 to vector<32x16x32xf32>
    %62 = arith.select %58, %60, %61 : vector<32x16x32xi1>, vector<32x16x32xf32>
    %cst_32 = arith.constant dense<0xFF800000> : vector<16x32xf32>
    %63 = vector.multi_reduction <maximumf>, %62, %cst_32 [0] : vector<32x16x32xf32> to vector<16x32xf32>
    %64 = arith.maximumf %47, %63 : vector<16x32xf32>
    %65 = tpu.concatenate %36, %56, %64, %45 in 1 : vector<16x32xf32>, vector<16x32xf32>, vector<16x32xf32>, vector<16x32xf32> -> vector<16x128xf32>
    %c0_33 = arith.constant 0 : index
    %c0_34 = arith.constant 0 : index
    %c0_35 = arith.constant 0 : index
    %66 = vector.load %arg8[%c0_33, %c0_34, %c0_35] : memref<2x32x32xf32, #tpu.memory_space<vmem>>, vector<1x32x32xf32>
    %67 = vector.shape_cast %66 : vector<1x32x32xf32> to vector<32x32xf32>
    %cst_36 = arith.constant dense<0.000000e+00> : vector<16x32xf32>
    %68 = tpu.matmul %0, %67, %cst_36 {dimension_numbers = #tpu.dot_dimension_numbers<[1], [0], [0], [1], [0, 0, 1, 1], [], []>} : vector<16x32xf32>, vector<32x32xf32>, vector<16x32xf32> -> vector<16x32xf32>
    %c0_37 = arith.constant 0 : index
    %c0_38 = arith.constant 0 : index
    %c0_39 = arith.constant 0 : index
    %69 = vector.load %arg9[%c0_37, %c0_38, %c0_39] : memref<2x128x32xf32, #tpu.memory_space<vmem>>, vector<1x128x32xf32>
    %70 = vector.shape_cast %69 : vector<1x128x32xf32> to vector<128x32xf32>
    %cst_40 = arith.constant dense<0.000000e+00> : vector<16x32xf32>
    %71 = tpu.matmul %65, %70, %cst_40 {dimension_numbers = #tpu.dot_dimension_numbers<[1], [0], [0], [1], [0, 0, 1, 1], [], []>} : vector<16x128xf32>, vector<128x32xf32>, vector<16x32xf32> -> vector<16x32xf32>
    %72 = arith.addf %68, %71 : vector<16x32xf32>
    %73 = vector.broadcast %9 : vector<16x1xf32> to vector<16x128xf32>
    %74 = arith.mulf %65, %73 : vector<16x128xf32>
    %c0_41 = arith.constant 0 : index
    %c0_42 = arith.constant 0 : index
    %c0_43 = arith.constant 0 : index
    %75 = vector.load %arg10[%c0_41, %c0_42, %c0_43] : memref<2x128x32xf32, #tpu.memory_space<vmem>>, vector<1x128x32xf32>
    %76 = vector.shape_cast %75 : vector<1x128x32xf32> to vector<128x32xf32>
    %cst_44 = arith.constant dense<0.000000e+00> : vector<16x32xf32>
    %77 = tpu.matmul %74, %76, %cst_44 {dimension_numbers = #tpu.dot_dimension_numbers<[1], [0], [0], [1], [0, 0, 1, 1], [], []>} : vector<16x128xf32>, vector<128x32xf32>, vector<16x32xf32> -> vector<16x32xf32>
    %78 = arith.addf %72, %77 : vector<16x32xf32>
    %79 = vector.broadcast %12 : vector<16x1xf32> to vector<16x128xf32>
    %80 = arith.mulf %65, %79 : vector<16x128xf32>
    %c0_45 = arith.constant 0 : index
    %c0_46 = arith.constant 0 : index
    %c0_47 = arith.constant 0 : index
    %81 = vector.load %arg11[%c0_45, %c0_46, %c0_47] : memref<2x128x32xf32, #tpu.memory_space<vmem>>, vector<1x128x32xf32>
    %82 = vector.shape_cast %81 : vector<1x128x32xf32> to vector<128x32xf32>
    %cst_48 = arith.constant dense<0.000000e+00> : vector<16x32xf32>
    %83 = tpu.matmul %80, %82, %cst_48 {dimension_numbers = #tpu.dot_dimension_numbers<[1], [0], [0], [1], [0, 0, 1, 1], [], []>} : vector<16x128xf32>, vector<128x32xf32>, vector<16x32xf32> -> vector<16x32xf32>
    %84 = arith.addf %78, %83 : vector<16x32xf32>
    %c0_49 = arith.constant 0 : index
    %c0_50 = arith.constant 0 : index
    %c0_51 = arith.constant 0 : index
    %85 = vector.load %arg12[%c0_49, %c0_50, %c0_51] : memref<2x1x32xf32, #tpu.memory_space<vmem>>, vector<1x1x32xf32>
    %86 = vector.shape_cast %85 : vector<1x1x32xf32> to vector<1x32xf32>
    %87 = vector.broadcast %86 : vector<1x32xf32> to vector<16x32xf32>
    %88 = arith.addf %84, %87 : vector<16x32xf32>
    %c0_52 = arith.constant 0 : index
    %c0_53 = arith.constant 0 : index
    %c0_54 = arith.constant 0 : index
    %89 = vector.load %arg13[%c0_52, %c0_53, %c0_54] : memref<2x32x32xf32, #tpu.memory_space<vmem>>, vector<1x32x32xf32>
    %90 = vector.shape_cast %89 : vector<1x32x32xf32> to vector<32x32xf32>
    %cst_55 = arith.constant dense<0.000000e+00> : vector<16x32xf32>
    %91 = tpu.matmul %88, %90, %cst_55 {dimension_numbers = #tpu.dot_dimension_numbers<[1], [0], [0], [1], [0, 0, 1, 1], [], []>} : vector<16x32xf32>, vector<32x32xf32>, vector<16x32xf32> -> vector<16x32xf32>
    %c0_56 = arith.constant 0 : index
    %c0_57 = arith.constant 0 : index
    %c0_58 = arith.constant 0 : index
    %92 = vector.load %arg14[%c0_56, %c0_57, %c0_58] : memref<2x1x32xf32, #tpu.memory_space<vmem>>, vector<1x1x32xf32>
    %93 = vector.shape_cast %92 : vector<1x1x32xf32> to vector<1x32xf32>
    %94 = vector.broadcast %93 : vector<1x32xf32> to vector<16x32xf32>
    %95 = arith.addf %91, %94 : vector<16x32xf32>
    %c0_59 = arith.constant 0 : index
    %c0_60 = arith.constant 0 : index
    %c0_61 = arith.constant 0 : index
    %96 = vector.load %arg15[%c0_59, %c0_60, %c0_61] : memref<2x1x32xf32, #tpu.memory_space<vmem>>, vector<1x1x32xf32>
    %97 = vector.shape_cast %96 : vector<1x1x32xf32> to vector<1x32xf32>
    %98 = vector.broadcast %97 : vector<1x32xf32> to vector<16x32xf32>
    %99 = arith.mulf %95, %98 : vector<16x32xf32>
    %c0_62 = arith.constant 0 : index
    %c0_63 = arith.constant 0 : index
    %c0_64 = arith.constant 0 : index
    %100 = vector.load %arg16[%c0_62, %c0_63, %c0_64] : memref<2x1x32xf32, #tpu.memory_space<vmem>>, vector<1x1x32xf32>
    %101 = vector.shape_cast %100 : vector<1x1x32xf32> to vector<1x32xf32>
    %102 = vector.broadcast %101 : vector<1x32xf32> to vector<16x32xf32>
    %103 = arith.addf %99, %102 : vector<16x32xf32>
    %cst_65 = arith.constant 0.000000e+00 : f32
    %104 = vector.broadcast %cst_65 : f32 to vector<16x32xf32>
    %105 = arith.maximumf %103, %104 : vector<16x32xf32>
    %106 = arith.addf %0, %105 : vector<16x32xf32>
    %107 = arith.truncf %106 : vector<16x32xf32> to vector<16x32xbf16>
    %cst_66 = arith.constant dense<0.000000e+00> : vector<32x32xf32>
    %108 = tpu.matmul %1, %107, %cst_66 {dimension_numbers = #tpu.dot_dimension_numbers<[1], [0], [0], [1], [0, 0, 1, 1], [], []>} : vector<32x16xbf16>, vector<16x32xbf16>, vector<32x32xf32> -> vector<32x32xf32>
    %cst_67 = arith.constant dense<0.000000e+00> : vector<32x32xf32>
    %109 = tpu.matmul %2, %107, %cst_67 {dimension_numbers = #tpu.dot_dimension_numbers<[1], [0], [0], [1], [0, 0, 1, 1], [], []>} : vector<32x16xbf16>, vector<16x32xbf16>, vector<32x32xf32> -> vector<32x32xf32>
    %c1 = arith.constant 1 : index
    %c0_68 = arith.constant 0 : index
    %c0_69 = arith.constant 0 : index
    %110 = vector.load %arg5[%c1, %c0_68, %c0_69] : memref<2x32x32xf32, #tpu.memory_space<vmem>>, vector<1x32x32xf32>
    %111 = vector.shape_cast %110 : vector<1x32x32xf32> to vector<32x32xf32>
    %cst_70 = arith.constant dense<0.000000e+00> : vector<32x32xf32>
    %112 = tpu.matmul %109, %111, %cst_70 {dimension_numbers = #tpu.dot_dimension_numbers<[1], [0], [0], [1], [0, 0, 1, 1], [], []>} : vector<32x32xf32>, vector<32x32xf32>, vector<32x32xf32> -> vector<32x32xf32>
    %c1_71 = arith.constant 1 : index
    %c0_72 = arith.constant 0 : index
    %c0_73 = arith.constant 0 : index
    %113 = vector.load %arg6[%c1_71, %c0_72, %c0_73] : memref<2x32x32xf32, #tpu.memory_space<vmem>>, vector<1x32x32xf32>
    %114 = vector.shape_cast %113 : vector<1x32x32xf32> to vector<32x32xf32>
    %cst_74 = arith.constant dense<0.000000e+00> : vector<32x32xf32>
    %115 = tpu.matmul %108, %114, %cst_74 {dimension_numbers = #tpu.dot_dimension_numbers<[1], [0], [0], [1], [0, 0, 1, 1], [], []>} : vector<32x32xf32>, vector<32x32xf32>, vector<32x32xf32> -> vector<32x32xf32>
    %116 = arith.addf %112, %115 : vector<32x32xf32>
    %c1_75 = arith.constant 1 : index
    %c0_76 = arith.constant 0 : index
    %c0_77 = arith.constant 0 : index
    %117 = vector.load %arg7[%c1_75, %c0_76, %c0_77] : memref<2x1x32xf32, #tpu.memory_space<vmem>>, vector<1x1x32xf32>
    %118 = vector.shape_cast %117 : vector<1x1x32xf32> to vector<1x32xf32>
    %119 = vector.broadcast %118 : vector<1x32xf32> to vector<32x32xf32>
    %120 = arith.addf %116, %119 : vector<32x32xf32>
    %cst_78 = arith.constant dense<0.000000e+00> : vector<16x32xf32>
    %121 = tpu.matmul %14, %120, %cst_78 {dimension_numbers = #tpu.dot_dimension_numbers<[1], [0], [0], [1], [0, 0, 1, 1], [], []>} : vector<16x32xf32>, vector<32x32xf32>, vector<16x32xf32> -> vector<16x32xf32>
    %122 = arith.mulf %120, %120 : vector<32x32xf32>
    %cst_79 = arith.constant dense<0.000000e+00> : vector<16x32xf32>
    %123 = tpu.matmul %14, %122, %cst_79 {dimension_numbers = #tpu.dot_dimension_numbers<[1], [0], [0], [1], [0, 0, 1, 1], [], []>} : vector<16x32xf32>, vector<32x32xf32>, vector<16x32xf32> -> vector<16x32xf32>
    %124 = vector.broadcast %4 : vector<16x1xf32> to vector<16x32xf32>
    %125 = arith.mulf %121, %124 : vector<16x32xf32>
    %126 = vector.broadcast %4 : vector<16x1xf32> to vector<16x32xf32>
    %127 = arith.mulf %123, %126 : vector<16x32xf32>
    %128 = arith.mulf %125, %125 : vector<16x32xf32>
    %129 = arith.subf %127, %128 : vector<16x32xf32>
    %cst_80 = arith.constant 0.000000e+00 : f32
    %130 = vector.broadcast %cst_80 : f32 to vector<16x32xf32>
    %131 = arith.maximumf %129, %130 : vector<16x32xf32>
    %cst_81 = arith.constant 9.99999974E-6 : f32
    %132 = vector.broadcast %cst_81 : f32 to vector<16x32xf32>
    %133 = arith.addf %131, %132 : vector<16x32xf32>
    %134 = math.sqrt %133 : vector<16x32xf32>
    %cst_82 = arith.constant 1.000000e+30 : f32
    %135 = vector.broadcast %cst_82 : f32 to vector<16x32xf32>
    %cst_83 = arith.constant -1.000000e+30 : f32
    %136 = vector.broadcast %cst_83 : f32 to vector<16x32xf32>
    %137 = vector.shape_cast %120 : vector<32x32xf32> to vector<32x1x32xf32>
    %cst_84 = arith.constant 1.000000e+30 : f32
    %138 = vector.shape_cast %17 : vector<32x16x1xi1> to vector<32x16x1xi1>
    %139 = vector.broadcast %138 : vector<32x16x1xi1> to vector<32x16x32xi1>
    %140 = vector.shape_cast %137 : vector<32x1x32xf32> to vector<32x1x32xf32>
    %141 = vector.broadcast %140 : vector<32x1x32xf32> to vector<32x16x32xf32>
    %142 = vector.broadcast %cst_84 : f32 to vector<32x16x32xf32>
    %143 = arith.select %139, %141, %142 : vector<32x16x32xi1>, vector<32x16x32xf32>
    %cst_85 = arith.constant dense<0x7F800000> : vector<16x32xf32>
    %144 = vector.multi_reduction <minimumf>, %143, %cst_85 [0] : vector<32x16x32xf32> to vector<16x32xf32>
    %145 = arith.minimumf %135, %144 : vector<16x32xf32>
    %cst_86 = arith.constant -1.000000e+30 : f32
    %146 = vector.shape_cast %17 : vector<32x16x1xi1> to vector<32x16x1xi1>
    %147 = vector.broadcast %146 : vector<32x16x1xi1> to vector<32x16x32xi1>
    %148 = vector.shape_cast %137 : vector<32x1x32xf32> to vector<32x1x32xf32>
    %149 = vector.broadcast %148 : vector<32x1x32xf32> to vector<32x16x32xf32>
    %150 = vector.broadcast %cst_86 : f32 to vector<32x16x32xf32>
    %151 = arith.select %147, %149, %150 : vector<32x16x32xi1>, vector<32x16x32xf32>
    %cst_87 = arith.constant dense<0xFF800000> : vector<16x32xf32>
    %152 = vector.multi_reduction <maximumf>, %151, %cst_87 [0] : vector<32x16x32xf32> to vector<16x32xf32>
    %153 = arith.maximumf %136, %152 : vector<16x32xf32>
    %154 = tpu.concatenate %125, %145, %153, %134 in 1 : vector<16x32xf32>, vector<16x32xf32>, vector<16x32xf32>, vector<16x32xf32> -> vector<16x128xf32>
    %c1_88 = arith.constant 1 : index
    %c0_89 = arith.constant 0 : index
    %c0_90 = arith.constant 0 : index
    %155 = vector.load %arg8[%c1_88, %c0_89, %c0_90] : memref<2x32x32xf32, #tpu.memory_space<vmem>>, vector<1x32x32xf32>
    %156 = vector.shape_cast %155 : vector<1x32x32xf32> to vector<32x32xf32>
    %cst_91 = arith.constant dense<0.000000e+00> : vector<16x32xf32>
    %157 = tpu.matmul %106, %156, %cst_91 {dimension_numbers = #tpu.dot_dimension_numbers<[1], [0], [0], [1], [0, 0, 1, 1], [], []>} : vector<16x32xf32>, vector<32x32xf32>, vector<16x32xf32> -> vector<16x32xf32>
    %c1_92 = arith.constant 1 : index
    %c0_93 = arith.constant 0 : index
    %c0_94 = arith.constant 0 : index
    %158 = vector.load %arg9[%c1_92, %c0_93, %c0_94] : memref<2x128x32xf32, #tpu.memory_space<vmem>>, vector<1x128x32xf32>
    %159 = vector.shape_cast %158 : vector<1x128x32xf32> to vector<128x32xf32>
    %cst_95 = arith.constant dense<0.000000e+00> : vector<16x32xf32>
    %160 = tpu.matmul %154, %159, %cst_95 {dimension_numbers = #tpu.dot_dimension_numbers<[1], [0], [0], [1], [0, 0, 1, 1], [], []>} : vector<16x128xf32>, vector<128x32xf32>, vector<16x32xf32> -> vector<16x32xf32>
    %161 = arith.addf %157, %160 : vector<16x32xf32>
    %162 = vector.broadcast %9 : vector<16x1xf32> to vector<16x128xf32>
    %163 = arith.mulf %154, %162 : vector<16x128xf32>
    %c1_96 = arith.constant 1 : index
    %c0_97 = arith.constant 0 : index
    %c0_98 = arith.constant 0 : index
    %164 = vector.load %arg10[%c1_96, %c0_97, %c0_98] : memref<2x128x32xf32, #tpu.memory_space<vmem>>, vector<1x128x32xf32>
    %165 = vector.shape_cast %164 : vector<1x128x32xf32> to vector<128x32xf32>
    %cst_99 = arith.constant dense<0.000000e+00> : vector<16x32xf32>
    %166 = tpu.matmul %163, %165, %cst_99 {dimension_numbers = #tpu.dot_dimension_numbers<[1], [0], [0], [1], [0, 0, 1, 1], [], []>} : vector<16x128xf32>, vector<128x32xf32>, vector<16x32xf32> -> vector<16x32xf32>
    %167 = arith.addf %161, %166 : vector<16x32xf32>
    %168 = vector.broadcast %12 : vector<16x1xf32> to vector<16x128xf32>
    %169 = arith.mulf %154, %168 : vector<16x128xf32>
    %c1_100 = arith.constant 1 : index
    %c0_101 = arith.constant 0 : index
    %c0_102 = arith.constant 0 : index
    %170 = vector.load %arg11[%c1_100, %c0_101, %c0_102] : memref<2x128x32xf32, #tpu.memory_space<vmem>>, vector<1x128x32xf32>
    %171 = vector.shape_cast %170 : vector<1x128x32xf32> to vector<128x32xf32>
    %cst_103 = arith.constant dense<0.000000e+00> : vector<16x32xf32>
    %172 = tpu.matmul %169, %171, %cst_103 {dimension_numbers = #tpu.dot_dimension_numbers<[1], [0], [0], [1], [0, 0, 1, 1], [], []>} : vector<16x128xf32>, vector<128x32xf32>, vector<16x32xf32> -> vector<16x32xf32>
    %173 = arith.addf %167, %172 : vector<16x32xf32>
    %c1_104 = arith.constant 1 : index
    %c0_105 = arith.constant 0 : index
    %c0_106 = arith.constant 0 : index
    %174 = vector.load %arg12[%c1_104, %c0_105, %c0_106] : memref<2x1x32xf32, #tpu.memory_space<vmem>>, vector<1x1x32xf32>
    %175 = vector.shape_cast %174 : vector<1x1x32xf32> to vector<1x32xf32>
    %176 = vector.broadcast %175 : vector<1x32xf32> to vector<16x32xf32>
    %177 = arith.addf %173, %176 : vector<16x32xf32>
    %c1_107 = arith.constant 1 : index
    %c0_108 = arith.constant 0 : index
    %c0_109 = arith.constant 0 : index
    %178 = vector.load %arg13[%c1_107, %c0_108, %c0_109] : memref<2x32x32xf32, #tpu.memory_space<vmem>>, vector<1x32x32xf32>
    %179 = vector.shape_cast %178 : vector<1x32x32xf32> to vector<32x32xf32>
    %cst_110 = arith.constant dense<0.000000e+00> : vector<16x32xf32>
    %180 = tpu.matmul %177, %179, %cst_110 {dimension_numbers = #tpu.dot_dimension_numbers<[1], [0], [0], [1], [0, 0, 1, 1], [], []>} : vector<16x32xf32>, vector<32x32xf32>, vector<16x32xf32> -> vector<16x32xf32>
    %c1_111 = arith.constant 1 : index
    %c0_112 = arith.constant 0 : index
    %c0_113 = arith.constant 0 : index
    %181 = vector.load %arg14[%c1_111, %c0_112, %c0_113] : memref<2x1x32xf32, #tpu.memory_space<vmem>>, vector<1x1x32xf32>
    %182 = vector.shape_cast %181 : vector<1x1x32xf32> to vector<1x32xf32>
    %183 = vector.broadcast %182 : vector<1x32xf32> to vector<16x32xf32>
    %184 = arith.addf %180, %183 : vector<16x32xf32>
    %c1_114 = arith.constant 1 : index
    %c0_115 = arith.constant 0 : index
    %c0_116 = arith.constant 0 : index
    %185 = vector.load %arg15[%c1_114, %c0_115, %c0_116] : memref<2x1x32xf32, #tpu.memory_space<vmem>>, vector<1x1x32xf32>
    %186 = vector.shape_cast %185 : vector<1x1x32xf32> to vector<1x32xf32>
    %187 = vector.broadcast %186 : vector<1x32xf32> to vector<16x32xf32>
    %188 = arith.mulf %184, %187 : vector<16x32xf32>
    %c1_117 = arith.constant 1 : index
    %c0_118 = arith.constant 0 : index
    %c0_119 = arith.constant 0 : index
    %189 = vector.load %arg16[%c1_117, %c0_118, %c0_119] : memref<2x1x32xf32, #tpu.memory_space<vmem>>, vector<1x1x32xf32>
    %190 = vector.shape_cast %189 : vector<1x1x32xf32> to vector<1x32xf32>
    %191 = vector.broadcast %190 : vector<1x32xf32> to vector<16x32xf32>
    %192 = arith.addf %188, %191 : vector<16x32xf32>
    %cst_120 = arith.constant 0.000000e+00 : f32
    %193 = vector.broadcast %cst_120 : f32 to vector<16x32xf32>
    %194 = arith.maximumf %192, %193 : vector<16x32xf32>
    %195 = arith.addf %106, %194 : vector<16x32xf32>
    %c0_121 = arith.constant 0 : index
    %c0_122 = arith.constant 0 : index
    %196 = vector.load %arg4[%c0_121, %c0_122] : memref<2x16xf32, #tpu.memory_space<vmem>>, vector<2x16xf32>
    %cst_123 = arith.constant dense<0.000000e+00> : vector<2x32xf32>
    %197 = tpu.matmul %196, %195, %cst_123 {dimension_numbers = #tpu.dot_dimension_numbers<[1], [0], [0], [1], [0, 0, 1, 1], [], []>} : vector<2x16xf32>, vector<16x32xf32>, vector<2x32xf32> -> vector<2x32xf32>
    %c0_124 = arith.constant 0 : index
    %c0_125 = arith.constant 0 : index
    %198 = vector.load %arg17[%c0_124, %c0_125] : memref<32x8xf32, #tpu.memory_space<vmem>>, vector<32x8xf32>
    %cst_126 = arith.constant dense<0.000000e+00> : vector<2x8xf32>
    %199 = tpu.matmul %197, %198, %cst_126 {dimension_numbers = #tpu.dot_dimension_numbers<[1], [0], [0], [1], [0, 0, 1, 1], [], []>} : vector<2x32xf32>, vector<32x8xf32>, vector<2x8xf32> -> vector<2x8xf32>
    %c0_127 = arith.constant 0 : index
    %c0_128 = arith.constant 0 : index
    %200 = vector.load %arg18[%c0_127, %c0_128] : memref<1x8xf32, #tpu.memory_space<vmem>>, vector<1x8xf32>
    %201 = vector.broadcast %200 : vector<1x8xf32> to vector<2x8xf32>
    %202 = arith.addf %199, %201 : vector<2x8xf32>
    %c0_129 = arith.constant 0 : index
    %c0_130 = arith.constant 0 : index
    %203 = vector.load %arg19[%c0_129, %c0_130] : memref<2x8xf32, #tpu.memory_space<vmem>>, vector<2x8xf32>
    tpu.vector_store %arg19[%c0_129, %c0_130], %202 {strides = array<i32>} : memref<2x8xf32, #tpu.memory_space<vmem>>, vector<2x8xf32>,
    return
  }
}

</mosaic_0001>

<llo_original>
// kernel: tpu_custom_call.1
$region0: #{tpu_custom_call.1}
  #allocation0 [shape = 'u32[]', space=smem, size = 0x4, offset = 0x4, fixed_abs, tag = 'smem constant byte address 0x4 - core index']
  #allocation1 [shape = 'u32[144,128]{1,0:T(1,128)}', space=vmem, size = 0x12000, scoped, tag = 'internal scratch']
  %s0 = inlined_call_operand.vmem [shape: f32[16,32], index: 0, kind: input, shape index: {}]
  %s1 = inlined_call_operand.vmem [shape: bf16[32,16], index: 1, kind: input, shape index: {}]
  %s2 = inlined_call_operand.vmem [shape: bf16[32,16], index: 2, kind: input, shape index: {}]
  %s3 = inlined_call_operand.vmem [shape: f32[16,1], index: 3, kind: input, shape index: {}]
  %s4 = inlined_call_operand.vmem [shape: f32[2,16], index: 4, kind: input, shape index: {}]
  %s5 = inlined_call_operand.vmem [shape: f32[2,32,32], index: 5, kind: input, shape index: {}]
  %s6 = inlined_call_operand.vmem [shape: f32[2,32,32], index: 6, kind: input, shape index: {}]
  %s7 = inlined_call_operand.vmem [shape: f32[2,1,32], index: 7, kind: input, shape index: {}]
  %s8 = inlined_call_operand.vmem [shape: f32[2,32,32], index: 8, kind: input, shape index: {}]
  %s9 = inlined_call_operand.vmem [shape: f32[2,128,32], index: 9, kind: input, shape index: {}]
  %s10 = inlined_call_operand.vmem [shape: f32[2,128,32], index: 10, kind: input, shape index: {}]
  %s11 = inlined_call_operand.vmem [shape: f32[2,128,32], index: 11, kind: input, shape index: {}]
  %s12 = inlined_call_operand.vmem [shape: f32[2,1,32], index: 12, kind: input, shape index: {}]
  %s13 = inlined_call_operand.vmem [shape: f32[2,32,32], index: 13, kind: input, shape index: {}]
  %s14 = inlined_call_operand.vmem [shape: f32[2,1,32], index: 14, kind: input, shape index: {}]
  %s15 = inlined_call_operand.vmem [shape: f32[2,1,32], index: 15, kind: input, shape index: {}]
  %s16 = inlined_call_operand.vmem [shape: f32[2,1,32], index: 16, kind: input, shape index: {}]
  %s17 = inlined_call_operand.vmem [shape: f32[32,8], index: 17, kind: input, shape index: {}]
  %s18 = inlined_call_operand.vmem [shape: f32[1,8], index: 18, kind: input, shape index: {}]
  %s19 = inlined_call_operand.hbm [shape: f32[2,8], index: 19, kind: output, shape index: {}]
  %s20 = sld [smem:[#allocation0]]
  $region86: #{tpu_custom_call.1} parent=0
    _
  %s22 = ssub.s32 1, %s20
  %s23 = scalar_select 0, %s22, %s20
  $region1: #{tpu_custom_call.1} parent=0
    #allocation2 [shape = 'u8[1024]{0}', space=vmem, size = 0x400, scoped, tag = 'output window, operand 0, single buffered']
    #allocation3 [shape = 's32[1]{0}', space=sflag, size = 0x4, scoped, tag = 'scoped memory for tpu_custom_call.1']
    %24 = vsyncpa [#allocation3], 0
    // Predicated region
    $region2: #{tpu_custom_call.1} parent=1 // pred_check
      _
    $region3: #{tpu_custom_call.1} parent=1 // pred_check_branch
      %26 = sbr.rel (0) target = $region5
    $region4: #{tpu_custom_call.1} parent=1 // pred_region
      _
    $region5: #{tpu_custom_call.1} parent=1 // pred_fallthru
      _
    // Predicated region
    $region6: #{tpu_custom_call.1} parent=1 // pred_check
      _
    $region7: #{tpu_custom_call.1} parent=1 // pred_check_branch
      %28 = sbr.rel (0) target = $region9
    $region8: #{tpu_custom_call.1} parent=1 // pred_region
      _
    $region9: #{tpu_custom_call.1} parent=1 // pred_fallthru
      _
    // Predicated region
    $region10: #{tpu_custom_call.1} parent=1 // pred_check
      _
    $region11: #{tpu_custom_call.1} parent=1 // pred_check_branch
      %30 = sbr.rel (0) target = $region13
    $region12: #{tpu_custom_call.1} parent=1 // pred_region
      _
    $region13: #{tpu_custom_call.1} parent=1 // pred_fallthru
      _
    // Predicated region
    $region14: #{tpu_custom_call.1} parent=1 // pred_check
      _
    $region15: #{tpu_custom_call.1} parent=1 // pred_check_branch
      %32 = sbr.rel (0) target = $region17
    $region16: #{tpu_custom_call.1} parent=1 // pred_region
      _
    $region17: #{tpu_custom_call.1} parent=1 // pred_fallthru
      _
    // Predicated region
    $region18: #{tpu_custom_call.1} parent=1 // pred_check
      _
    $region19: #{tpu_custom_call.1} parent=1 // pred_check_branch
      %34 = sbr.rel (0) target = $region21
    $region20: #{tpu_custom_call.1} parent=1 // pred_region
      _
    $region21: #{tpu_custom_call.1} parent=1 // pred_fallthru
      _
    // Predicated region
    $region22: #{tpu_custom_call.1} parent=1 // pred_check
      _
    $region23: #{tpu_custom_call.1} parent=1 // pred_check_branch
      %36 = sbr.rel (0) target = $region25
    $region24: #{tpu_custom_call.1} parent=1 // pred_region
      _
    $region25: #{tpu_custom_call.1} parent=1 // pred_fallthru
      _
    // Predicated region
    $region26: #{tpu_custom_call.1} parent=1 // pred_check
      _
    $region27: #{tpu_custom_call.1} parent=1 // pred_check_branch
      %38 = sbr.rel (0) target = $region29
    $region28: #{tpu_custom_call.1} parent=1 // pred_region
      _
    $region29: #{tpu_custom_call.1} parent=1 // pred_fallthru
      _
    // Predicated region
    $region30: #{tpu_custom_call.1} parent=1 // pred_check
      _
    $region31: #{tpu_custom_call.1} parent=1 // pred_check_branch
      %40 = sbr.rel (0) target = $region33
    $region32: #{tpu_custom_call.1} parent=1 // pred_region
      _
    $region33: #{tpu_custom_call.1} parent=1 // pred_fallthru
      _
    // Predicated region
    $region34: #{tpu_custom_call.1} parent=1 // pred_check
      _
    $region35: #{tpu_custom_call.1} parent=1 // pred_check_branch
      %42 = sbr.rel (0) target = $region37
    $region36: #{tpu_custom_call.1} parent=1 // pred_region
      _
    $region37: #{tpu_custom_call.1} parent=1 // pred_fallthru
      _
    // Predicated region
    $region38: #{tpu_custom_call.1} parent=1 // pred_check
      _
    $region39: #{tpu_custom_call.1} parent=1 // pred_check_branch
      %44 = sbr.rel (0) target = $region41
    $region40: #{tpu_custom_call.1} parent=1 // pred_region
      _
    $region41: #{tpu_custom_call.1} parent=1 // pred_fallthru
      _
    // Predicated region
    $region42: #{tpu_custom_call.1} parent=1 // pred_check
      _
    $region43: #{tpu_custom_call.1} parent=1 // pred_check_branch
      %46 = sbr.rel (0) target = $region45
    $region44: #{tpu_custom_call.1} parent=1 // pred_region
      _
    $region45: #{tpu_custom_call.1} parent=1 // pred_fallthru
      _
    // Predicated region
    $region46: #{tpu_custom_call.1} parent=1 // pred_check
      _
    $region47: #{tpu_custom_call.1} parent=1 // pred_check_branch
      %48 = sbr.rel (0) target = $region49
    $region48: #{tpu_custom_call.1} parent=1 // pred_region
      _
    $region49: #{tpu_custom_call.1} parent=1 // pred_fallthru
      _
    // Predicated region
    $region50: #{tpu_custom_call.1} parent=1 // pred_check
      _
    $region51: #{tpu_custom_call.1} parent=1 // pred_check_branch
      %50 = sbr.rel (0) target = $region53
    $region52: #{tpu_custom_call.1} parent=1 // pred_region
      _
    $region53: #{tpu_custom_call.1} parent=1 // pred_fallthru
      _
    // Predicated region
    $region54: #{tpu_custom_call.1} parent=1 // pred_check
      _
    $region55: #{tpu_custom_call.1} parent=1 // pred_check_branch
      %52 = sbr.rel (0) target = $region57
    $region56: #{tpu_custom_call.1} parent=1 // pred_region
      _
    $region57: #{tpu_custom_call.1} parent=1 // pred_fallthru
      _
    // Predicated region
    $region58: #{tpu_custom_call.1} parent=1 // pred_check
      _
    $region59: #{tpu_custom_call.1} parent=1 // pred_check_branch
      %54 = sbr.rel (0) target = $region61
    $region60: #{tpu_custom_call.1} parent=1 // pred_region
      _
    $region61: #{tpu_custom_call.1} parent=1 // pred_fallthru
      _
    // Predicated region
    $region62: #{tpu_custom_call.1} parent=1 // pred_check
      _
    $region63: #{tpu_custom_call.1} parent=1 // pred_check_branch
      %56 = sbr.rel (0) target = $region65
    $region64: #{tpu_custom_call.1} parent=1 // pred_region
      _
    $region65: #{tpu_custom_call.1} parent=1 // pred_fallthru
      _
    // Predicated region
    $region66: #{tpu_custom_call.1} parent=1 // pred_check
      _
    $region67: #{tpu_custom_call.1} parent=1 // pred_check_branch
      %58 = sbr.rel (0) target = $region69
    $region68: #{tpu_custom_call.1} parent=1 // pred_region
      _
    $region69: #{tpu_custom_call.1} parent=1 // pred_fallthru
      _
    // Predicated region
    $region70: #{tpu_custom_call.1} parent=1 // pred_check
      _
    $region71: #{tpu_custom_call.1} parent=1 // pred_check_branch
      %60 = sbr.rel (0) target = $region73
    $region72: #{tpu_custom_call.1} parent=1 // pred_region
      _
    $region73: #{tpu_custom_call.1} parent=1 // pred_fallthru
      _
    // Predicated region
    $region74: #{tpu_custom_call.1} parent=1 // pred_check
      _
    $region75: #{tpu_custom_call.1} parent=1 // pred_check_branch
      %62 = sbr.rel (0) target = $region77
    $region76: #{tpu_custom_call.1} parent=1 // pred_region
      _
    $region77: #{tpu_custom_call.1} parent=1 // pred_fallthru
      _
    %v67 = vld [vmem:[%s0] sm:$0xff]
    %v68 = vld [vmem:[%s0 + $0x8] sm:$0xff]
    %v69 = vld [vmem:[%s1] sm:$0xf]
    %v70 = vld [vmem:[%s1 + $0x4] sm:$0xf]
    %v71 = vld [vmem:[%s1 + $0x8] sm:$0xf]
    %v72 = vld [vmem:[%s1 + $0xc] sm:$0xf]
    %v73 = vld [vmem:[%s2] sm:$0xf]
    %v74 = vld [vmem:[%s2 + $0x4] sm:$0xf]
    %v75 = vld [vmem:[%s2 + $0x8] sm:$0xf]
    %v76 = vld [vmem:[%s2 + $0xc] sm:$0xf]
    %v77 = vld [vmem:[%s3] sm:$0xff]
    %v78 = vld [vmem:[%s3 + $0x8] sm:$0xff]
    %v79 = vrcp.pop %v77
    %v80 = vrcp.pop %v78
    %v81 = vadd.f32 %v77, 1.0
    %v82 = vadd.f32 %v78, 1.0
    %v83 = vlog2.pop %v81
    %v84 = vmul.f32 %v83, 0.6931472
    %v85 = vlog2.pop %v82
    %v86 = vmul.f32 %v85, 0.6931472
    %v87 = vmul.f32 %v84, 0.9490027
    %v88 = vmul.f32 %v86, 0.9490027
    %v89 = vrcp.pop %v84
    %v90 = vrcp.pop %v86
    %v91 = vmul.f32 %v89, 1.0537378
    %v92 = vmul.f32 %v90, 1.0537378
    %v93 = vunpack.c.l.bf16 %v73
    %v94 = vunpack.c.l.bf16 %v74
    %v95 = vunpack.c.l.bf16 %v75
    %v96 = vunpack.c.l.bf16 %v76
    %97 = vxpose.xlu0.b32.start [1/16] %v93, 128
    %98 = vxpose.xlu0.b32.cont [2/16] %v94, 128
    %99 = vxpose.xlu0.b32.cont [3/16] %v95, 128
    %100 = vxpose.xlu0.b32.cont [4/16] %v96, 128
    %101 = vxpose.xlu0.b32.cont [5/16] 0.0, 128
    %102 = vxpose.xlu0.b32.cont [6/16] 0.0, 128
    %103 = vxpose.xlu0.b32.cont [7/16] 0.0, 128
    %104 = vxpose.xlu0.b32.cont [8/16] 0.0, 128
    %105 = vxpose.xlu0.b32.cont [9/16] 0.0, 128
    %106 = vxpose.xlu0.b32.cont [10/16] 0.0, 128
    %107 = vxpose.xlu0.b32.cont [11/16] 0.0, 128
    %108 = vxpose.xlu0.b32.cont [12/16] 0.0, 128
    %109 = vxpose.xlu0.b32.cont [13/16] 0.0, 128
    %110 = vxpose.xlu0.b32.cont [14/16] 0.0, 128
    %111 = vxpose.xlu0.b32.cont [15/16] 0.0, 128
    %112 = vxpose.xlu0.b32.end [16/16] 0.0, 128
    %v113 = vpop.trf.xlu0
    %v114 = vpop.trf.xlu0
    %v115 = vpop.trf.xlu0
    %v116 = vpop.trf.xlu0
    %v117 = vpop.trf.xlu0
    %v118 = vpop.trf.xlu0
    %v119 = vpop.trf.xlu0
    %v120 = vpop.trf.xlu0
    %v121 = vpop.trf.xlu0
    %v122 = vpop.trf.xlu0
    %v123 = vpop.trf.xlu0
    %v124 = vpop.trf.xlu0
    %v125 = vpop.trf.xlu0
    %v126 = vpop.trf.xlu0
    %v127 = vpop.trf.xlu0
    %v128 = vpop.trf.xlu0
    %v133 = vunpack.c.l.b16 %v73
    %v134 = vunpack.c.l.b16 %v74
    %v135 = vunpack.c.l.b16 %v75
    %v136 = vunpack.c.l.b16 %v76
    %v137 = vpack.c.b16 %v134, %v133
    %v138 = vpack.c.b16 %v136, %v135
    %v140 = vpack.i.b16 %v137, %v137
    %v142 = vlaneseq
    %v143 = vshrl.u32 %v142, 7
    %v144 = vsub.s32 0, %v143
    %v145 = vrot.slane %v140, %v144
    %147 = vbcast.lane.c.b16.xlu0 %v145, 256
    %v148 = vpop.permute.xlu0 %147
    %v149 = vshrl.u32 %v137, 16
    %v150 = vpack.i.b16 %v149, %v149
    %v152 = vlaneseq
    %v153 = vshrl.u32 %v152, 7
    %v154 = vsub.s32 0, %v153
    %v155 = vrot.slane %v150, %v154
    %157 = vbcast.lane.c.b16.xlu0 %v155, 256
    %v158 = vpop.permute.xlu0 %157
    %v159 = vlaneseq
    %v160 = vshrl.u32 %v159, 7
    %v161 = vsub.s32 1, %v160
    %v162 = vrot.slane %v140, %v161
    %164 = vbcast.lane.c.b16.xlu0 %v162, 256
    %v165 = vpop.permute.xlu0 %164
    %v166 = vlaneseq
    %v167 = vshrl.u32 %v166, 7
    %v168 = vsub.s32 1, %v167
    %v169 = vrot.slane %v150, %v168
    %171 = vbcast.lane.c.b16.xlu0 %v169, 256
    %v172 = vpop.permute.xlu0 %171
    %v173 = vlaneseq
    %v174 = vshrl.u32 %v173, 7
    %v175 = vsub.s32 2, %v174
    %v176 = vrot.slane %v140, %v175
    %178 = vbcast.lane.c.b16.xlu0 %v176, 256
    %v179 = vpop.permute.xlu0 %178
    %v180 = vlaneseq
    %v181 = vshrl.u32 %v180, 7
    %v182 = vsub.s32 2, %v181
    %v183 = vrot.slane %v150, %v182
    %185 = vbcast.lane.c.b16.xlu0 %v183, 256
    %v186 = vpop.permute.xlu0 %185
    %v187 = vlaneseq
    %v188 = vshrl.u32 %v187, 7
    %v189 = vsub.s32 3, %v188
    %v190 = vrot.slane %v140, %v189
    %192 = vbcast.lane.c.b16.xlu0 %v190, 256
    %v193 = vpop.permute.xlu0 %192
    %v194 = vlaneseq
    %v195 = vshrl.u32 %v194, 7
    %v196 = vsub.s32 3, %v195
    %v197 = vrot.slane %v150, %v196
    %199 = vbcast.lane.c.b16.xlu0 %v197, 256
    %v200 = vpop.permute.xlu0 %199
    %v201 = vlaneseq
    %v202 = vshrl.u32 %v201, 7
    %v203 = vsub.s32 4, %v202
    %v204 = vrot.slane %v140, %v203
    %206 = vbcast.lane.c.b16.xlu0 %v204, 256
    %v207 = vpop.permute.xlu0 %206
    %v208 = vlaneseq
    %v209 = vshrl.u32 %v208, 7
    %v210 = vsub.s32 4, %v209
    %v211 = vrot.slane %v150, %v210
    %213 = vbcast.lane.c.b16.xlu0 %v211, 256
    %v214 = vpop.permute.xlu0 %213
    %v215 = vlaneseq
    %v216 = vshrl.u32 %v215, 7
    %v217 = vsub.s32 5, %v216
    %v218 = vrot.slane %v140, %v217
    %220 = vbcast.lane.c.b16.xlu0 %v218, 256
    %v221 = vpop.permute.xlu0 %220
    %v222 = vlaneseq
    %v223 = vshrl.u32 %v222, 7
    %v224 = vsub.s32 5, %v223
    %v225 = vrot.slane %v150, %v224
    %227 = vbcast.lane.c.b16.xlu0 %v225, 256
    %v228 = vpop.permute.xlu0 %227
    %v229 = vlaneseq
    %v230 = vshrl.u32 %v229, 7
    %v231 = vsub.s32 6, %v230
    %v232 = vrot.slane %v140, %v231
    %234 = vbcast.lane.c.b16.xlu0 %v232, 256
    %v235 = vpop.permute.xlu0 %234
    %v236 = vlaneseq
    %v237 = vshrl.u32 %v236, 7
    %v238 = vsub.s32 6, %v237
    %v239 = vrot.slane %v150, %v238
    %241 = vbcast.lane.c.b16.xlu0 %v239, 256
    %v242 = vpop.permute.xlu0 %241
    %v243 = vlaneseq
    %v244 = vshrl.u32 %v243, 7
    %v245 = vsub.s32 7, %v244
    %v246 = vrot.slane %v140, %v245
    %248 = vbcast.lane.c.b16.xlu0 %v246, 256
    %v249 = vpop.permute.xlu0 %248
    %v250 = vlaneseq
    %v251 = vshrl.u32 %v250, 7
    %v252 = vsub.s32 7, %v251
    %v253 = vrot.slane %v150, %v252
    %255 = vbcast.lane.c.b16.xlu0 %v253, 256
    %v256 = vpop.permute.xlu0 %255
    %v258 = vpack.i.b16 %v138, %v138
    %v260 = vlaneseq
    %v261 = vshrl.u32 %v260, 7
    %v262 = vsub.s32 0, %v261
    %v263 = vrot.slane %v258, %v262
    %265 = vbcast.lane.c.b16.xlu0 %v263, 256
    %v266 = vpop.permute.xlu0 %265
    %v267 = vshrl.u32 %v138, 16
    %v268 = vpack.i.b16 %v267, %v267
    %v270 = vlaneseq
    %v271 = vshrl.u32 %v270, 7
    %v272 = vsub.s32 0, %v271
    %v273 = vrot.slane %v268, %v272
    %275 = vbcast.lane.c.b16.xlu0 %v273, 256
    %v276 = vpop.permute.xlu0 %275
    %v277 = vlaneseq
    %v278 = vshrl.u32 %v277, 7
    %v279 = vsub.s32 1, %v278
    %v280 = vrot.slane %v258, %v279
    %282 = vbcast.lane.c.b16.xlu0 %v280, 256
    %v283 = vpop.permute.xlu0 %282
    %v284 = vlaneseq
    %v285 = vshrl.u32 %v284, 7
    %v286 = vsub.s32 1, %v285
    %v287 = vrot.slane %v268, %v286
    %289 = vbcast.lane.c.b16.xlu0 %v287, 256
    %v290 = vpop.permute.xlu0 %289
    %v291 = vlaneseq
    %v292 = vshrl.u32 %v291, 7
    %v293 = vsub.s32 2, %v292
    %v294 = vrot.slane %v258, %v293
    %296 = vbcast.lane.c.b16.xlu0 %v294, 256
    %v297 = vpop.permute.xlu0 %296
    %v298 = vlaneseq
    %v299 = vshrl.u32 %v298, 7
    %v300 = vsub.s32 2, %v299
    %v301 = vrot.slane %v268, %v300
    %303 = vbcast.lane.c.b16.xlu0 %v301, 256
    %v304 = vpop.permute.xlu0 %303
    %v305 = vlaneseq
    %v306 = vshrl.u32 %v305, 7
    %v307 = vsub.s32 3, %v306
    %v308 = vrot.slane %v258, %v307
    %310 = vbcast.lane.c.b16.xlu0 %v308, 256
    %v311 = vpop.permute.xlu0 %310
    %v312 = vlaneseq
    %v313 = vshrl.u32 %v312, 7
    %v314 = vsub.s32 3, %v313
    %v315 = vrot.slane %v268, %v314
    %317 = vbcast.lane.c.b16.xlu0 %v315, 256
    %v318 = vpop.permute.xlu0 %317
    %v319 = vlaneseq
    %v320 = vshrl.u32 %v319, 7
    %v321 = vsub.s32 4, %v320
    %v322 = vrot.slane %v258, %v321
    %324 = vbcast.lane.c.b16.xlu0 %v322, 256
    %v325 = vpop.permute.xlu0 %324
    %v326 = vlaneseq
    %v327 = vshrl.u32 %v326, 7
    %v328 = vsub.s32 4, %v327
    %v329 = vrot.slane %v268, %v328
    %331 = vbcast.lane.c.b16.xlu0 %v329, 256
    %v332 = vpop.permute.xlu0 %331
    %v333 = vlaneseq
    %v334 = vshrl.u32 %v333, 7
    %v335 = vsub.s32 5, %v334
    %v336 = vrot.slane %v258, %v335
    %338 = vbcast.lane.c.b16.xlu0 %v336, 256
    %v339 = vpop.permute.xlu0 %338
    %v340 = vlaneseq
    %v341 = vshrl.u32 %v340, 7
    %v342 = vsub.s32 5, %v341
    %v343 = vrot.slane %v268, %v342
    %345 = vbcast.lane.c.b16.xlu0 %v343, 256
    %v346 = vpop.permute.xlu0 %345
    %v347 = vlaneseq
    %v348 = vshrl.u32 %v347, 7
    %v349 = vsub.s32 6, %v348
    %v350 = vrot.slane %v258, %v349
    %352 = vbcast.lane.c.b16.xlu0 %v350, 256
    %v353 = vpop.permute.xlu0 %352
    %v354 = vlaneseq
    %v355 = vshrl.u32 %v354, 7
    %v356 = vsub.s32 6, %v355
    %v357 = vrot.slane %v268, %v356
    %359 = vbcast.lane.c.b16.xlu0 %v357, 256
    %v360 = vpop.permute.xlu0 %359
    %v361 = vlaneseq
    %v362 = vshrl.u32 %v361, 7
    %v363 = vsub.s32 7, %v362
    %v364 = vrot.slane %v258, %v363
    %366 = vbcast.lane.c.b16.xlu0 %v364, 256
    %v367 = vpop.permute.xlu0 %366
    %v368 = vlaneseq
    %v369 = vshrl.u32 %v368, 7
    %v370 = vsub.s32 7, %v369
    %v371 = vrot.slane %v268, %v370
    %373 = vbcast.lane.c.b16.xlu0 %v371, 256
    %v374 = vpop.permute.xlu0 %373
    %vm375 = vcmp.gt.bf16.partialorder %v148, 1056980736
    %vm376 = vcmp.gt.bf16.partialorder %v158, 1056980736
    %vm377 = vcmp.gt.bf16.partialorder %v165, 1056980736
    %vm378 = vcmp.gt.bf16.partialorder %v172, 1056980736
    %vm379 = vcmp.gt.bf16.partialorder %v179, 1056980736
    %vm380 = vcmp.gt.bf16.partialorder %v186, 1056980736
    %vm381 = vcmp.gt.bf16.partialorder %v193, 1056980736
    %vm382 = vcmp.gt.bf16.partialorder %v200, 1056980736
    %vm383 = vcmp.gt.bf16.partialorder %v207, 1056980736
    %vm384 = vcmp.gt.bf16.partialorder %v214, 1056980736
    %vm385 = vcmp.gt.bf16.partialorder %v221, 1056980736
    %vm386 = vcmp.gt.bf16.partialorder %v228, 1056980736
    %vm387 = vcmp.gt.bf16.partialorder %v235, 1056980736
    %vm388 = vcmp.gt.bf16.partialorder %v242, 1056980736
    %vm389 = vcmp.gt.bf16.partialorder %v249, 1056980736
    %vm390 = vcmp.gt.bf16.partialorder %v256, 1056980736
    %vm391 = vcmp.gt.bf16.partialorder %v266, 1056980736
    %vm392 = vcmp.gt.bf16.partialorder %v276, 1056980736
    %vm393 = vcmp.gt.bf16.partialorder %v283, 1056980736
    %vm394 = vcmp.gt.bf16.partialorder %v290, 1056980736
    %vm395 = vcmp.gt.bf16.partialorder %v297, 1056980736
    %vm396 = vcmp.gt.bf16.partialorder %v304, 1056980736
    %vm397 = vcmp.gt.bf16.partialorder %v311, 1056980736
    %vm398 = vcmp.gt.bf16.partialorder %v318, 1056980736
    %vm399 = vcmp.gt.bf16.partialorder %v325, 1056980736
    %vm400 = vcmp.gt.bf16.partialorder %v332, 1056980736
    %vm401 = vcmp.gt.bf16.partialorder %v339, 1056980736
    %vm402 = vcmp.gt.bf16.partialorder %v346, 1056980736
    %vm403 = vcmp.gt.bf16.partialorder %v353, 1056980736
    %vm404 = vcmp.gt.bf16.partialorder %v360, 1056980736
    %vm405 = vcmp.gt.bf16.partialorder %v367, 1056980736
    %vm406 = vcmp.gt.bf16.partialorder %v374, 1056980736
    %v407 = vpack.c.bf16 %v68, %v67
    %v412 = vunpack.c.l.b16 %v69
    %v413 = vunpack.c.l.b16 %v70
    %v414 = vunpack.c.l.b16 %v71
    %v415 = vunpack.c.l.b16 %v72
    %v416 = vpack.c.b16 %v413, %v412
    %v417 = vpack.c.b16 %v415, %v414
    %vm418 = vcmask 130048
    %v420 = vsel %vm418, %v416, 0
    %v423 = vsel %vm418, %v417, 0
    %425 = vmatprep.subr.bf16.mxu0 0
    %426 = vmatpush1.bf16.msra.mxu0 %v407
    %427 = vmatprep.subr.bf16.mxu0 0
    %428 = vmatpush1.bf16.msra.mxu0 0
    %429 = vmatprep.subr.bf16.mxu0 0
    %430 = vmatpush1.bf16.msra.mxu0 0
    %431 = vmatprep.subr.bf16.mxu0 0
    %432 = vmatpush1.bf16.msra.mxu0 0
    %433 = vmatprep.subr.bf16.mxu0 0
    %434 = vmatpush1.bf16.msra.mxu0 0
    %435 = vmatprep.subr.bf16.mxu0 0
    %436 = vmatpush1.bf16.msra.mxu0 0
    %437 = vmatprep.subr.bf16.mxu0 0
    %438 = vmatpush1.bf16.msra.mxu0 0
    %439 = vmatprep.subr.bf16.mxu0 0
    %440 = vmatpush1.bf16.msra.mxu0 0
    %441 = vmatprep.subr.bf16.mxu0 0
    %442 = vmatpush1.bf16.msra.mxu0 0
    %443 = vmatprep.subr.bf16.mxu0 0
    %444 = vmatpush1.bf16.msra.mxu0 0
    %445 = vmatprep.subr.bf16.mxu0 0
    %446 = vmatpush1.bf16.msra.mxu0 0
    %447 = vmatprep.subr.bf16.mxu0 0
    %448 = vmatpush1.bf16.msra.mxu0 0
    %449 = vmatprep.subr.bf16.mxu0 0
    %450 = vmatpush1.bf16.msra.mxu0 0
    %451 = vmatprep.subr.bf16.mxu0 0
    %452 = vmatpush1.bf16.msra.mxu0 0
    %453 = vmatprep.subr.bf16.mxu0 0
    %454 = vmatpush1.bf16.msra.mxu0 0
    %455 = vmatprep.subr.bf16.mxu0 0
    %456 = vmatpush1.bf16.msra.mxu0 0
    %457 = vmatprep.mubr.bf16.mxu0 0
    %458 = vmatmul.mubr.bf16.gmra.mrb[0].mxu0 %v420
    %v459 = vpop.f32.mrb[0].mxu0
    %v460 = vadd.f32 0.0, %v459
    %v461 = vpop.f32.mrb[0].mxu0
    %v462 = vpop.f32.mrb[0].mxu0
    %v463 = vadd.f32 0.0, %v462
    %v464 = vpop.f32.mrb[0].mxu0
    %465 = vmatprep.mubr.bf16.mxu0 0
    %466 = vmatmul.mubr.bf16.gmra.mrb[0].mxu0 %v423
    %v467 = vpop.f32.mrb[0].mxu0
    %v468 = vadd.f32 0.0, %v467
    %v469 = vpop.f32.mrb[0].mxu0
    %v470 = vpop.f32.mrb[0].mxu0
    %v471 = vadd.f32 0.0, %v470
    %v472 = vpop.f32.mrb[0].mxu0
    %473 = vdwg.mxu0
    %v474 = vsel %vm418, %v137, 0
    %v476 = vsel %vm418, %v138, 0
    %478 = vmatprep.subr.bf16.mxu0 0
    %479 = vmatpush1.bf16.msra.mxu0 %v407
    %480 = vmatprep.subr.bf16.mxu0 0
    %481 = vmatpush1.bf16.msra.mxu0 0
    %482 = vmatprep.subr.bf16.mxu0 0
    %483 = vmatpush1.bf16.msra.mxu0 0
    %484 = vmatprep.subr.bf16.mxu0 0
    %485 = vmatpush1.bf16.msra.mxu0 0
    %486 = vmatprep.subr.bf16.mxu0 0
    %487 = vmatpush1.bf16.msra.mxu0 0
    %488 = vmatprep.subr.bf16.mxu0 0
    %489 = vmatpush1.bf16.msra.mxu0 0
    %490 = vmatprep.subr.bf16.mxu0 0
    %491 = vmatpush1.bf16.msra.mxu0 0
    %492 = vmatprep.subr.bf16.mxu0 0
    %493 = vmatpush1.bf16.msra.mxu0 0
    %494 = vmatprep.subr.bf16.mxu0 0
    %495 = vmatpush1.bf16.msra.mxu0 0
    %496 = vmatprep.subr.bf16.mxu0 0
    %497 = vmatpush1.bf16.msra.mxu0 0
    %498 = vmatprep.subr.bf16.mxu0 0
    %499 = vmatpush1.bf16.msra.mxu0 0
    %500 = vmatprep.subr.bf16.mxu0 0
    %501 = vmatpush1.bf16.msra.mxu0 0
    %502 = vmatprep.subr.bf16.mxu0 0
    %503 = vmatpush1.bf16.msra.mxu0 0
    %504 = vmatprep.subr.bf16.mxu0 0
    %505 = vmatpush1.bf16.msra.mxu0 0
    %506 = vmatprep.subr.bf16.mxu0 0
    %507 = vmatpush1.bf16.msra.mxu0 0
    %508 = vmatprep.subr.bf16.mxu0 0
    %509 = vmatpush1.bf16.msra.mxu0 0
    %510 = vmatprep.mubr.bf16.mxu0 0
    %511 = vmatmul.mubr.bf16.gmra.mrb[0].mxu0 %v474
    %v512 = vpop.f32.mrb[0].mxu0
    %v513 = vadd.f32 0.0, %v512
    %v514 = vpop.f32.mrb[0].mxu0
    %v515 = vpop.f32.mrb[0].mxu0
    %v516 = vadd.f32 0.0, %v515
    %v517 = vpop.f32.mrb[0].mxu0
    %518 = vmatprep.mubr.bf16.mxu0 0
    %519 = vmatmul.mubr.bf16.gmra.mrb[0].mxu0 %v476
    %v520 = vpop.f32.mrb[0].mxu0
    %v521 = vadd.f32 0.0, %v520
    %v522 = vpop.f32.mrb[0].mxu0
    %v523 = vpop.f32.mrb[0].mxu0
    %v524 = vadd.f32 0.0, %v523
    %v525 = vpop.f32.mrb[0].mxu0
    %526 = vdwg.mxu0
    %v527 = vld [vmem:[%s5] sm:$0xff]
    %v528 = vld [vmem:[%s5 + $0x8] sm:$0xff]
    %v529 = vld [vmem:[%s5 + $0x10] sm:$0xff]
    %v530 = vld [vmem:[%s5 + $0x18] sm:$0xff]
    %v531 = vld [vmem:[%s6] sm:$0xff]
    %v532 = vld [vmem:[%s6 + $0x8] sm:$0xff]
    %v533 = vld [vmem:[%s6 + $0x10] sm:$0xff]
    %v534 = vld [vmem:[%s6 + $0x18] sm:$0xff]
    %vm535 = vcmask 261120
    %v537 = vsel %vm535, %v460, 0
    %v540 = vsel %vm535, %v463, 0
    %v543 = vsel %vm535, %v468, 0
    %v546 = vsel %vm535, %v471, 0
    %548 = vmatprep.subr.mxu0 0.0
    %549 = vmatpush1.msra.mxu0 %v531
    %550 = vmatprep.subr.mxu0 0.0
    %551 = vmatpush1.msra.mxu0 %v532
    %552 = vmatprep.subr.mxu0 0.0
    %553 = vmatpush1.msra.mxu0 %v533
    %554 = vmatprep.subr.mxu0 0.0
    %555 = vmatpush1.msra.mxu0 %v534
    %556 = vmatprep.subr.mxu0 0.0
    %557 = vmatpush1.msra.mxu0 0.0
    %558 = vmatprep.subr.mxu0 0.0
    %559 = vmatpush1.msra.mxu0 0.0
    %560 = vmatprep.subr.mxu0 0.0
    %561 = vmatpush1.msra.mxu0 0.0
    %562 = vmatprep.subr.mxu0 0.0
    %563 = vmatpush1.msra.mxu0 0.0
    %564 = vmatprep.subr.mxu0 0.0
    %565 = vmatpush1.msra.mxu0 0.0
    %566 = vmatprep.subr.mxu0 0.0
    %567 = vmatpush1.msra.mxu0 0.0
    %568 = vmatprep.subr.mxu0 0.0
    %569 = vmatpush1.msra.mxu0 0.0
    %570 = vmatprep.subr.mxu0 0.0
    %571 = vmatpush1.msra.mxu0 0.0
    %572 = vmatprep.subr.mxu0 0.0
    %573 = vmatpush1.msra.mxu0 0.0
    %574 = vmatprep.subr.mxu0 0.0
    %575 = vmatpush1.msra.mxu0 0.0
    %576 = vmatprep.subr.mxu0 0.0
    %577 = vmatpush1.msra.mxu0 0.0
    %578 = vmatprep.subr.mxu0 0.0
    %579 = vmatpush1.msra.mxu0 0.0
    %580 = vmatprep.subr.mxu0 0.0
    %581 = vmatpush1.msra.mxu0 0.0
    %582 = vmatprep.subr.mxu0 0.0
    %583 = vmatpush1.msra.mxu0 0.0
    %584 = vmatprep.subr.mxu0 0.0
    %585 = vmatpush1.msra.mxu0 0.0
    %586 = vmatprep.subr.mxu0 0.0
    %587 = vmatpush1.msra.mxu0 0.0
    %588 = vmatprep.subr.mxu0 0.0
    %589 = vmatpush1.msra.mxu0 0.0
    %590 = vmatprep.subr.mxu0 0.0
    %591 = vmatpush1.msra.mxu0 0.0
    %592 = vmatprep.subr.mxu0 0.0
    %593 = vmatpush1.msra.mxu0 0.0
    %594 = vmatprep.subr.mxu0 0.0
    %595 = vmatpush1.msra.mxu0 0.0
    %596 = vmatprep.subr.mxu0 0.0
    %597 = vmatpush1.msra.mxu0 0.0
    %598 = vmatprep.subr.mxu0 0.0
    %599 = vmatpush1.msra.mxu0 0.0
    %600 = vmatprep.subr.mxu0 0.0
    %601 = vmatpush1.msra.mxu0 0.0
    %602 = vmatprep.subr.mxu0 0.0
    %603 = vmatpush1.msra.mxu0 0.0
    %604 = vmatprep.subr.mxu0 0.0
    %605 = vmatpush1.msra.mxu0 0.0
    %606 = vmatprep.subr.mxu0 0.0
    %607 = vmatpush1.msra.mxu0 0.0
    %608 = vmatprep.subr.mxu0 0.0
    %609 = vmatpush1.msra.mxu0 0.0
    %610 = vmatprep.subr.mxu0 0.0
    %611 = vmatpush1.msra.mxu0 0.0
    %612 = vmatprep.mubr.f32.mxu0 0.0
    %613 = vmatmul.mubr.f32.gmra.mrb[0].mxu0 %v537
    %v614 = vpop.f32.mrb[0].mxu0
    %v615 = vadd.f32 0.0, %v614
    %v616 = vpop.f32.mrb[0].mxu0
    %617 = vmatprep.mubr.f32.mxu0 0.0
    %618 = vmatmul.mubr.f32.gmra.mrb[0].mxu0 %v540
    %v619 = vpop.f32.mrb[0].mxu0
    %v620 = vadd.f32 0.0, %v619
    %v621 = vpop.f32.mrb[0].mxu0
    %622 = vmatprep.mubr.f32.mxu0 0.0
    %623 = vmatmul.mubr.f32.gmra.mrb[0].mxu0 %v543
    %v624 = vpop.f32.mrb[0].mxu0
    %v625 = vadd.f32 0.0, %v624
    %v626 = vpop.f32.mrb[0].mxu0
    %627 = vmatprep.mubr.f32.mxu0 0.0
    %628 = vmatmul.mubr.f32.gmra.mrb[0].mxu0 %v546
    %v629 = vpop.f32.mrb[0].mxu0
    %v630 = vadd.f32 0.0, %v629
    %v631 = vpop.f32.mrb[0].mxu0
    %632 = vdwg.mxu0
    %v634 = vsel %vm535, %v513, 0
    %v637 = vsel %vm535, %v516, 0
    %v640 = vsel %vm535, %v521, 0
    %v643 = vsel %vm535, %v524, 0
    %645 = vmatprep.subr.mxu0 0.0
    %646 = vmatpush1.msra.mxu0 %v527
    %647 = vmatprep.subr.mxu0 0.0
    %648 = vmatpush1.msra.mxu0 %v528
    %649 = vmatprep.subr.mxu0 0.0
    %650 = vmatpush1.msra.mxu0 %v529
    %651 = vmatprep.subr.mxu0 0.0
    %652 = vmatpush1.msra.mxu0 %v530
    %653 = vmatprep.subr.mxu0 0.0
    %654 = vmatpush1.msra.mxu0 0.0
    %655 = vmatprep.subr.mxu0 0.0
    %656 = vmatpush1.msra.mxu0 0.0
    %657 = vmatprep.subr.mxu0 0.0
    %658 = vmatpush1.msra.mxu0 0.0
    %659 = vmatprep.subr.mxu0 0.0
    %660 = vmatpush1.msra.mxu0 0.0
    %661 = vmatprep.subr.mxu0 0.0
    %662 = vmatpush1.msra.mxu0 0.0
    %663 = vmatprep.subr.mxu0 0.0
    %664 = vmatpush1.msra.mxu0 0.0
    %665 = vmatprep.subr.mxu0 0.0
    %666 = vmatpush1.msra.mxu0 0.0
    %667 = vmatprep.subr.mxu0 0.0
    %668 = vmatpush1.msra.mxu0 0.0
    %669 = vmatprep.subr.mxu0 0.0
    %670 = vmatpush1.msra.mxu0 0.0
    %671 = vmatprep.subr.mxu0 0.0
    %672 = vmatpush1.msra.mxu0 0.0
    %673 = vmatprep.subr.mxu0 0.0
    %674 = vmatpush1.msra.mxu0 0.0
    %675 = vmatprep.subr.mxu0 0.0
    %676 = vmatpush1.msra.mxu0 0.0
    %677 = vmatprep.subr.mxu0 0.0
    %678 = vmatpush1.msra.mxu0 0.0
    %679 = vmatprep.subr.mxu0 0.0
    %680 = vmatpush1.msra.mxu0 0.0
    %681 = vmatprep.subr.mxu0 0.0
    %682 = vmatpush1.msra.mxu0 0.0
    %683 = vmatprep.subr.mxu0 0.0
    %684 = vmatpush1.msra.mxu0 0.0
    %685 = vmatprep.subr.mxu0 0.0
    %686 = vmatpush1.msra.mxu0 0.0
    %687 = vmatprep.subr.mxu0 0.0
    %688 = vmatpush1.msra.mxu0 0.0
    %689 = vmatprep.subr.mxu0 0.0
    %690 = vmatpush1.msra.mxu0 0.0
    %691 = vmatprep.subr.mxu0 0.0
    %692 = vmatpush1.msra.mxu0 0.0
    %693 = vmatprep.subr.mxu0 0.0
    %694 = vmatpush1.msra.mxu0 0.0
    %695 = vmatprep.subr.mxu0 0.0
    %696 = vmatpush1.msra.mxu0 0.0
    %697 = vmatprep.subr.mxu0 0.0
    %698 = vmatpush1.msra.mxu0 0.0
    %699 = vmatprep.subr.mxu0 0.0
    %700 = vmatpush1.msra.mxu0 0.0
    %701 = vmatprep.subr.mxu0 0.0
    %702 = vmatpush1.msra.mxu0 0.0
    %703 = vmatprep.subr.mxu0 0.0
    %704 = vmatpush1.msra.mxu0 0.0
    %705 = vmatprep.subr.mxu0 0.0
    %706 = vmatpush1.msra.mxu0 0.0
    %707 = vmatprep.subr.mxu0 0.0
    %708 = vmatpush1.msra.mxu0 0.0
    %709 = vmatprep.mubr.f32.mxu0 0.0
    %710 = vmatmul.mubr.f32.gmra.mrb[0].mxu0 %v634
    %v711 = vpop.f32.mrb[0].mxu0
    %v712 = vadd.f32 %v615, %v711
    %v713 = vpop.f32.mrb[0].mxu0
    %714 = vmatprep.mubr.f32.mxu0 0.0
    %715 = vmatmul.mubr.f32.gmra.mrb[0].mxu0 %v637
    %v716 = vpop.f32.mrb[0].mxu0
    %v717 = vadd.f32 %v620, %v716
    %v718 = vpop.f32.mrb[0].mxu0
    %719 = vmatprep.mubr.f32.mxu0 0.0
    %720 = vmatmul.mubr.f32.gmra.mrb[0].mxu0 %v640
    %v721 = vpop.f32.mrb[0].mxu0
    %v722 = vadd.f32 %v625, %v721
    %v723 = vpop.f32.mrb[0].mxu0
    %724 = vmatprep.mubr.f32.mxu0 0.0
    %725 = vmatmul.mubr.f32.gmra.mrb[0].mxu0 %v643
    %v726 = vpop.f32.mrb[0].mxu0
    %v727 = vadd.f32 %v630, %v726
    %v728 = vpop.f32.mrb[0].mxu0
    %729 = vdwg.mxu0
    %v730 = vld [vmem:[%s7] sm:$0x1]
    %v732 = vlaneseq
    %v733 = vshrl.u32 %v732, 7
    %v734 = vsub.s32 0, %v733
    %v735 = vrot.slane %v730, %v734
    %v737 = vadd.f32 %v712, %v735
    %v738 = vadd.f32 %v717, %v735
    %v739 = vadd.f32 %v722, %v735
    %v740 = vadd.f32 %v727, %v735
    %v742 = vsel %vm535, %v113, 0
    %v745 = vsel %vm535, %v114, 0
    %747 = vmatprep.subr.mxu0 0.0
    %748 = vmatpush1.msra.mxu0 %v737
    %749 = vmatprep.subr.mxu0 0.0
    %750 = vmatpush1.msra.mxu0 %v738
    %751 = vmatprep.subr.mxu0 0.0
    %752 = vmatpush1.msra.mxu0 %v739
    %753 = vmatprep.subr.mxu0 0.0
    %754 = vmatpush1.msra.mxu0 %v740
    %755 = vmatprep.subr.mxu0 0.0
    %756 = vmatpush1.msra.mxu0 0.0
    %757 = vmatprep.subr.mxu0 0.0
    %758 = vmatpush1.msra.mxu0 0.0
    %759 = vmatprep.subr.mxu0 0.0
    %760 = vmatpush1.msra.mxu0 0.0
    %761 = vmatprep.subr.mxu0 0.0
    %762 = vmatpush1.msra.mxu0 0.0
    %763 = vmatprep.subr.mxu0 0.0
    %764 = vmatpush1.msra.mxu0 0.0
    %765 = vmatprep.subr.mxu0 0.0
    %766 = vmatpush1.msra.mxu0 0.0
    %767 = vmatprep.subr.mxu0 0.0
    %768 = vmatpush1.msra.mxu0 0.0
    %769 = vmatprep.subr.mxu0 0.0
    %770 = vmatpush1.msra.mxu0 0.0
    %771 = vmatprep.subr.mxu0 0.0
    %772 = vmatpush1.msra.mxu0 0.0
    %773 = vmatprep.subr.mxu0 0.0
    %774 = vmatpush1.msra.mxu0 0.0
    %775 = vmatprep.subr.mxu0 0.0
    %776 = vmatpush1.msra.mxu0 0.0
    %777 = vmatprep.subr.mxu0 0.0
    %778 = vmatpush1.msra.mxu0 0.0
    %779 = vmatprep.subr.mxu0 0.0
    %780 = vmatpush1.msra.mxu0 0.0
    %781 = vmatprep.subr.mxu0 0.0
    %782 = vmatpush1.msra.mxu0 0.0
    %783 = vmatprep.subr.mxu0 0.0
    %784 = vmatpush1.msra.mxu0 0.0
    %785 = vmatprep.subr.mxu0 0.0
    %786 = vmatpush1.msra.mxu0 0.0
    %787 = vmatprep.subr.mxu0 0.0
    %788 = vmatpush1.msra.mxu0 0.0
    %789 = vmatprep.subr.mxu0 0.0
    %790 = vmatpush1.msra.mxu0 0.0
    %791 = vmatprep.subr.mxu0 0.0
    %792 = vmatpush1.msra.mxu0 0.0
    %793 = vmatprep.subr.mxu0 0.0
    %794 = vmatpush1.msra.mxu0 0.0
    %795 = vmatprep.subr.mxu0 0.0
    %796 = vmatpush1.msra.mxu0 0.0
    %797 = vmatprep.subr.mxu0 0.0
    %798 = vmatpush1.msra.mxu0 0.0
    %799 = vmatprep.subr.mxu0 0.0
    %800 = vmatpush1.msra.mxu0 0.0
    %801 = vmatprep.subr.mxu0 0.0
    %802 = vmatpush1.msra.mxu0 0.0
    %803 = vmatprep.subr.mxu0 0.0
    %804 = vmatpush1.msra.mxu0 0.0
    %805 = vmatprep.subr.mxu0 0.0
    %806 = vmatpush1.msra.mxu0 0.0
    %807 = vmatprep.subr.mxu0 0.0
    %808 = vmatpush1.msra.mxu0 0.0
    %809 = vmatprep.subr.mxu0 0.0
    %810 = vmatpush1.msra.mxu0 0.0
    %811 = vmatprep.mubr.f32.mxu0 0.0
    %812 = vmatmul.mubr.f32.gmra.mrb[0].mxu0 %v742
    %v813 = vpop.f32.mrb[0].mxu0
    %v814 = vadd.f32 0.0, %v813
    %v815 = vpop.f32.mrb[0].mxu0
    %816 = vmatprep.mubr.f32.mxu0 0.0
    %817 = vmatmul.mubr.f32.gmra.mrb[0].mxu0 %v745
    %v818 = vpop.f32.mrb[0].mxu0
    %v819 = vadd.f32 0.0, %v818
    %v820 = vpop.f32.mrb[0].mxu0
    %821 = vdwg.mxu0
    %v822 = vmul.f32 %v737, %v737
    %v823 = vmul.f32 %v738, %v738
    %v824 = vmul.f32 %v739, %v739
    %v825 = vmul.f32 %v740, %v740
    %826 = vmatprep.subr.mxu0 0.0
    %827 = vmatpush1.msra.mxu0 %v822
    %828 = vmatprep.subr.mxu0 0.0
    %829 = vmatpush1.msra.mxu0 %v823
    %830 = vmatprep.subr.mxu0 0.0
    %831 = vmatpush1.msra.mxu0 %v824
    %832 = vmatprep.subr.mxu0 0.0
    %833 = vmatpush1.msra.mxu0 %v825
    %834 = vmatprep.subr.mxu0 0.0
    %835 = vmatpush1.msra.mxu0 0.0
    %836 = vmatprep.subr.mxu0 0.0
    %837 = vmatpush1.msra.mxu0 0.0
    %838 = vmatprep.subr.mxu0 0.0
    %839 = vmatpush1.msra.mxu0 0.0
    %840 = vmatprep.subr.mxu0 0.0
    %841 = vmatpush1.msra.mxu0 0.0
    %842 = vmatprep.subr.mxu0 0.0
    %843 = vmatpush1.msra.mxu0 0.0
    %844 = vmatprep.subr.mxu0 0.0
    %845 = vmatpush1.msra.mxu0 0.0
    %846 = vmatprep.subr.mxu0 0.0
    %847 = vmatpush1.msra.mxu0 0.0
    %848 = vmatprep.subr.mxu0 0.0
    %849 = vmatpush1.msra.mxu0 0.0
    %850 = vmatprep.subr.mxu0 0.0
    %851 = vmatpush1.msra.mxu0 0.0
    %852 = vmatprep.subr.mxu0 0.0
    %853 = vmatpush1.msra.mxu0 0.0
    %854 = vmatprep.subr.mxu0 0.0
    %855 = vmatpush1.msra.mxu0 0.0
    %856 = vmatprep.subr.mxu0 0.0
    %857 = vmatpush1.msra.mxu0 0.0
    %858 = vmatprep.subr.mxu0 0.0
    %859 = vmatpush1.msra.mxu0 0.0
    %860 = vmatprep.subr.mxu0 0.0
    %861 = vmatpush1.msra.mxu0 0.0
    %862 = vmatprep.subr.mxu0 0.0
    %863 = vmatpush1.msra.mxu0 0.0
    %864 = vmatprep.subr.mxu0 0.0
    %865 = vmatpush1.msra.mxu0 0.0
    %866 = vmatprep.subr.mxu0 0.0
    %867 = vmatpush1.msra.mxu0 0.0
    %868 = vmatprep.subr.mxu0 0.0
    %869 = vmatpush1.msra.mxu0 0.0
    %870 = vmatprep.subr.mxu0 0.0
    %871 = vmatpush1.msra.mxu0 0.0
    %872 = vmatprep.subr.mxu0 0.0
    %873 = vmatpush1.msra.mxu0 0.0
    %874 = vmatprep.subr.mxu0 0.0
    %875 = vmatpush1.msra.mxu0 0.0
    %876 = vmatprep.subr.mxu0 0.0
    %877 = vmatpush1.msra.mxu0 0.0
    %878 = vmatprep.subr.mxu0 0.0
    %879 = vmatpush1.msra.mxu0 0.0
    %880 = vmatprep.subr.mxu0 0.0
    %881 = vmatpush1.msra.mxu0 0.0
    %882 = vmatprep.subr.mxu0 0.0
    %883 = vmatpush1.msra.mxu0 0.0
    %884 = vmatprep.subr.mxu0 0.0
    %885 = vmatpush1.msra.mxu0 0.0
    %886 = vmatprep.subr.mxu0 0.0
    %887 = vmatpush1.msra.mxu0 0.0
    %888 = vmatprep.subr.mxu0 0.0
    %889 = vmatpush1.msra.mxu0 0.0
    %890 = vmatprep.mubr.f32.mxu0 0.0
    %891 = vmatmul.mubr.f32.gmra.mrb[0].mxu0 %v742
    %v892 = vpop.f32.mrb[0].mxu0
    %v893 = vadd.f32 0.0, %v892
    %v894 = vpop.f32.mrb[0].mxu0
    %895 = vmatprep.mubr.f32.mxu0 0.0
    %896 = vmatmul.mubr.f32.gmra.mrb[0].mxu0 %v745
    %v897 = vpop.f32.mrb[0].mxu0
    %v898 = vadd.f32 0.0, %v897
    %v899 = vpop.f32.mrb[0].mxu0
    %900 = vdwg.mxu0
    %902 = vset.pattern.permute.xlu0 0
    %903 = vperm.xlu0 %902, %v79
    %v904 = vpop.permute.xlu0 %903
    %907 = vset.pattern.permute.xlu0 0
    %908 = vperm.xlu0 %907, %v80
    %v909 = vpop.permute.xlu0 %908
    %v911 = vmul.f32 %v814, %v904
    %v912 = vmul.f32 %v819, %v909
    %v913 = vmul.f32 %v893, %v904
    %v914 = vmul.f32 %v898, %v909
    %v915 = vmul.f32 %v911, %v911
    %v916 = vmul.f32 %v912, %v912
    %v917 = vsub.f32 %v913, %v915
    %v918 = vsub.f32 %v914, %v916
    %v919 = vmax.f32 %v917, 0.0
    %v920 = vmax.f32 %v918, 0.0
    %v921 = vadd.f32 %v919, 1e-05
    %v922 = vadd.f32 %v920, 1e-05
    %v923 = vrsqrt.pop %v921
    %v924 = vmul.f32 %v921, %v923
    %vm925 = vcmp.eq.f32.partialorder %v921, inf
    %v926 = vsel %vm925, %v921, %v924
    %vm927 = vcmp.eq.f32.partialorder %v921, 0.0
    %v928 = vand.u32 %v921, 2147483648
    %v929 = vsel %vm927, %v928, %v926
    %v930 = vrsqrt.pop %v922
    %v931 = vmul.f32 %v922, %v930
    %vm932 = vcmp.eq.f32.partialorder %v922, inf
    %v933 = vsel %vm932, %v922, %v931
    %vm934 = vcmp.eq.f32.partialorder %v922, 0.0
    %v935 = vand.u32 %v922, 2147483648
    %v936 = vsel %vm934, %v935, %v933
    %v941 = vcombine.high %v737, %v737
    %v943 = vunpack.c.l.s4 1966171168
    %v944 = vunpack.c.0.s8 %v943
    %v945 = vlaneseq
    %v946 = vshrl.u32 %v945, 7
    %v947 = vsub.s32 %v944, %v946
    %v948 = vrot.slane %v737, %v947
    %v950 = vunpack.c.l.s4 1966171168
    %v951 = vunpack.c.0.s8 %v950
    %v952 = vlaneseq
    %v953 = vshrl.u32 %v952, 7
    %v954 = vsub.s32 %v951, %v953
    %v955 = vrot.slane %v941, %v954
    %v956 = vcombine.high %v948, %v948
    %v957 = vcombine.high %v955, %v955
    %v959 = vunpack.c.l.s4 1966171168
    %v960 = vunpack.c.0.s8 %v959
    %v961 = vlaneseq
    %v962 = vshrl.u32 %v961, 7
    %v963 = vsub.s32 %v960, %v962
    %v964 = vrot.slane %v948, %v963
    %v966 = vunpack.c.l.s4 1966171168
    %v967 = vunpack.c.0.s8 %v966
    %v968 = vlaneseq
    %v969 = vshrl.u32 %v968, 7
    %v970 = vsub.s32 %v967, %v969
    %v971 = vrot.slane %v955, %v970
    %v973 = vunpack.c.l.s4 1966171168
    %v974 = vunpack.c.0.s8 %v973
    %v975 = vlaneseq
    %v976 = vshrl.u32 %v975, 7
    %v977 = vsub.s32 %v974, %v976
    %v978 = vrot.slane %v956, %v977
    %v980 = vunpack.c.l.s4 1966171168
    %v981 = vunpack.c.0.s8 %v980
    %v982 = vlaneseq
    %v983 = vshrl.u32 %v982, 7
    %v984 = vsub.s32 %v981, %v983
    %v985 = vrot.slane %v957, %v984
    %v986 = vcombine.high %v964, %v964
    %v987 = vcombine.high %v971, %v971
    %v988 = vcombine.high %v978, %v978
    %v989 = vcombine.high %v985, %v985
    %v990 = vcombine.high %v738, %v738
    %v992 = vunpack.c.l.s4 1966171168
    %v993 = vunpack.c.0.s8 %v992
    %v994 = vlaneseq
    %v995 = vshrl.u32 %v994, 7
    %v996 = vsub.s32 %v993, %v995
    %v997 = vrot.slane %v738, %v996
    %v999 = vunpack.c.l.s4 1966171168
    %v1000 = vunpack.c.0.s8 %v999
    %v1001 = vlaneseq
    %v1002 = vshrl.u32 %v1001, 7
    %v1003 = vsub.s32 %v1000, %v1002
    %v1004 = vrot.slane %v990, %v1003
    %v1005 = vcombine.high %v997, %v997
    %v1006 = vcombine.high %v1004, %v1004
    %v1008 = vunpack.c.l.s4 1966171168
    %v1009 = vunpack.c.0.s8 %v1008
    %v1010 = vlaneseq
    %v1011 = vshrl.u32 %v1010, 7
    %v1012 = vsub.s32 %v1009, %v1011
    %v1013 = vrot.slane %v997, %v1012
    %v1015 = vunpack.c.l.s4 1966171168
    %v1016 = vunpack.c.0.s8 %v1015
    %v1017 = vlaneseq
    %v1018 = vshrl.u32 %v1017, 7
    %v1019 = vsub.s32 %v1016, %v1018
    %v1020 = vrot.slane %v1004, %v1019
    %v1022 = vunpack.c.l.s4 1966171168
    %v1023 = vunpack.c.0.s8 %v1022
    %v1024 = vlaneseq
    %v1025 = vshrl.u32 %v1024, 7
    %v1026 = vsub.s32 %v1023, %v1025
    %v1027 = vrot.slane %v1005, %v1026
    %v1029 = vunpack.c.l.s4 1966171168
    %v1030 = vunpack.c.0.s8 %v1029
    %v1031 = vlaneseq
    %v1032 = vshrl.u32 %v1031, 7
    %v1033 = vsub.s32 %v1030, %v1032
    %v1034 = vrot.slane %v1006, %v1033
    %v1035 = vcombine.high %v1013, %v1013
    %v1036 = vcombine.high %v1020, %v1020
    %v1037 = vcombine.high %v1027, %v1027
    %v1038 = vcombine.high %v1034, %v1034
    %v1039 = vcombine.high %v739, %v739
    %v1041 = vunpack.c.l.s4 1966171168
    %v1042 = vunpack.c.0.s8 %v1041
    %v1043 = vlaneseq
    %v1044 = vshrl.u32 %v1043, 7
    %v1045 = vsub.s32 %v1042, %v1044
    %v1046 = vrot.slane %v739, %v1045
    %v1048 = vunpack.c.l.s4 1966171168
    %v1049 = vunpack.c.0.s8 %v1048
    %v1050 = vlaneseq
    %v1051 = vshrl.u32 %v1050, 7
    %v1052 = vsub.s32 %v1049, %v1051
    %v1053 = vrot.slane %v1039, %v1052
    %v1054 = vcombine.high %v1046, %v1046
    %v1055 = vcombine.high %v1053, %v1053
    %v1057 = vunpack.c.l.s4 1966171168
    %v1058 = vunpack.c.0.s8 %v1057
    %v1059 = vlaneseq
    %v1060 = vshrl.u32 %v1059, 7
    %v1061 = vsub.s32 %v1058, %v1060
    %v1062 = vrot.slane %v1046, %v1061
    %v1064 = vunpack.c.l.s4 1966171168
    %v1065 = vunpack.c.0.s8 %v1064
    %v1066 = vlaneseq
    %v1067 = vshrl.u32 %v1066, 7
    %v1068 = vsub.s32 %v1065, %v1067
    %v1069 = vrot.slane %v1053, %v1068
    %v1071 = vunpack.c.l.s4 1966171168
    %v1072 = vunpack.c.0.s8 %v1071
    %v1073 = vlaneseq
    %v1074 = vshrl.u32 %v1073, 7
    %v1075 = vsub.s32 %v1072, %v1074
    %v1076 = vrot.slane %v1054, %v1075
    %v1078 = vunpack.c.l.s4 1966171168
    %v1079 = vunpack.c.0.s8 %v1078
    %v1080 = vlaneseq
    %v1081 = vshrl.u32 %v1080, 7
    %v1082 = vsub.s32 %v1079, %v1081
    %v1083 = vrot.slane %v1055, %v1082
    %v1084 = vcombine.high %v1062, %v1062
    %v1085 = vcombine.high %v1069, %v1069
    %v1086 = vcombine.high %v1076, %v1076
    %v1087 = vcombine.high %v1083, %v1083
    %v1088 = vcombine.high %v740, %v740
    %v1090 = vunpack.c.l.s4 1966171168
    %v1091 = vunpack.c.0.s8 %v1090
    %v1092 = vlaneseq
    %v1093 = vshrl.u32 %v1092, 7
    %v1094 = vsub.s32 %v1091, %v1093
    %v1095 = vrot.slane %v740, %v1094
    %v1097 = vunpack.c.l.s4 1966171168
    %v1098 = vunpack.c.0.s8 %v1097
    %v1099 = vlaneseq
    %v1100 = vshrl.u32 %v1099, 7
    %v1101 = vsub.s32 %v1098, %v1100
    %v1102 = vrot.slane %v1088, %v1101
    %v1103 = vcombine.high %v1095, %v1095
    %v1104 = vcombine.high %v1102, %v1102
    %v1106 = vunpack.c.l.s4 1966171168
    %v1107 = vunpack.c.0.s8 %v1106
    %v1108 = vlaneseq
    %v1109 = vshrl.u32 %v1108, 7
    %v1110 = vsub.s32 %v1107, %v1109
    %v1111 = vrot.slane %v1095, %v1110
    %v1113 = vunpack.c.l.s4 1966171168
    %v1114 = vunpack.c.0.s8 %v1113
    %v1115 = vlaneseq
    %v1116 = vshrl.u32 %v1115, 7
    %v1117 = vsub.s32 %v1114, %v1116
    %v1118 = vrot.slane %v1102, %v1117
    %v1120 = vunpack.c.l.s4 1966171168
    %v1121 = vunpack.c.0.s8 %v1120
    %v1122 = vlaneseq
    %v1123 = vshrl.u32 %v1122, 7
    %v1124 = vsub.s32 %v1121, %v1123
    %v1125 = vrot.slane %v1103, %v1124
    %v1127 = vunpack.c.l.s4 1966171168
    %v1128 = vunpack.c.0.s8 %v1127
    %v1129 = vlaneseq
    %v1130 = vshrl.u32 %v1129, 7
    %v1131 = vsub.s32 %v1128, %v1130
    %v1132 = vrot.slane %v1104, %v1131
    %v1133 = vcombine.high %v1111, %v1111
    %v1134 = vcombine.high %v1118, %v1118
    %v1135 = vcombine.high %v1125, %v1125
    %v1136 = vcombine.high %v1132, %v1132
    %v1137 = vsel %vm375, 65537, 0
    %v1138 = vsel %vm376, 65537, 0
    %v1139 = vsel %vm377, 65537, 0
    %v1140 = vsel %vm378, 65537, 0
    %v1141 = vsel %vm379, 65537, 0
    %v1142 = vsel %vm380, 65537, 0
    %v1143 = vsel %vm381, 65537, 0
    %v1144 = vsel %vm382, 65537, 0
    %v1145 = vsel %vm383, 65537, 0
    %v1146 = vsel %vm384, 65537, 0
    %v1147 = vsel %vm385, 65537, 0
    %v1148 = vsel %vm386, 65537, 0
    %v1149 = vsel %vm387, 65537, 0
    %v1150 = vsel %vm388, 65537, 0
    %v1151 = vsel %vm389, 65537, 0
    %v1152 = vsel %vm390, 65537, 0
    %v1153 = vsel %vm391, 65537, 0
    %v1154 = vsel %vm392, 65537, 0
    %v1155 = vsel %vm393, 65537, 0
    %v1156 = vsel %vm394, 65537, 0
    %v1157 = vsel %vm395, 65537, 0
    %v1158 = vsel %vm396, 65537, 0
    %v1159 = vsel %vm397, 65537, 0
    %v1160 = vsel %vm398, 65537, 0
    %v1161 = vsel %vm399, 65537, 0
    %v1162 = vsel %vm400, 65537, 0
    %v1163 = vsel %vm401, 65537, 0
    %v1164 = vsel %vm402, 65537, 0
    %v1165 = vsel %vm403, 65537, 0
    %v1166 = vsel %vm404, 65537, 0
    %v1167 = vsel %vm405, 65537, 0
    %v1168 = vsel %vm406, 65537, 0
    %v1170 = vunpack.c.l.s4 839922192
    %v1171 = vunpack.c.0.s8 %v1170
    %v1172 = vlaneseq
    %v1173 = vshrl.u32 %v1172, 7
    %v1174 = vsub.s32 %v1171, %v1173
    %v1175 = vrot.slane %v1137, %v1174
    %v1177 = vunpack.c.l.s4 1985246804
    %v1178 = vunpack.c.0.s8 %v1177
    %v1179 = vlaneseq
    %v1180 = vshrl.u32 %v1179, 7
    %v1181 = vsub.s32 %v1178, %v1180
    %v1182 = vrot.slane %v1137, %v1181
    %v1184 = vunpack.c.l.s4 839922192
    %v1185 = vunpack.c.0.s8 %v1184
    %v1186 = vlaneseq
    %v1187 = vshrl.u32 %v1186, 7
    %v1188 = vsub.s32 %v1185, %v1187
    %v1189 = vrot.slane %v1138, %v1188
    %v1191 = vunpack.c.l.s4 1985246804
    %v1192 = vunpack.c.0.s8 %v1191
    %v1193 = vlaneseq
    %v1194 = vshrl.u32 %v1193, 7
    %v1195 = vsub.s32 %v1192, %v1194
    %v1196 = vrot.slane %v1138, %v1195
    %v1198 = vunpack.c.l.s4 839922192
    %v1199 = vunpack.c.0.s8 %v1198
    %v1200 = vlaneseq
    %v1201 = vshrl.u32 %v1200, 7
    %v1202 = vsub.s32 %v1199, %v1201
    %v1203 = vrot.slane %v1139, %v1202
    %v1205 = vunpack.c.l.s4 1985246804
    %v1206 = vunpack.c.0.s8 %v1205
    %v1207 = vlaneseq
    %v1208 = vshrl.u32 %v1207, 7
    %v1209 = vsub.s32 %v1206, %v1208
    %v1210 = vrot.slane %v1139, %v1209
    %v1212 = vunpack.c.l.s4 839922192
    %v1213 = vunpack.c.0.s8 %v1212
    %v1214 = vlaneseq
    %v1215 = vshrl.u32 %v1214, 7
    %v1216 = vsub.s32 %v1213, %v1215
    %v1217 = vrot.slane %v1140, %v1216
    %v1219 = vunpack.c.l.s4 1985246804
    %v1220 = vunpack.c.0.s8 %v1219
    %v1221 = vlaneseq
    %v1222 = vshrl.u32 %v1221, 7
    %v1223 = vsub.s32 %v1220, %v1222
    %v1224 = vrot.slane %v1140, %v1223
    %v1226 = vunpack.c.l.s4 839922192
    %v1227 = vunpack.c.0.s8 %v1226
    %v1228 = vlaneseq
    %v1229 = vshrl.u32 %v1228, 7
    %v1230 = vsub.s32 %v1227, %v1229
    %v1231 = vrot.slane %v1141, %v1230
    %v1233 = vunpack.c.l.s4 1985246804
    %v1234 = vunpack.c.0.s8 %v1233
    %v1235 = vlaneseq
    %v1236 = vshrl.u32 %v1235, 7
    %v1237 = vsub.s32 %v1234, %v1236
    %v1238 = vrot.slane %v1141, %v1237
    %v1240 = vunpack.c.l.s4 839922192
    %v1241 = vunpack.c.0.s8 %v1240
    %v1242 = vlaneseq
    %v1243 = vshrl.u32 %v1242, 7
    %v1244 = vsub.s32 %v1241, %v1243
    %v1245 = vrot.slane %v1142, %v1244
    %v1247 = vunpack.c.l.s4 1985246804
    %v1248 = vunpack.c.0.s8 %v1247
    %v1249 = vlaneseq
    %v1250 = vshrl.u32 %v1249, 7
    %v1251 = vsub.s32 %v1248, %v1250
    %v1252 = vrot.slane %v1142, %v1251
    %v1254 = vunpack.c.l.s4 839922192
    %v1255 = vunpack.c.0.s8 %v1254
    %v1256 = vlaneseq
    %v1257 = vshrl.u32 %v1256, 7
    %v1258 = vsub.s32 %v1255, %v1257
    %v1259 = vrot.slane %v1143, %v1258
    %v1261 = vunpack.c.l.s4 1985246804
    %v1262 = vunpack.c.0.s8 %v1261
    %v1263 = vlaneseq
    %v1264 = vshrl.u32 %v1263, 7
    %v1265 = vsub.s32 %v1262, %v1264
    %v1266 = vrot.slane %v1143, %v1265
    %v1268 = vunpack.c.l.s4 839922192
    %v1269 = vunpack.c.0.s8 %v1268
    %v1270 = vlaneseq
    %v1271 = vshrl.u32 %v1270, 7
    %v1272 = vsub.s32 %v1269, %v1271
    %v1273 = vrot.slane %v1144, %v1272
    %v1275 = vunpack.c.l.s4 1985246804
    %v1276 = vunpack.c.0.s8 %v1275
    %v1277 = vlaneseq
    %v1278 = vshrl.u32 %v1277, 7
    %v1279 = vsub.s32 %v1276, %v1278
    %v1280 = vrot.slane %v1144, %v1279
    %v1282 = vunpack.c.l.s4 839922192
    %v1283 = vunpack.c.0.s8 %v1282
    %v1284 = vlaneseq
    %v1285 = vshrl.u32 %v1284, 7
    %v1286 = vsub.s32 %v1283, %v1285
    %v1287 = vrot.slane %v1145, %v1286
    %v1289 = vunpack.c.l.s4 1985246804
    %v1290 = vunpack.c.0.s8 %v1289
    %v1291 = vlaneseq
    %v1292 = vshrl.u32 %v1291, 7
    %v1293 = vsub.s32 %v1290, %v1292
    %v1294 = vrot.slane %v1145, %v1293
    %v1296 = vunpack.c.l.s4 839922192
    %v1297 = vunpack.c.0.s8 %v1296
    %v1298 = vlaneseq
    %v1299 = vshrl.u32 %v1298, 7
    %v1300 = vsub.s32 %v1297, %v1299
    %v1301 = vrot.slane %v1146, %v1300
    %v1303 = vunpack.c.l.s4 1985246804
    %v1304 = vunpack.c.0.s8 %v1303
    %v1305 = vlaneseq
    %v1306 = vshrl.u32 %v1305, 7
    %v1307 = vsub.s32 %v1304, %v1306
    %v1308 = vrot.slane %v1146, %v1307
    %v1310 = vunpack.c.l.s4 839922192
    %v1311 = vunpack.c.0.s8 %v1310
    %v1312 = vlaneseq
    %v1313 = vshrl.u32 %v1312, 7
    %v1314 = vsub.s32 %v1311, %v1313
    %v1315 = vrot.slane %v1147, %v1314
    %v1317 = vunpack.c.l.s4 1985246804
    %v1318 = vunpack.c.0.s8 %v1317
    %v1319 = vlaneseq
    %v1320 = vshrl.u32 %v1319, 7
    %v1321 = vsub.s32 %v1318, %v1320
    %v1322 = vrot.slane %v1147, %v1321
    %v1324 = vunpack.c.l.s4 839922192
    %v1325 = vunpack.c.0.s8 %v1324
    %v1326 = vlaneseq
    %v1327 = vshrl.u32 %v1326, 7
    %v1328 = vsub.s32 %v1325, %v1327
    %v1329 = vrot.slane %v1148, %v1328
    %v1331 = vunpack.c.l.s4 1985246804
    %v1332 = vunpack.c.0.s8 %v1331
    %v1333 = vlaneseq
    %v1334 = vshrl.u32 %v1333, 7
    %v1335 = vsub.s32 %v1332, %v1334
    %v1336 = vrot.slane %v1148, %v1335
    %v1338 = vunpack.c.l.s4 839922192
    %v1339 = vunpack.c.0.s8 %v1338
    %v1340 = vlaneseq
    %v1341 = vshrl.u32 %v1340, 7
    %v1342 = vsub.s32 %v1339, %v1341
    %v1343 = vrot.slane %v1149, %v1342
    %v1345 = vunpack.c.l.s4 1985246804
    %v1346 = vunpack.c.0.s8 %v1345
    %v1347 = vlaneseq
    %v1348 = vshrl.u32 %v1347, 7
    %v1349 = vsub.s32 %v1346, %v1348
    %v1350 = vrot.slane %v1149, %v1349
    %v1352 = vunpack.c.l.s4 839922192
    %v1353 = vunpack.c.0.s8 %v1352
    %v1354 = vlaneseq
    %v1355 = vshrl.u32 %v1354, 7
    %v1356 = vsub.s32 %v1353, %v1355
    %v1357 = vrot.slane %v1150, %v1356
    %v1359 = vunpack.c.l.s4 1985246804
    %v1360 = vunpack.c.0.s8 %v1359
    %v1361 = vlaneseq
    %v1362 = vshrl.u32 %v1361, 7
    %v1363 = vsub.s32 %v1360, %v1362
    %v1364 = vrot.slane %v1150, %v1363
    %v1366 = vunpack.c.l.s4 839922192
    %v1367 = vunpack.c.0.s8 %v1366
    %v1368 = vlaneseq
    %v1369 = vshrl.u32 %v1368, 7
    %v1370 = vsub.s32 %v1367, %v1369
    %v1371 = vrot.slane %v1151, %v1370
    %v1373 = vunpack.c.l.s4 1985246804
    %v1374 = vunpack.c.0.s8 %v1373
    %v1375 = vlaneseq
    %v1376 = vshrl.u32 %v1375, 7
    %v1377 = vsub.s32 %v1374, %v1376
    %v1378 = vrot.slane %v1151, %v1377
    %v1380 = vunpack.c.l.s4 839922192
    %v1381 = vunpack.c.0.s8 %v1380
    %v1382 = vlaneseq
    %v1383 = vshrl.u32 %v1382, 7
    %v1384 = vsub.s32 %v1381, %v1383
    %v1385 = vrot.slane %v1152, %v1384
    %v1387 = vunpack.c.l.s4 1985246804
    %v1388 = vunpack.c.0.s8 %v1387
    %v1389 = vlaneseq
    %v1390 = vshrl.u32 %v1389, 7
    %v1391 = vsub.s32 %v1388, %v1390
    %v1392 = vrot.slane %v1152, %v1391
    %v1394 = vunpack.c.l.s4 839922192
    %v1395 = vunpack.c.0.s8 %v1394
    %v1396 = vlaneseq
    %v1397 = vshrl.u32 %v1396, 7
    %v1398 = vsub.s32 %v1395, %v1397
    %v1399 = vrot.slane %v1153, %v1398
    %v1401 = vunpack.c.l.s4 1985246804
    %v1402 = vunpack.c.0.s8 %v1401
    %v1403 = vlaneseq
    %v1404 = vshrl.u32 %v1403, 7
    %v1405 = vsub.s32 %v1402, %v1404
    %v1406 = vrot.slane %v1153, %v1405
    %v1408 = vunpack.c.l.s4 839922192
    %v1409 = vunpack.c.0.s8 %v1408
    %v1410 = vlaneseq
    %v1411 = vshrl.u32 %v1410, 7
    %v1412 = vsub.s32 %v1409, %v1411
    %v1413 = vrot.slane %v1154, %v1412
    %v1415 = vunpack.c.l.s4 1985246804
    %v1416 = vunpack.c.0.s8 %v1415
    %v1417 = vlaneseq
    %v1418 = vshrl.u32 %v1417, 7
    %v1419 = vsub.s32 %v1416, %v1418
    %v1420 = vrot.slane %v1154, %v1419
    %v1422 = vunpack.c.l.s4 839922192
    %v1423 = vunpack.c.0.s8 %v1422
    %v1424 = vlaneseq
    %v1425 = vshrl.u32 %v1424, 7
    %v1426 = vsub.s32 %v1423, %v1425
    %v1427 = vrot.slane %v1155, %v1426
    %v1429 = vunpack.c.l.s4 1985246804
    %v1430 = vunpack.c.0.s8 %v1429
    %v1431 = vlaneseq
    %v1432 = vshrl.u32 %v1431, 7
    %v1433 = vsub.s32 %v1430, %v1432
    %v1434 = vrot.slane %v1155, %v1433
    %v1436 = vunpack.c.l.s4 839922192
    %v1437 = vunpack.c.0.s8 %v1436
    %v1438 = vlaneseq
    %v1439 = vshrl.u32 %v1438, 7
    %v1440 = vsub.s32 %v1437, %v1439
    %v1441 = vrot.slane %v1156, %v1440
    %v1443 = vunpack.c.l.s4 1985246804
    %v1444 = vunpack.c.0.s8 %v1443
    %v1445 = vlaneseq
    %v1446 = vshrl.u32 %v1445, 7
    %v1447 = vsub.s32 %v1444, %v1446
    %v1448 = vrot.slane %v1156, %v1447
    %v1450 = vunpack.c.l.s4 839922192
    %v1451 = vunpack.c.0.s8 %v1450
    %v1452 = vlaneseq
    %v1453 = vshrl.u32 %v1452, 7
    %v1454 = vsub.s32 %v1451, %v1453
    %v1455 = vrot.slane %v1157, %v1454
    %v1457 = vunpack.c.l.s4 1985246804
    %v1458 = vunpack.c.0.s8 %v1457
    %v1459 = vlaneseq
    %v1460 = vshrl.u32 %v1459, 7
    %v1461 = vsub.s32 %v1458, %v1460
    %v1462 = vrot.slane %v1157, %v1461
    %v1464 = vunpack.c.l.s4 839922192
    %v1465 = vunpack.c.0.s8 %v1464
    %v1466 = vlaneseq
    %v1467 = vshrl.u32 %v1466, 7
    %v1468 = vsub.s32 %v1465, %v1467
    %v1469 = vrot.slane %v1158, %v1468
    %v1471 = vunpack.c.l.s4 1985246804
    %v1472 = vunpack.c.0.s8 %v1471
    %v1473 = vlaneseq
    %v1474 = vshrl.u32 %v1473, 7
    %v1475 = vsub.s32 %v1472, %v1474
    %v1476 = vrot.slane %v1158, %v1475
    %v1478 = vunpack.c.l.s4 839922192
    %v1479 = vunpack.c.0.s8 %v1478
    %v1480 = vlaneseq
    %v1481 = vshrl.u32 %v1480, 7
    %v1482 = vsub.s32 %v1479, %v1481
    %v1483 = vrot.slane %v1159, %v1482
    %v1485 = vunpack.c.l.s4 1985246804
    %v1486 = vunpack.c.0.s8 %v1485
    %v1487 = vlaneseq
    %v1488 = vshrl.u32 %v1487, 7
    %v1489 = vsub.s32 %v1486, %v1488
    %v1490 = vrot.slane %v1159, %v1489
    %v1492 = vunpack.c.l.s4 839922192
    %v1493 = vunpack.c.0.s8 %v1492
    %v1494 = vlaneseq
    %v1495 = vshrl.u32 %v1494, 7
    %v1496 = vsub.s32 %v1493, %v1495
    %v1497 = vrot.slane %v1160, %v1496
    %v1499 = vunpack.c.l.s4 1985246804
    %v1500 = vunpack.c.0.s8 %v1499
    %v1501 = vlaneseq
    %v1502 = vshrl.u32 %v1501, 7
    %v1503 = vsub.s32 %v1500, %v1502
    %v1504 = vrot.slane %v1160, %v1503
    %v1506 = vunpack.c.l.s4 839922192
    %v1507 = vunpack.c.0.s8 %v1506
    %v1508 = vlaneseq
    %v1509 = vshrl.u32 %v1508, 7
    %v1510 = vsub.s32 %v1507, %v1509
    %v1511 = vrot.slane %v1161, %v1510
    %v1513 = vunpack.c.l.s4 1985246804
    %v1514 = vunpack.c.0.s8 %v1513
    %v1515 = vlaneseq
    %v1516 = vshrl.u32 %v1515, 7
    %v1517 = vsub.s32 %v1514, %v1516
    %v1518 = vrot.slane %v1161, %v1517
    %v1520 = vunpack.c.l.s4 839922192
    %v1521 = vunpack.c.0.s8 %v1520
    %v1522 = vlaneseq
    %v1523 = vshrl.u32 %v1522, 7
    %v1524 = vsub.s32 %v1521, %v1523
    %v1525 = vrot.slane %v1162, %v1524
    %v1527 = vunpack.c.l.s4 1985246804
    %v1528 = vunpack.c.0.s8 %v1527
    %v1529 = vlaneseq
    %v1530 = vshrl.u32 %v1529, 7
    %v1531 = vsub.s32 %v1528, %v1530
    %v1532 = vrot.slane %v1162, %v1531
    %v1534 = vunpack.c.l.s4 839922192
    %v1535 = vunpack.c.0.s8 %v1534
    %v1536 = vlaneseq
    %v1537 = vshrl.u32 %v1536, 7
    %v1538 = vsub.s32 %v1535, %v1537
    %v1539 = vrot.slane %v1163, %v1538
    %v1541 = vunpack.c.l.s4 1985246804
    %v1542 = vunpack.c.0.s8 %v1541
    %v1543 = vlaneseq
    %v1544 = vshrl.u32 %v1543, 7
    %v1545 = vsub.s32 %v1542, %v1544
    %v1546 = vrot.slane %v1163, %v1545
    %v1548 = vunpack.c.l.s4 839922192
    %v1549 = vunpack.c.0.s8 %v1548
    %v1550 = vlaneseq
    %v1551 = vshrl.u32 %v1550, 7
    %v1552 = vsub.s32 %v1549, %v1551
    %v1553 = vrot.slane %v1164, %v1552
    %v1555 = vunpack.c.l.s4 1985246804
    %v1556 = vunpack.c.0.s8 %v1555
    %v1557 = vlaneseq
    %v1558 = vshrl.u32 %v1557, 7
    %v1559 = vsub.s32 %v1556, %v1558
    %v1560 = vrot.slane %v1164, %v1559
    %v1562 = vunpack.c.l.s4 839922192
    %v1563 = vunpack.c.0.s8 %v1562
    %v1564 = vlaneseq
    %v1565 = vshrl.u32 %v1564, 7
    %v1566 = vsub.s32 %v1563, %v1565
    %v1567 = vrot.slane %v1165, %v1566
    %v1569 = vunpack.c.l.s4 1985246804
    %v1570 = vunpack.c.0.s8 %v1569
    %v1571 = vlaneseq
    %v1572 = vshrl.u32 %v1571, 7
    %v1573 = vsub.s32 %v1570, %v1572
    %v1574 = vrot.slane %v1165, %v1573
    %v1576 = vunpack.c.l.s4 839922192
    %v1577 = vunpack.c.0.s8 %v1576
    %v1578 = vlaneseq
    %v1579 = vshrl.u32 %v1578, 7
    %v1580 = vsub.s32 %v1577, %v1579
    %v1581 = vrot.slane %v1166, %v1580
    %v1583 = vunpack.c.l.s4 1985246804
    %v1584 = vunpack.c.0.s8 %v1583
    %v1585 = vlaneseq
    %v1586 = vshrl.u32 %v1585, 7
    %v1587 = vsub.s32 %v1584, %v1586
    %v1588 = vrot.slane %v1166, %v1587
    %v1590 = vunpack.c.l.s4 839922192
    %v1591 = vunpack.c.0.s8 %v1590
    %v1592 = vlaneseq
    %v1593 = vshrl.u32 %v1592, 7
    %v1594 = vsub.s32 %v1591, %v1593
    %v1595 = vrot.slane %v1167, %v1594
    %v1597 = vunpack.c.l.s4 1985246804
    %v1598 = vunpack.c.0.s8 %v1597
    %v1599 = vlaneseq
    %v1600 = vshrl.u32 %v1599, 7
    %v1601 = vsub.s32 %v1598, %v1600
    %v1602 = vrot.slane %v1167, %v1601
    %v1604 = vunpack.c.l.s4 839922192
    %v1605 = vunpack.c.0.s8 %v1604
    %v1606 = vlaneseq
    %v1607 = vshrl.u32 %v1606, 7
    %v1608 = vsub.s32 %v1605, %v1607
    %v1609 = vrot.slane %v1168, %v1608
    %v1611 = vunpack.c.l.s4 1985246804
    %v1612 = vunpack.c.0.s8 %v1611
    %v1613 = vlaneseq
    %v1614 = vshrl.u32 %v1613, 7
    %v1615 = vsub.s32 %v1612, %v1614
    %v1616 = vrot.slane %v1168, %v1615
    %vm1617 = vcmp.ne.s16.totalorder %v1175, 0
    %vm1618 = vcmp.ne.s16.totalorder %v1182, 0
    %vm1619 = vcmp.ne.s16.totalorder %v1189, 0
    %vm1620 = vcmp.ne.s16.totalorder %v1196, 0
    %vm1621 = vcmp.ne.s16.totalorder %v1203, 0
    %vm1622 = vcmp.ne.s16.totalorder %v1210, 0
    %vm1623 = vcmp.ne.s16.totalorder %v1217, 0
    %vm1624 = vcmp.ne.s16.totalorder %v1224, 0
    %vm1625 = vcmp.ne.s16.totalorder %v1231, 0
    %vm1626 = vcmp.ne.s16.totalorder %v1238, 0
    %vm1627 = vcmp.ne.s16.totalorder %v1245, 0
    %vm1628 = vcmp.ne.s16.totalorder %v1252, 0
    %vm1629 = vcmp.ne.s16.totalorder %v1259, 0
    %vm1630 = vcmp.ne.s16.totalorder %v1266, 0
    %vm1631 = vcmp.ne.s16.totalorder %v1273, 0
    %vm1632 = vcmp.ne.s16.totalorder %v1280, 0
    %vm1633 = vcmp.ne.s16.totalorder %v1287, 0
    %vm1634 = vcmp.ne.s16.totalorder %v1294, 0
    %vm1635 = vcmp.ne.s16.totalorder %v1301, 0
    %vm1636 = vcmp.ne.s16.totalorder %v1308, 0
    %vm1637 = vcmp.ne.s16.totalorder %v1315, 0
    %vm1638 = vcmp.ne.s16.totalorder %v1322, 0
    %vm1639 = vcmp.ne.s16.totalorder %v1329, 0
    %vm1640 = vcmp.ne.s16.totalorder %v1336, 0
    %vm1641 = vcmp.ne.s16.totalorder %v1343, 0
    %vm1642 = vcmp.ne.s16.totalorder %v1350, 0
    %vm1643 = vcmp.ne.s16.totalorder %v1357, 0
    %vm1644 = vcmp.ne.s16.totalorder %v1364, 0
    %vm1645 = vcmp.ne.s16.totalorder %v1371, 0
    %vm1646 = vcmp.ne.s16.totalorder %v1378, 0
    %vm1647 = vcmp.ne.s16.totalorder %v1385, 0
    %vm1648 = vcmp.ne.s16.totalorder %v1392, 0
    %vm1649 = vcmp.ne.s16.totalorder %v1399, 0
    %vm1650 = vcmp.ne.s16.totalorder %v1406, 0
    %vm1651 = vcmp.ne.s16.totalorder %v1413, 0
    %vm1652 = vcmp.ne.s16.totalorder %v1420, 0
    %vm1653 = vcmp.ne.s16.totalorder %v1427, 0
    %vm1654 = vcmp.ne.s16.totalorder %v1434, 0
    %vm1655 = vcmp.ne.s16.totalorder %v1441, 0
    %vm1656 = vcmp.ne.s16.totalorder %v1448, 0
    %vm1657 = vcmp.ne.s16.totalorder %v1455, 0
    %vm1658 = vcmp.ne.s16.totalorder %v1462, 0
    %vm1659 = vcmp.ne.s16.totalorder %v1469, 0
    %vm1660 = vcmp.ne.s16.totalorder %v1476, 0
    %vm1661 = vcmp.ne.s16.totalorder %v1483, 0
    %vm1662 = vcmp.ne.s16.totalorder %v1490, 0
    %vm1663 = vcmp.ne.s16.totalorder %v1497, 0
    %vm1664 = vcmp.ne.s16.totalorder %v1504, 0
    %vm1665 = vcmp.ne.s16.totalorder %v1511, 0
    %vm1666 = vcmp.ne.s16.totalorder %v1518, 0
    %vm1667 = vcmp.ne.s16.totalorder %v1525, 0
    %vm1668 = vcmp.ne.s16.totalorder %v1532, 0
    %vm1669 = vcmp.ne.s16.totalorder %v1539, 0
    %vm1670 = vcmp.ne.s16.totalorder %v1546, 0
    %vm1671 = vcmp.ne.s16.totalorder %v1553, 0
    %vm1672 = vcmp.ne.s16.totalorder %v1560, 0
    %vm1673 = vcmp.ne.s16.totalorder %v1567, 0
    %vm1674 = vcmp.ne.s16.totalorder %v1574, 0
    %vm1675 = vcmp.ne.s16.totalorder %v1581, 0
    %vm1676 = vcmp.ne.s16.totalorder %v1588, 0
    %vm1677 = vcmp.ne.s16.totalorder %v1595, 0
    %vm1678 = vcmp.ne.s16.totalorder %v1602, 0
    %vm1679 = vcmp.ne.s16.totalorder %v1609, 0
    %vm1680 = vcmp.ne.s16.totalorder %v1616, 0
    %v1681 = vsel %vm1617, 65537, 0
    %v1682 = vsel %vm1618, 65537, 0
    %v1683 = vsel %vm1619, 65537, 0
    %v1684 = vsel %vm1620, 65537, 0
    %v1685 = vsel %vm1621, 65537, 0
    %v1686 = vsel %vm1622, 65537, 0
    %v1687 = vsel %vm1623, 65537, 0
    %v1688 = vsel %vm1624, 65537, 0
    %v1689 = vsel %vm1625, 65537, 0
    %v1690 = vsel %vm1626, 65537, 0
    %v1691 = vsel %vm1627, 65537, 0
    %v1692 = vsel %vm1628, 65537, 0
    %v1693 = vsel %vm1629, 65537, 0
    %v1694 = vsel %vm1630, 65537, 0
    %v1695 = vsel %vm1631, 65537, 0
    %v1696 = vsel %vm1632, 65537, 0
    %v1697 = vsel %vm1633, 65537, 0
    %v1698 = vsel %vm1634, 65537, 0
    %v1699 = vsel %vm1635, 65537, 0
    %v1700 = vsel %vm1636, 65537, 0
    %v1701 = vsel %vm1637, 65537, 0
    %v1702 = vsel %vm1638, 65537, 0
    %v1703 = vsel %vm1639, 65537, 0
    %v1704 = vsel %vm1640, 65537, 0
    %v1705 = vsel %vm1641, 65537, 0
    %v1706 = vsel %vm1642, 65537, 0
    %v1707 = vsel %vm1643, 65537, 0
    %v1708 = vsel %vm1644, 65537, 0
    %v1709 = vsel %vm1645, 65537, 0
    %v1710 = vsel %vm1646, 65537, 0
    %v1711 = vsel %vm1647, 65537, 0
    %v1712 = vsel %vm1648, 65537, 0
    %v1713 = vsel %vm1649, 65537, 0
    %v1714 = vsel %vm1650, 65537, 0
    %v1715 = vsel %vm1651, 65537, 0
    %v1716 = vsel %vm1652, 65537, 0
    %v1717 = vsel %vm1653, 65537, 0
    %v1718 = vsel %vm1654, 65537, 0
    %v1719 = vsel %vm1655, 65537, 0
    %v1720 = vsel %vm1656, 65537, 0
    %v1721 = vsel %vm1657, 65537, 0
    %v1722 = vsel %vm1658, 65537, 0
    %v1723 = vsel %vm1659, 65537, 0
    %v1724 = vsel %vm1660, 65537, 0
    %v1725 = vsel %vm1661, 65537, 0
    %v1726 = vsel %vm1662, 65537, 0
    %v1727 = vsel %vm1663, 65537, 0
    %v1728 = vsel %vm1664, 65537, 0
    %v1729 = vsel %vm1665, 65537, 0
    %v1730 = vsel %vm1666, 65537, 0
    %v1731 = vsel %vm1667, 65537, 0
    %v1732 = vsel %vm1668, 65537, 0
    %v1733 = vsel %vm1669, 65537, 0
    %v1734 = vsel %vm1670, 65537, 0
    %v1735 = vsel %vm1671, 65537, 0
    %v1736 = vsel %vm1672, 65537, 0
    %v1737 = vsel %vm1673, 65537, 0
    %v1738 = vsel %vm1674, 65537, 0
    %v1739 = vsel %vm1675, 65537, 0
    %v1740 = vsel %vm1676, 65537, 0
    %v1741 = vsel %vm1677, 65537, 0
    %v1742 = vsel %vm1678, 65537, 0
    %v1743 = vsel %vm1679, 65537, 0
    %v1744 = vsel %vm1680, 65537, 0
    %v1745 = vunpack.c.l.b16 %v1681
    %v1746 = vunpack.c.l.b16 %v1682
    %v1747 = vunpack.c.l.b16 %v1683
    %v1748 = vunpack.c.l.b16 %v1684
    %v1749 = vunpack.c.l.b16 %v1685
    %v1750 = vunpack.c.l.b16 %v1686
    %v1751 = vunpack.c.l.b16 %v1687
    %v1752 = vunpack.c.l.b16 %v1688
    %v1753 = vunpack.c.l.b16 %v1689
    %v1754 = vunpack.c.l.b16 %v1690
    %v1755 = vunpack.c.l.b16 %v1691
    %v1756 = vunpack.c.l.b16 %v1692
    %v1757 = vunpack.c.l.b16 %v1693
    %v1758 = vunpack.c.l.b16 %v1694
    %v1759 = vunpack.c.l.b16 %v1695
    %v1760 = vunpack.c.l.b16 %v1696
    %v1761 = vunpack.c.l.b16 %v1697
    %v1762 = vunpack.c.l.b16 %v1698
    %v1763 = vunpack.c.l.b16 %v1699
    %v1764 = vunpack.c.l.b16 %v1700
    %v1765 = vunpack.c.l.b16 %v1701
    %v1766 = vunpack.c.l.b16 %v1702
    %v1767 = vunpack.c.l.b16 %v1703
    %v1768 = vunpack.c.l.b16 %v1704
    %v1769 = vunpack.c.l.b16 %v1705
    %v1770 = vunpack.c.l.b16 %v1706
    %v1771 = vunpack.c.l.b16 %v1707
    %v1772 = vunpack.c.l.b16 %v1708
    %v1773 = vunpack.c.l.b16 %v1709
    %v1774 = vunpack.c.l.b16 %v1710
    %v1775 = vunpack.c.l.b16 %v1711
    %v1776 = vunpack.c.l.b16 %v1712
    %v1777 = vunpack.c.l.b16 %v1713
    %v1778 = vunpack.c.l.b16 %v1714
    %v1779 = vunpack.c.l.b16 %v1715
    %v1780 = vunpack.c.l.b16 %v1716
    %v1781 = vunpack.c.l.b16 %v1717
    %v1782 = vunpack.c.l.b16 %v1718
    %v1783 = vunpack.c.l.b16 %v1719
    %v1784 = vunpack.c.l.b16 %v1720
    %v1785 = vunpack.c.l.b16 %v1721
    %v1786 = vunpack.c.l.b16 %v1722
    %v1787 = vunpack.c.l.b16 %v1723
    %v1788 = vunpack.c.l.b16 %v1724
    %v1789 = vunpack.c.l.b16 %v1725
    %v1790 = vunpack.c.l.b16 %v1726
    %v1791 = vunpack.c.l.b16 %v1727
    %v1792 = vunpack.c.l.b16 %v1728
    %v1793 = vunpack.c.l.b16 %v1729
    %v1794 = vunpack.c.l.b16 %v1730
    %v1795 = vunpack.c.l.b16 %v1731
    %v1796 = vunpack.c.l.b16 %v1732
    %v1797 = vunpack.c.l.b16 %v1733
    %v1798 = vunpack.c.l.b16 %v1734
    %v1799 = vunpack.c.l.b16 %v1735
    %v1800 = vunpack.c.l.b16 %v1736
    %v1801 = vunpack.c.l.b16 %v1737
    %v1802 = vunpack.c.l.b16 %v1738
    %v1803 = vunpack.c.l.b16 %v1739
    %v1804 = vunpack.c.l.b16 %v1740
    %v1805 = vunpack.c.l.b16 %v1741
    %v1806 = vunpack.c.l.b16 %v1742
    %v1807 = vunpack.c.l.b16 %v1743
    %v1808 = vunpack.c.l.b16 %v1744
    %vm1809 = vcmp.ne.s32.totalorder %v1745, 0
    %vm1810 = vcmp.ne.s32.totalorder %v1746, 0
    %vm1811 = vcmp.ne.s32.totalorder %v1747, 0
    %vm1812 = vcmp.ne.s32.totalorder %v1748, 0
    %vm1813 = vcmp.ne.s32.totalorder %v1749, 0
    %vm1814 = vcmp.ne.s32.totalorder %v1750, 0
    %vm1815 = vcmp.ne.s32.totalorder %v1751, 0
    %vm1816 = vcmp.ne.s32.totalorder %v1752, 0
    %vm1817 = vcmp.ne.s32.totalorder %v1753, 0
    %vm1818 = vcmp.ne.s32.totalorder %v1754, 0
    %vm1819 = vcmp.ne.s32.totalorder %v1755, 0
    %vm1820 = vcmp.ne.s32.totalorder %v1756, 0
    %vm1821 = vcmp.ne.s32.totalorder %v1757, 0
    %vm1822 = vcmp.ne.s32.totalorder %v1758, 0
    %vm1823 = vcmp.ne.s32.totalorder %v1759, 0
    %vm1824 = vcmp.ne.s32.totalorder %v1760, 0
    %vm1825 = vcmp.ne.s32.totalorder %v1761, 0
    %vm1826 = vcmp.ne.s32.totalorder %v1762, 0
    %vm1827 = vcmp.ne.s32.totalorder %v1763, 0
    %vm1828 = vcmp.ne.s32.totalorder %v1764, 0
    %vm1829 = vcmp.ne.s32.totalorder %v1765, 0
    %vm1830 = vcmp.ne.s32.totalorder %v1766, 0
    %vm1831 = vcmp.ne.s32.totalorder %v1767, 0
    %vm1832 = vcmp.ne.s32.totalorder %v1768, 0
    %vm1833 = vcmp.ne.s32.totalorder %v1769, 0
    %vm1834 = vcmp.ne.s32.totalorder %v1770, 0
    %vm1835 = vcmp.ne.s32.totalorder %v1771, 0
    %vm1836 = vcmp.ne.s32.totalorder %v1772, 0
    %vm1837 = vcmp.ne.s32.totalorder %v1773, 0
    %vm1838 = vcmp.ne.s32.totalorder %v1774, 0
    %vm1839 = vcmp.ne.s32.totalorder %v1775, 0
    %vm1840 = vcmp.ne.s32.totalorder %v1776, 0
    %vm1841 = vcmp.ne.s32.totalorder %v1777, 0
    %vm1842 = vcmp.ne.s32.totalorder %v1778, 0
    %vm1843 = vcmp.ne.s32.totalorder %v1779, 0
    %vm1844 = vcmp.ne.s32.totalorder %v1780, 0
    %vm1845 = vcmp.ne.s32.totalorder %v1781, 0
    %vm1846 = vcmp.ne.s32.totalorder %v1782, 0
    %vm1847 = vcmp.ne.s32.totalorder %v1783, 0
    %vm1848 = vcmp.ne.s32.totalorder %v1784, 0
    %vm1849 = vcmp.ne.s32.totalorder %v1785, 0
    %vm1850 = vcmp.ne.s32.totalorder %v1786, 0
    %vm1851 = vcmp.ne.s32.totalorder %v1787, 0
    %vm1852 = vcmp.ne.s32.totalorder %v1788, 0
    %vm1853 = vcmp.ne.s32.totalorder %v1789, 0
    %vm1854 = vcmp.ne.s32.totalorder %v1790, 0
    %vm1855 = vcmp.ne.s32.totalorder %v1791, 0
    %vm1856 = vcmp.ne.s32.totalorder %v1792, 0
    %vm1857 = vcmp.ne.s32.totalorder %v1793, 0
    %vm1858 = vcmp.ne.s32.totalorder %v1794, 0
    %vm1859 = vcmp.ne.s32.totalorder %v1795, 0
    %vm1860 = vcmp.ne.s32.totalorder %v1796, 0
    %vm1861 = vcmp.ne.s32.totalorder %v1797, 0
    %vm1862 = vcmp.ne.s32.totalorder %v1798, 0
    %vm1863 = vcmp.ne.s32.totalorder %v1799, 0
    %vm1864 = vcmp.ne.s32.totalorder %v1800, 0
    %vm1865 = vcmp.ne.s32.totalorder %v1801, 0
    %vm1866 = vcmp.ne.s32.totalorder %v1802, 0
    %vm1867 = vcmp.ne.s32.totalorder %v1803, 0
    %vm1868 = vcmp.ne.s32.totalorder %v1804, 0
    %vm1869 = vcmp.ne.s32.totalorder %v1805, 0
    %vm1870 = vcmp.ne.s32.totalorder %v1806, 0
    %vm1871 = vcmp.ne.s32.totalorder %v1807, 0
    %vm1872 = vcmp.ne.s32.totalorder %v1808, 0
    %v1873 = vsel %vm1809, 1, 0
    %v1874 = vsel %vm1810, 1, 0
    %v1875 = vsel %vm1811, 1, 0
    %v1876 = vsel %vm1812, 1, 0
    %v1877 = vsel %vm1813, 1, 0
    %v1878 = vsel %vm1814, 1, 0
    %v1879 = vsel %vm1815, 1, 0
    %v1880 = vsel %vm1816, 1, 0
    %v1881 = vsel %vm1817, 1, 0
    %v1882 = vsel %vm1818, 1, 0
    %v1883 = vsel %vm1819, 1, 0
    %v1884 = vsel %vm1820, 1, 0
    %v1885 = vsel %vm1821, 1, 0
    %v1886 = vsel %vm1822, 1, 0
    %v1887 = vsel %vm1823, 1, 0
    %v1888 = vsel %vm1824, 1, 0
    %v1889 = vsel %vm1825, 1, 0
    %v1890 = vsel %vm1826, 1, 0
    %v1891 = vsel %vm1827, 1, 0
    %v1892 = vsel %vm1828, 1, 0
    %v1893 = vsel %vm1829, 1, 0
    %v1894 = vsel %vm1830, 1, 0
    %v1895 = vsel %vm1831, 1, 0
    %v1896 = vsel %vm1832, 1, 0
    %v1897 = vsel %vm1833, 1, 0
    %v1898 = vsel %vm1834, 1, 0
    %v1899 = vsel %vm1835, 1, 0
    %v1900 = vsel %vm1836, 1, 0
    %v1901 = vsel %vm1837, 1, 0
    %v1902 = vsel %vm1838, 1, 0
    %v1903 = vsel %vm1839, 1, 0
    %v1904 = vsel %vm1840, 1, 0
    %v1905 = vsel %vm1841, 1, 0
    %v1906 = vsel %vm1842, 1, 0
    %v1907 = vsel %vm1843, 1, 0
    %v1908 = vsel %vm1844, 1, 0
    %v1909 = vsel %vm1845, 1, 0
    %v1910 = vsel %vm1846, 1, 0
    %v1911 = vsel %vm1847, 1, 0
    %v1912 = vsel %vm1848, 1, 0
    %v1913 = vsel %vm1849, 1, 0
    %v1914 = vsel %vm1850, 1, 0
    %v1915 = vsel %vm1851, 1, 0
    %v1916 = vsel %vm1852, 1, 0
    %v1917 = vsel %vm1853, 1, 0
    %v1918 = vsel %vm1854, 1, 0
    %v1919 = vsel %vm1855, 1, 0
    %v1920 = vsel %vm1856, 1, 0
    %v1921 = vsel %vm1857, 1, 0
    %v1922 = vsel %vm1858, 1, 0
    %v1923 = vsel %vm1859, 1, 0
    %v1924 = vsel %vm1860, 1, 0
    %v1925 = vsel %vm1861, 1, 0
    %v1926 = vsel %vm1862, 1, 0
    %v1927 = vsel %vm1863, 1, 0
    %v1928 = vsel %vm1864, 1, 0
    %v1929 = vsel %vm1865, 1, 0
    %v1930 = vsel %vm1866, 1, 0
    %v1931 = vsel %vm1867, 1, 0
    %v1932 = vsel %vm1868, 1, 0
    %v1933 = vsel %vm1869, 1, 0
    %v1934 = vsel %vm1870, 1, 0
    %v1935 = vsel %vm1871, 1, 0
    %v1936 = vsel %vm1872, 1, 0
    %1937 = vset.pattern.permute.xlu0 0
    %1938 = vperm.xlu0 %1937, %v1873
    %v1939 = vpop.permute.xlu0 %1938
    %1940 = vset.pattern.permute.xlu0 0
    %1941 = vperm.xlu0 %1940, %v1874
    %v1942 = vpop.permute.xlu0 %1941
    %1943 = vset.pattern.permute.xlu0 0
    %1944 = vperm.xlu0 %1943, %v1875
    %v1945 = vpop.permute.xlu0 %1944
    %1946 = vset.pattern.permute.xlu0 0
    %1947 = vperm.xlu0 %1946, %v1876
    %v1948 = vpop.permute.xlu0 %1947
    %1949 = vset.pattern.permute.xlu0 0
    %1950 = vperm.xlu0 %1949, %v1877
    %v1951 = vpop.permute.xlu0 %1950
    %1952 = vset.pattern.permute.xlu0 0
    %1953 = vperm.xlu0 %1952, %v1878
    %v1954 = vpop.permute.xlu0 %1953
    %1955 = vset.pattern.permute.xlu0 0
    %1956 = vperm.xlu0 %1955, %v1879
    %v1957 = vpop.permute.xlu0 %1956
    %1958 = vset.pattern.permute.xlu0 0
    %1959 = vperm.xlu0 %1958, %v1880
    %v1960 = vpop.permute.xlu0 %1959
    %1961 = vset.pattern.permute.xlu0 0
    %1962 = vperm.xlu0 %1961, %v1881
    %v1963 = vpop.permute.xlu0 %1962
    %1964 = vset.pattern.permute.xlu0 0
    %1965 = vperm.xlu0 %1964, %v1882
    %v1966 = vpop.permute.xlu0 %1965
    %1967 = vset.pattern.permute.xlu0 0
    %1968 = vperm.xlu0 %1967, %v1883
    %v1969 = vpop.permute.xlu0 %1968
    %1970 = vset.pattern.permute.xlu0 0
    %1971 = vperm.xlu0 %1970, %v1884
    %v1972 = vpop.permute.xlu0 %1971
    %1973 = vset.pattern.permute.xlu0 0
    %1974 = vperm.xlu0 %1973, %v1885
    %v1975 = vpop.permute.xlu0 %1974
    %1976 = vset.pattern.permute.xlu0 0
    %1977 = vperm.xlu0 %1976, %v1886
    %v1978 = vpop.permute.xlu0 %1977
    %1979 = vset.pattern.permute.xlu0 0
    %1980 = vperm.xlu0 %1979, %v1887
    %v1981 = vpop.permute.xlu0 %1980
    %1982 = vset.pattern.permute.xlu0 0
    %1983 = vperm.xlu0 %1982, %v1888
    %v1984 = vpop.permute.xlu0 %1983
    %1985 = vset.pattern.permute.xlu0 0
    %1986 = vperm.xlu0 %1985, %v1889
    %v1987 = vpop.permute.xlu0 %1986
    %1988 = vset.pattern.permute.xlu0 0
    %1989 = vperm.xlu0 %1988, %v1890
    %v1990 = vpop.permute.xlu0 %1989
    %1991 = vset.pattern.permute.xlu0 0
    %1992 = vperm.xlu0 %1991, %v1891
    %v1993 = vpop.permute.xlu0 %1992
    %1994 = vset.pattern.permute.xlu0 0
    %1995 = vperm.xlu0 %1994, %v1892
    %v1996 = vpop.permute.xlu0 %1995
    %1997 = vset.pattern.permute.xlu0 0
    %1998 = vperm.xlu0 %1997, %v1893
    %v1999 = vpop.permute.xlu0 %1998
    %2000 = vset.pattern.permute.xlu0 0
    %2001 = vperm.xlu0 %2000, %v1894
    %v2002 = vpop.permute.xlu0 %2001
    %2003 = vset.pattern.permute.xlu0 0
    %2004 = vperm.xlu0 %2003, %v1895
    %v2005 = vpop.permute.xlu0 %2004
    %2006 = vset.pattern.permute.xlu0 0
    %2007 = vperm.xlu0 %2006, %v1896
    %v2008 = vpop.permute.xlu0 %2007
    %2009 = vset.pattern.permute.xlu0 0
    %2010 = vperm.xlu0 %2009, %v1897
    %v2011 = vpop.permute.xlu0 %2010
    %2012 = vset.pattern.permute.xlu0 0
    %2013 = vperm.xlu0 %2012, %v1898
    %v2014 = vpop.permute.xlu0 %2013
    %2015 = vset.pattern.permute.xlu0 0
    %2016 = vperm.xlu0 %2015, %v1899
    %v2017 = vpop.permute.xlu0 %2016
    %2018 = vset.pattern.permute.xlu0 0
    %2019 = vperm.xlu0 %2018, %v1900
    %v2020 = vpop.permute.xlu0 %2019
    %2021 = vset.pattern.permute.xlu0 0
    %2022 = vperm.xlu0 %2021, %v1901
    %v2023 = vpop.permute.xlu0 %2022
    %2024 = vset.pattern.permute.xlu0 0
    %2025 = vperm.xlu0 %2024, %v1902
    %v2026 = vpop.permute.xlu0 %2025
    %2027 = vset.pattern.permute.xlu0 0
    %2028 = vperm.xlu0 %2027, %v1903
    %v2029 = vpop.permute.xlu0 %2028
    %2030 = vset.pattern.permute.xlu0 0
    %2031 = vperm.xlu0 %2030, %v1904
    %v2032 = vpop.permute.xlu0 %2031
    %2033 = vset.pattern.permute.xlu0 0
    %2034 = vperm.xlu0 %2033, %v1905
    %v2035 = vpop.permute.xlu0 %2034
    %2036 = vset.pattern.permute.xlu0 0
    %2037 = vperm.xlu0 %2036, %v1906
    %v2038 = vpop.permute.xlu0 %2037
    %2039 = vset.pattern.permute.xlu0 0
    %2040 = vperm.xlu0 %2039, %v1907
    %v2041 = vpop.permute.xlu0 %2040
    %2042 = vset.pattern.permute.xlu0 0
    %2043 = vperm.xlu0 %2042, %v1908
    %v2044 = vpop.permute.xlu0 %2043
    %2045 = vset.pattern.permute.xlu0 0
    %2046 = vperm.xlu0 %2045, %v1909
    %v2047 = vpop.permute.xlu0 %2046
    %2048 = vset.pattern.permute.xlu0 0
    %2049 = vperm.xlu0 %2048, %v1910
    %v2050 = vpop.permute.xlu0 %2049
    %2051 = vset.pattern.permute.xlu0 0
    %2052 = vperm.xlu0 %2051, %v1911
    %v2053 = vpop.permute.xlu0 %2052
    %2054 = vset.pattern.permute.xlu0 0
    %2055 = vperm.xlu0 %2054, %v1912
    %v2056 = vpop.permute.xlu0 %2055
    %2057 = vset.pattern.permute.xlu0 0
    %2058 = vperm.xlu0 %2057, %v1913
    %v2059 = vpop.permute.xlu0 %2058
    %2060 = vset.pattern.permute.xlu0 0
    %2061 = vperm.xlu0 %2060, %v1914
    %v2062 = vpop.permute.xlu0 %2061
    %2063 = vset.pattern.permute.xlu0 0
    %2064 = vperm.xlu0 %2063, %v1915
    %v2065 = vpop.permute.xlu0 %2064
    %2066 = vset.pattern.permute.xlu0 0
    %2067 = vperm.xlu0 %2066, %v1916
    %v2068 = vpop.permute.xlu0 %2067
    %2069 = vset.pattern.permute.xlu0 0
    %2070 = vperm.xlu0 %2069, %v1917
    %v2071 = vpop.permute.xlu0 %2070
    %2072 = vset.pattern.permute.xlu0 0
    %2073 = vperm.xlu0 %2072, %v1918
    %v2074 = vpop.permute.xlu0 %2073
    %2075 = vset.pattern.permute.xlu0 0
    %2076 = vperm.xlu0 %2075, %v1919
    %v2077 = vpop.permute.xlu0 %2076
    %2078 = vset.pattern.permute.xlu0 0
    %2079 = vperm.xlu0 %2078, %v1920
    %v2080 = vpop.permute.xlu0 %2079
    %2081 = vset.pattern.permute.xlu0 0
    %2082 = vperm.xlu0 %2081, %v1921
    %v2083 = vpop.permute.xlu0 %2082
    %2084 = vset.pattern.permute.xlu0 0
    %2085 = vperm.xlu0 %2084, %v1922
    %v2086 = vpop.permute.xlu0 %2085
    %2087 = vset.pattern.permute.xlu0 0
    %2088 = vperm.xlu0 %2087, %v1923
    %v2089 = vpop.permute.xlu0 %2088
    %2090 = vset.pattern.permute.xlu0 0
    %2091 = vperm.xlu0 %2090, %v1924
    %v2092 = vpop.permute.xlu0 %2091
    %2093 = vset.pattern.permute.xlu0 0
    %2094 = vperm.xlu0 %2093, %v1925
    %v2095 = vpop.permute.xlu0 %2094
    %2096 = vset.pattern.permute.xlu0 0
    %2097 = vperm.xlu0 %2096, %v1926
    %v2098 = vpop.permute.xlu0 %2097
    %2099 = vset.pattern.permute.xlu0 0
    %2100 = vperm.xlu0 %2099, %v1927
    %v2101 = vpop.permute.xlu0 %2100
    %2102 = vset.pattern.permute.xlu0 0
    %2103 = vperm.xlu0 %2102, %v1928
    %v2104 = vpop.permute.xlu0 %2103
    %2105 = vset.pattern.permute.xlu0 0
    %2106 = vperm.xlu0 %2105, %v1929
    %v2107 = vpop.permute.xlu0 %2106
    %2108 = vset.pattern.permute.xlu0 0
    %2109 = vperm.xlu0 %2108, %v1930
    %v2110 = vpop.permute.xlu0 %2109
    %2111 = vset.pattern.permute.xlu0 0
    %2112 = vperm.xlu0 %2111, %v1931
    %v2113 = vpop.permute.xlu0 %2112
    %2114 = vset.pattern.permute.xlu0 0
    %2115 = vperm.xlu0 %2114, %v1932
    %v2116 = vpop.permute.xlu0 %2115
    %2117 = vset.pattern.permute.xlu0 0
    %2118 = vperm.xlu0 %2117, %v1933
    %v2119 = vpop.permute.xlu0 %2118
    %2120 = vset.pattern.permute.xlu0 0
    %2121 = vperm.xlu0 %2120, %v1934
    %v2122 = vpop.permute.xlu0 %2121
    %2123 = vset.pattern.permute.xlu0 0
    %2124 = vperm.xlu0 %2123, %v1935
    %v2125 = vpop.permute.xlu0 %2124
    %2126 = vset.pattern.permute.xlu0 0
    %2127 = vperm.xlu0 %2126, %v1936
    %v2128 = vpop.permute.xlu0 %2127
    %vm2129 = vcmp.eq.s32.totalorder %v1939, 1
    %vm2130 = vcmp.eq.s32.totalorder %v1942, 1
    %vm2131 = vcmp.eq.s32.totalorder %v1945, 1
    %vm2132 = vcmp.eq.s32.totalorder %v1948, 1
    %vm2133 = vcmp.eq.s32.totalorder %v1951, 1
    %vm2134 = vcmp.eq.s32.totalorder %v1954, 1
    %vm2135 = vcmp.eq.s32.totalorder %v1957, 1
    %vm2136 = vcmp.eq.s32.totalorder %v1960, 1
    %vm2137 = vcmp.eq.s32.totalorder %v1963, 1
    %vm2138 = vcmp.eq.s32.totalorder %v1966, 1
    %vm2139 = vcmp.eq.s32.totalorder %v1969, 1
    %vm2140 = vcmp.eq.s32.totalorder %v1972, 1
    %vm2141 = vcmp.eq.s32.totalorder %v1975, 1
    %vm2142 = vcmp.eq.s32.totalorder %v1978, 1
    %vm2143 = vcmp.eq.s32.totalorder %v1981, 1
    %vm2144 = vcmp.eq.s32.totalorder %v1984, 1
    %vm2145 = vcmp.eq.s32.totalorder %v1987, 1
    %vm2146 = vcmp.eq.s32.totalorder %v1990, 1
    %vm2147 = vcmp.eq.s32.totalorder %v1993, 1
    %vm2148 = vcmp.eq.s32.totalorder %v1996, 1
    %vm2149 = vcmp.eq.s32.totalorder %v1999, 1
    %vm2150 = vcmp.eq.s32.totalorder %v2002, 1
    %vm2151 = vcmp.eq.s32.totalorder %v2005, 1
    %vm2152 = vcmp.eq.s32.totalorder %v2008, 1
    %vm2153 = vcmp.eq.s32.totalorder %v2011, 1
    %vm2154 = vcmp.eq.s32.totalorder %v2014, 1
    %vm2155 = vcmp.eq.s32.totalorder %v2017, 1
    %vm2156 = vcmp.eq.s32.totalorder %v2020, 1
    %vm2157 = vcmp.eq.s32.totalorder %v2023, 1
    %vm2158 = vcmp.eq.s32.totalorder %v2026, 1
    %vm2159 = vcmp.eq.s32.totalorder %v2029, 1
    %vm2160 = vcmp.eq.s32.totalorder %v2032, 1
    %vm2161 = vcmp.eq.s32.totalorder %v2035, 1
    %vm2162 = vcmp.eq.s32.totalorder %v2038, 1
    %vm2163 = vcmp.eq.s32.totalorder %v2041, 1
    %vm2164 = vcmp.eq.s32.totalorder %v2044, 1
    %vm2165 = vcmp.eq.s32.totalorder %v2047, 1
    %vm2166 = vcmp.eq.s32.totalorder %v2050, 1
    %vm2167 = vcmp.eq.s32.totalorder %v2053, 1
    %vm2168 = vcmp.eq.s32.totalorder %v2056, 1
    %vm2169 = vcmp.eq.s32.totalorder %v2059, 1
    %vm2170 = vcmp.eq.s32.totalorder %v2062, 1
    %vm2171 = vcmp.eq.s32.totalorder %v2065, 1
    %vm2172 = vcmp.eq.s32.totalorder %v2068, 1
    %vm2173 = vcmp.eq.s32.totalorder %v2071, 1
    %vm2174 = vcmp.eq.s32.totalorder %v2074, 1
    %vm2175 = vcmp.eq.s32.totalorder %v2077, 1
    %vm2176 = vcmp.eq.s32.totalorder %v2080, 1
    %vm2177 = vcmp.eq.s32.totalorder %v2083, 1
    %vm2178 = vcmp.eq.s32.totalorder %v2086, 1
    %vm2179 = vcmp.eq.s32.totalorder %v2089, 1
    %vm2180 = vcmp.eq.s32.totalorder %v2092, 1
    %vm2181 = vcmp.eq.s32.totalorder %v2095, 1
    %vm2182 = vcmp.eq.s32.totalorder %v2098, 1
    %vm2183 = vcmp.eq.s32.totalorder %v2101, 1
    %vm2184 = vcmp.eq.s32.totalorder %v2104, 1
    %vm2185 = vcmp.eq.s32.totalorder %v2107, 1
    %vm2186 = vcmp.eq.s32.totalorder %v2110, 1
    %vm2187 = vcmp.eq.s32.totalorder %v2113, 1
    %vm2188 = vcmp.eq.s32.totalorder %v2116, 1
    %vm2189 = vcmp.eq.s32.totalorder %v2119, 1
    %vm2190 = vcmp.eq.s32.totalorder %v2122, 1
    %vm2191 = vcmp.eq.s32.totalorder %v2125, 1
    %vm2192 = vcmp.eq.s32.totalorder %v2128, 1
    %v2193 = vlaneseq
    %v2194 = vshrl.u32 %v2193, 7
    %v2195 = vsub.s32 0, %v2194
    %v2196 = vrot.slane %v964, %v2195
    %v2197 = vlaneseq
    %v2198 = vshrl.u32 %v2197, 7
    %v2199 = vsub.s32 0, %v2198
    %v2200 = vrot.slane %v978, %v2199
    %v2201 = vlaneseq
    %v2202 = vshrl.u32 %v2201, 7
    %v2203 = vsub.s32 0, %v2202
    %v2204 = vrot.slane %v986, %v2203
    %v2205 = vlaneseq
    %v2206 = vshrl.u32 %v2205, 7
    %v2207 = vsub.s32 0, %v2206
    %v2208 = vrot.slane %v988, %v2207
    %v2209 = vlaneseq
    %v2210 = vshrl.u32 %v2209, 7
    %v2211 = vsub.s32 0, %v2210
    %v2212 = vrot.slane %v971, %v2211
    %v2213 = vlaneseq
    %v2214 = vshrl.u32 %v2213, 7
    %v2215 = vsub.s32 0, %v2214
    %v2216 = vrot.slane %v985, %v2215
    %v2217 = vlaneseq
    %v2218 = vshrl.u32 %v2217, 7
    %v2219 = vsub.s32 0, %v2218
    %v2220 = vrot.slane %v987, %v2219
    %v2221 = vlaneseq
    %v2222 = vshrl.u32 %v2221, 7
    %v2223 = vsub.s32 0, %v2222
    %v2224 = vrot.slane %v989, %v2223
    %v2225 = vlaneseq
    %v2226 = vshrl.u32 %v2225, 7
    %v2227 = vsub.s32 0, %v2226
    %v2228 = vrot.slane %v1013, %v2227
    %v2229 = vlaneseq
    %v2230 = vshrl.u32 %v2229, 7
    %v2231 = vsub.s32 0, %v2230
    %v2232 = vrot.slane %v1027, %v2231
    %v2233 = vlaneseq
    %v2234 = vshrl.u32 %v2233, 7
    %v2235 = vsub.s32 0, %v2234
    %v2236 = vrot.slane %v1035, %v2235
    %v2237 = vlaneseq
    %v2238 = vshrl.u32 %v2237, 7
    %v2239 = vsub.s32 0, %v2238
    %v2240 = vrot.slane %v1037, %v2239
    %v2241 = vlaneseq
    %v2242 = vshrl.u32 %v2241, 7
    %v2243 = vsub.s32 0, %v2242
    %v2244 = vrot.slane %v1020, %v2243
    %v2245 = vlaneseq
    %v2246 = vshrl.u32 %v2245, 7
    %v2247 = vsub.s32 0, %v2246
    %v2248 = vrot.slane %v1034, %v2247
    %v2249 = vlaneseq
    %v2250 = vshrl.u32 %v2249, 7
    %v2251 = vsub.s32 0, %v2250
    %v2252 = vrot.slane %v1036, %v2251
    %v2253 = vlaneseq
    %v2254 = vshrl.u32 %v2253, 7
    %v2255 = vsub.s32 0, %v2254
    %v2256 = vrot.slane %v1038, %v2255
    %v2257 = vlaneseq
    %v2258 = vshrl.u32 %v2257, 7
    %v2259 = vsub.s32 0, %v2258
    %v2260 = vrot.slane %v1062, %v2259
    %v2261 = vlaneseq
    %v2262 = vshrl.u32 %v2261, 7
    %v2263 = vsub.s32 0, %v2262
    %v2264 = vrot.slane %v1076, %v2263
    %v2265 = vlaneseq
    %v2266 = vshrl.u32 %v2265, 7
    %v2267 = vsub.s32 0, %v2266
    %v2268 = vrot.slane %v1084, %v2267
    %v2269 = vlaneseq
    %v2270 = vshrl.u32 %v2269, 7
    %v2271 = vsub.s32 0, %v2270
    %v2272 = vrot.slane %v1086, %v2271
    %v2273 = vlaneseq
    %v2274 = vshrl.u32 %v2273, 7
    %v2275 = vsub.s32 0, %v2274
    %v2276 = vrot.slane %v1069, %v2275
    %v2277 = vlaneseq
    %v2278 = vshrl.u32 %v2277, 7
    %v2279 = vsub.s32 0, %v2278
    %v2280 = vrot.slane %v1083, %v2279
    %v2281 = vlaneseq
    %v2282 = vshrl.u32 %v2281, 7
    %v2283 = vsub.s32 0, %v2282
    %v2284 = vrot.slane %v1085, %v2283
    %v2285 = vlaneseq
    %v2286 = vshrl.u32 %v2285, 7
    %v2287 = vsub.s32 0, %v2286
    %v2288 = vrot.slane %v1087, %v2287
    %v2289 = vlaneseq
    %v2290 = vshrl.u32 %v2289, 7
    %v2291 = vsub.s32 0, %v2290
    %v2292 = vrot.slane %v1111, %v2291
    %v2293 = vlaneseq
    %v2294 = vshrl.u32 %v2293, 7
    %v2295 = vsub.s32 0, %v2294
    %v2296 = vrot.slane %v1125, %v2295
    %v2297 = vlaneseq
    %v2298 = vshrl.u32 %v2297, 7
    %v2299 = vsub.s32 0, %v2298
    %v2300 = vrot.slane %v1133, %v2299
    %v2301 = vlaneseq
    %v2302 = vshrl.u32 %v2301, 7
    %v2303 = vsub.s32 0, %v2302
    %v2304 = vrot.slane %v1135, %v2303
    %v2305 = vlaneseq
    %v2306 = vshrl.u32 %v2305, 7
    %v2307 = vsub.s32 0, %v2306
    %v2308 = vrot.slane %v1118, %v2307
    %v2309 = vlaneseq
    %v2310 = vshrl.u32 %v2309, 7
    %v2311 = vsub.s32 0, %v2310
    %v2312 = vrot.slane %v1132, %v2311
    %v2313 = vlaneseq
    %v2314 = vshrl.u32 %v2313, 7
    %v2315 = vsub.s32 0, %v2314
    %v2316 = vrot.slane %v1134, %v2315
    %v2317 = vlaneseq
    %v2318 = vshrl.u32 %v2317, 7
    %v2319 = vsub.s32 0, %v2318
    %v2320 = vrot.slane %v1136, %v2319
    %v2353 = vsel %vm2129, %v2196, 1e+30
    %v2354 = vsel %vm2130, %v2196, 1e+30
    %v2355 = vsel %vm2131, %v2200, 1e+30
    %v2356 = vsel %vm2132, %v2200, 1e+30
    %v2357 = vsel %vm2133, %v2204, 1e+30
    %v2358 = vsel %vm2134, %v2204, 1e+30
    %v2359 = vsel %vm2135, %v2208, 1e+30
    %v2360 = vsel %vm2136, %v2208, 1e+30
    %v2361 = vsel %vm2137, %v2212, 1e+30
    %v2362 = vsel %vm2138, %v2212, 1e+30
    %v2363 = vsel %vm2139, %v2216, 1e+30
    %v2364 = vsel %vm2140, %v2216, 1e+30
    %v2365 = vsel %vm2141, %v2220, 1e+30
    %v2366 = vsel %vm2142, %v2220, 1e+30
    %v2367 = vsel %vm2143, %v2224, 1e+30
    %v2368 = vsel %vm2144, %v2224, 1e+30
    %v2369 = vsel %vm2145, %v2228, 1e+30
    %v2370 = vsel %vm2146, %v2228, 1e+30
    %v2371 = vsel %vm2147, %v2232, 1e+30
    %v2372 = vsel %vm2148, %v2232, 1e+30
    %v2373 = vsel %vm2149, %v2236, 1e+30
    %v2374 = vsel %vm2150, %v2236, 1e+30
    %v2375 = vsel %vm2151, %v2240, 1e+30
    %v2376 = vsel %vm2152, %v2240, 1e+30
    %v2377 = vsel %vm2153, %v2244, 1e+30
    %v2378 = vsel %vm2154, %v2244, 1e+30
    %v2379 = vsel %vm2155, %v2248, 1e+30
    %v2380 = vsel %vm2156, %v2248, 1e+30
    %v2381 = vsel %vm2157, %v2252, 1e+30
    %v2382 = vsel %vm2158, %v2252, 1e+30
    %v2383 = vsel %vm2159, %v2256, 1e+30
    %v2384 = vsel %vm2160, %v2256, 1e+30
    %v2385 = vsel %vm2161, %v2260, 1e+30
    %v2386 = vsel %vm2162, %v2260, 1e+30
    %v2387 = vsel %vm2163, %v2264, 1e+30
    %v2388 = vsel %vm2164, %v2264, 1e+30
    %v2389 = vsel %vm2165, %v2268, 1e+30
    %v2390 = vsel %vm2166, %v2268, 1e+30
    %v2391 = vsel %vm2167, %v2272, 1e+30
    %v2392 = vsel %vm2168, %v2272, 1e+30
    %v2393 = vsel %vm2169, %v2276, 1e+30
    %v2394 = vsel %vm2170, %v2276, 1e+30
    %v2395 = vsel %vm2171, %v2280, 1e+30
    %v2396 = vsel %vm2172, %v2280, 1e+30
    %v2397 = vsel %vm2173, %v2284, 1e+30
    %v2398 = vsel %vm2174, %v2284, 1e+30
    %v2399 = vsel %vm2175, %v2288, 1e+30
    %v2400 = vsel %vm2176, %v2288, 1e+30
    %v2401 = vsel %vm2177, %v2292, 1e+30
    %v2402 = vsel %vm2178, %v2292, 1e+30
    %v2403 = vsel %vm2179, %v2296, 1e+30
    %v2404 = vsel %vm2180, %v2296, 1e+30
    %v2405 = vsel %vm2181, %v2300, 1e+30
    %v2406 = vsel %vm2182, %v2300, 1e+30
    %v2407 = vsel %vm2183, %v2304, 1e+30
    %v2408 = vsel %vm2184, %v2304, 1e+30
    %v2409 = vsel %vm2185, %v2308, 1e+30
    %v2410 = vsel %vm2186, %v2308, 1e+30
    %v2411 = vsel %vm2187, %v2312, 1e+30
    %v2412 = vsel %vm2188, %v2312, 1e+30
    %v2413 = vsel %vm2189, %v2316, 1e+30
    %v2414 = vsel %vm2190, %v2316, 1e+30
    %v2415 = vsel %vm2191, %v2320, 1e+30
    %v2416 = vsel %vm2192, %v2320, 1e+30
    %v2417 = vsel %vm535, %v2353, inf
    %v2418 = vsel %vm535, %v2355, inf
    %v2419 = vsel %vm535, %v2357, inf
    %v2420 = vmin.f32 %v2417, %v2419
    %v2421 = vsel %vm535, %v2359, inf
    %v2422 = vmin.f32 %v2418, %v2421
    %v2423 = vsel %vm535, %v2361, inf
    %v2424 = vmin.f32 %v2420, %v2423
    %v2425 = vsel %vm535, %v2363, inf
    %v2426 = vmin.f32 %v2422, %v2425
    %v2427 = vsel %vm535, %v2365, inf
    %v2428 = vmin.f32 %v2424, %v2427
    %v2429 = vsel %vm535, %v2367, inf
    %v2430 = vmin.f32 %v2426, %v2429
    %v2431 = vsel %vm535, %v2369, inf
    %v2432 = vmin.f32 %v2428, %v2431
    %v2433 = vsel %vm535, %v2371, inf
    %v2434 = vmin.f32 %v2430, %v2433
    %v2435 = vsel %vm535, %v2373, inf
    %v2436 = vmin.f32 %v2432, %v2435
    %v2437 = vsel %vm535, %v2375, inf
    %v2438 = vmin.f32 %v2434, %v2437
    %v2439 = vsel %vm535, %v2377, inf
    %v2440 = vmin.f32 %v2436, %v2439
    %v2441 = vsel %vm535, %v2379, inf
    %v2442 = vmin.f32 %v2438, %v2441
    %v2443 = vsel %vm535, %v2381, inf
    %v2444 = vmin.f32 %v2440, %v2443
    %v2445 = vsel %vm535, %v2383, inf
    %v2446 = vmin.f32 %v2442, %v2445
    %v2447 = vsel %vm535, %v2385, inf
    %v2448 = vmin.f32 %v2444, %v2447
    %v2449 = vsel %vm535, %v2387, inf
    %v2450 = vmin.f32 %v2446, %v2449
    %v2451 = vsel %vm535, %v2389, inf
    %v2452 = vmin.f32 %v2448, %v2451
    %v2453 = vsel %vm535, %v2391, inf
    %v2454 = vmin.f32 %v2450, %v2453
    %v2455 = vsel %vm535, %v2393, inf
    %v2456 = vmin.f32 %v2452, %v2455
    %v2457 = vsel %vm535, %v2395, inf
    %v2458 = vmin.f32 %v2454, %v2457
    %v2459 = vsel %vm535, %v2397, inf
    %v2460 = vmin.f32 %v2456, %v2459
    %v2461 = vsel %vm535, %v2399, inf
    %v2462 = vmin.f32 %v2458, %v2461
    %v2463 = vsel %vm535, %v2401, inf
    %v2464 = vmin.f32 %v2460, %v2463
    %v2465 = vsel %vm535, %v2403, inf
    %v2466 = vmin.f32 %v2462, %v2465
    %v2467 = vsel %vm535, %v2405, inf
    %v2468 = vmin.f32 %v2464, %v2467
    %v2469 = vsel %vm535, %v2407, inf
    %v2470 = vmin.f32 %v2466, %v2469
    %v2471 = vsel %vm535, %v2409, inf
    %v2472 = vmin.f32 %v2468, %v2471
    %v2473 = vsel %vm535, %v2411, inf
    %v2474 = vmin.f32 %v2470, %v2473
    %v2475 = vsel %vm535, %v2413, inf
    %v2476 = vmin.f32 %v2472, %v2475
    %v2477 = vsel %vm535, %v2415, inf
    %v2478 = vmin.f32 %v2474, %v2477
    %v2479 = vmin.f32 %v2476, %v2478
    %v2480 = vsel %vm535, %v2354, inf
    %v2481 = vsel %vm535, %v2356, inf
    %v2482 = vsel %vm535, %v2358, inf
    %v2483 = vmin.f32 %v2480, %v2482
    %v2484 = vsel %vm535, %v2360, inf
    %v2485 = vmin.f32 %v2481, %v2484
    %v2486 = vsel %vm535, %v2362, inf
    %v2487 = vmin.f32 %v2483, %v2486
    %v2488 = vsel %vm535, %v2364, inf
    %v2489 = vmin.f32 %v2485, %v2488
    %v2490 = vsel %vm535, %v2366, inf
    %v2491 = vmin.f32 %v2487, %v2490
    %v2492 = vsel %vm535, %v2368, inf
    %v2493 = vmin.f32 %v2489, %v2492
    %v2494 = vsel %vm535, %v2370, inf
    %v2495 = vmin.f32 %v2491, %v2494
    %v2496 = vsel %vm535, %v2372, inf
    %v2497 = vmin.f32 %v2493, %v2496
    %v2498 = vsel %vm535, %v2374, inf
    %v2499 = vmin.f32 %v2495, %v2498
    %v2500 = vsel %vm535, %v2376, inf
    %v2501 = vmin.f32 %v2497, %v2500
    %v2502 = vsel %vm535, %v2378, inf
    %v2503 = vmin.f32 %v2499, %v2502
    %v2504 = vsel %vm535, %v2380, inf
    %v2505 = vmin.f32 %v2501, %v2504
    %v2506 = vsel %vm535, %v2382, inf
    %v2507 = vmin.f32 %v2503, %v2506
    %v2508 = vsel %vm535, %v2384, inf
    %v2509 = vmin.f32 %v2505, %v2508
    %v2510 = vsel %vm535, %v2386, inf
    %v2511 = vmin.f32 %v2507, %v2510
    %v2512 = vsel %vm535, %v2388, inf
    %v2513 = vmin.f32 %v2509, %v2512
    %v2514 = vsel %vm535, %v2390, inf
    %v2515 = vmin.f32 %v2511, %v2514
    %v2516 = vsel %vm535, %v2392, inf
    %v2517 = vmin.f32 %v2513, %v2516
    %v2518 = vsel %vm535, %v2394, inf
    %v2519 = vmin.f32 %v2515, %v2518
    %v2520 = vsel %vm535, %v2396, inf
    %v2521 = vmin.f32 %v2517, %v2520
    %v2522 = vsel %vm535, %v2398, inf
    %v2523 = vmin.f32 %v2519, %v2522
    %v2524 = vsel %vm535, %v2400, inf
    %v2525 = vmin.f32 %v2521, %v2524
    %v2526 = vsel %vm535, %v2402, inf
    %v2527 = vmin.f32 %v2523, %v2526
    %v2528 = vsel %vm535, %v2404, inf
    %v2529 = vmin.f32 %v2525, %v2528
    %v2530 = vsel %vm535, %v2406, inf
    %v2531 = vmin.f32 %v2527, %v2530
    %v2532 = vsel %vm535, %v2408, inf
    %v2533 = vmin.f32 %v2529, %v2532
    %v2534 = vsel %vm535, %v2410, inf
    %v2535 = vmin.f32 %v2531, %v2534
    %v2536 = vsel %vm535, %v2412, inf
    %v2537 = vmin.f32 %v2533, %v2536
    %v2538 = vsel %vm535, %v2414, inf
    %v2539 = vmin.f32 %v2535, %v2538
    %v2540 = vsel %vm535, %v2416, inf
    %v2541 = vmin.f32 %v2537, %v2540
    %v2542 = vmin.f32 %v2539, %v2541
    %v2543 = vmin.f32 %v2479, 1e+30
    %v2544 = vmin.f32 %v2542, 1e+30
    %v2545 = vsel %vm2129, %v2196, -1e+30
    %v2546 = vsel %vm2130, %v2196, -1e+30
    %v2547 = vsel %vm2131, %v2200, -1e+30
    %v2548 = vsel %vm2132, %v2200, -1e+30
    %v2549 = vsel %vm2133, %v2204, -1e+30
    %v2550 = vsel %vm2134, %v2204, -1e+30
    %v2551 = vsel %vm2135, %v2208, -1e+30
    %v2552 = vsel %vm2136, %v2208, -1e+30
    %v2553 = vsel %vm2137, %v2212, -1e+30
    %v2554 = vsel %vm2138, %v2212, -1e+30
    %v2555 = vsel %vm2139, %v2216, -1e+30
    %v2556 = vsel %vm2140, %v2216, -1e+30
    %v2557 = vsel %vm2141, %v2220, -1e+30
    %v2558 = vsel %vm2142, %v2220, -1e+30
    %v2559 = vsel %vm2143, %v2224, -1e+30
    %v2560 = vsel %vm2144, %v2224, -1e+30
    %v2561 = vsel %vm2145, %v2228, -1e+30
    %v2562 = vsel %vm2146, %v2228, -1e+30
    %v2563 = vsel %vm2147, %v2232, -1e+30
    %v2564 = vsel %vm2148, %v2232, -1e+30
    %v2565 = vsel %vm2149, %v2236, -1e+30
    %v2566 = vsel %vm2150, %v2236, -1e+30
    %v2567 = vsel %vm2151, %v2240, -1e+30
    %v2568 = vsel %vm2152, %v2240, -1e+30
    %v2569 = vsel %vm2153, %v2244, -1e+30
    %v2570 = vsel %vm2154, %v2244, -1e+30
    %v2571 = vsel %vm2155, %v2248, -1e+30
    %v2572 = vsel %vm2156, %v2248, -1e+30
    %v2573 = vsel %vm2157, %v2252, -1e+30
    %v2574 = vsel %vm2158, %v2252, -1e+30
    %v2575 = vsel %vm2159, %v2256, -1e+30
    %v2576 = vsel %vm2160, %v2256, -1e+30
    %v2577 = vsel %vm2161, %v2260, -1e+30
    %v2578 = vsel %vm2162, %v2260, -1e+30
    %v2579 = vsel %vm2163, %v2264, -1e+30
    %v2580 = vsel %vm2164, %v2264, -1e+30
    %v2581 = vsel %vm2165, %v2268, -1e+30
    %v2582 = vsel %vm2166, %v2268, -1e+30
    %v2583 = vsel %vm2167, %v2272, -1e+30
    %v2584 = vsel %vm2168, %v2272, -1e+30
    %v2585 = vsel %vm2169, %v2276, -1e+30
    %v2586 = vsel %vm2170, %v2276, -1e+30
    %v2587 = vsel %vm2171, %v2280, -1e+30
    %v2588 = vsel %vm2172, %v2280, -1e+30
    %v2589 = vsel %vm2173, %v2284, -1e+30
    %v2590 = vsel %vm2174, %v2284, -1e+30
    %v2591 = vsel %vm2175, %v2288, -1e+30
    %v2592 = vsel %vm2176, %v2288, -1e+30
    %v2593 = vsel %vm2177, %v2292, -1e+30
    %v2594 = vsel %vm2178, %v2292, -1e+30
    %v2595 = vsel %vm2179, %v2296, -1e+30
    %v2596 = vsel %vm2180, %v2296, -1e+30
    %v2597 = vsel %vm2181, %v2300, -1e+30
    %v2598 = vsel %vm2182, %v2300, -1e+30
    %v2599 = vsel %vm2183, %v2304, -1e+30
    %v2600 = vsel %vm2184, %v2304, -1e+30
    %v2601 = vsel %vm2185, %v2308, -1e+30
    %v2602 = vsel %vm2186, %v2308, -1e+30
    %v2603 = vsel %vm2187, %v2312, -1e+30
    %v2604 = vsel %vm2188, %v2312, -1e+30
    %v2605 = vsel %vm2189, %v2316, -1e+30
    %v2606 = vsel %vm2190, %v2316, -1e+30
    %v2607 = vsel %vm2191, %v2320, -1e+30
    %v2608 = vsel %vm2192, %v2320, -1e+30
    %v2609 = vsel %vm535, %v2545, -inf
    %v2610 = vsel %vm535, %v2547, -inf
    %v2611 = vsel %vm535, %v2549, -inf
    %v2612 = vmax.f32 %v2609, %v2611
    %v2613 = vsel %vm535, %v2551, -inf
    %v2614 = vmax.f32 %v2610, %v2613
    %v2615 = vsel %vm535, %v2553, -inf
    %v2616 = vmax.f32 %v2612, %v2615
    %v2617 = vsel %vm535, %v2555, -inf
    %v2618 = vmax.f32 %v2614, %v2617
    %v2619 = vsel %vm535, %v2557, -inf
    %v2620 = vmax.f32 %v2616, %v2619
    %v2621 = vsel %vm535, %v2559, -inf
    %v2622 = vmax.f32 %v2618, %v2621
    %v2623 = vsel %vm535, %v2561, -inf
    %v2624 = vmax.f32 %v2620, %v2623
    %v2625 = vsel %vm535, %v2563, -inf
    %v2626 = vmax.f32 %v2622, %v2625
    %v2627 = vsel %vm535, %v2565, -inf
    %v2628 = vmax.f32 %v2624, %v2627
    %v2629 = vsel %vm535, %v2567, -inf
    %v2630 = vmax.f32 %v2626, %v2629
    %v2631 = vsel %vm535, %v2569, -inf
    %v2632 = vmax.f32 %v2628, %v2631
    %v2633 = vsel %vm535, %v2571, -inf
    %v2634 = vmax.f32 %v2630, %v2633
    %v2635 = vsel %vm535, %v2573, -inf
    %v2636 = vmax.f32 %v2632, %v2635
    %v2637 = vsel %vm535, %v2575, -inf
    %v2638 = vmax.f32 %v2634, %v2637
    %v2639 = vsel %vm535, %v2577, -inf
    %v2640 = vmax.f32 %v2636, %v2639
    %v2641 = vsel %vm535, %v2579, -inf
    %v2642 = vmax.f32 %v2638, %v2641
    %v2643 = vsel %vm535, %v2581, -inf
    %v2644 = vmax.f32 %v2640, %v2643
    %v2645 = vsel %vm535, %v2583, -inf
    %v2646 = vmax.f32 %v2642, %v2645
    %v2647 = vsel %vm535, %v2585, -inf
    %v2648 = vmax.f32 %v2644, %v2647
    %v2649 = vsel %vm535, %v2587, -inf
    %v2650 = vmax.f32 %v2646, %v2649
    %v2651 = vsel %vm535, %v2589, -inf
    %v2652 = vmax.f32 %v2648, %v2651
    %v2653 = vsel %vm535, %v2591, -inf
    %v2654 = vmax.f32 %v2650, %v2653
    %v2655 = vsel %vm535, %v2593, -inf
    %v2656 = vmax.f32 %v2652, %v2655
    %v2657 = vsel %vm535, %v2595, -inf
    %v2658 = vmax.f32 %v2654, %v2657
    %v2659 = vsel %vm535, %v2597, -inf
    %v2660 = vmax.f32 %v2656, %v2659
    %v2661 = vsel %vm535, %v2599, -inf
    %v2662 = vmax.f32 %v2658, %v2661
    %v2663 = vsel %vm535, %v2601, -inf
    %v2664 = vmax.f32 %v2660, %v2663
    %v2665 = vsel %vm535, %v2603, -inf
    %v2666 = vmax.f32 %v2662, %v2665
    %v2667 = vsel %vm535, %v2605, -inf
    %v2668 = vmax.f32 %v2664, %v2667
    %v2669 = vsel %vm535, %v2607, -inf
    %v2670 = vmax.f32 %v2666, %v2669
    %v2671 = vmax.f32 %v2668, %v2670
    %v2672 = vsel %vm535, %v2546, -inf
    %v2673 = vsel %vm535, %v2548, -inf
    %v2674 = vsel %vm535, %v2550, -inf
    %v2675 = vmax.f32 %v2672, %v2674
    %v2676 = vsel %vm535, %v2552, -inf
    %v2677 = vmax.f32 %v2673, %v2676
    %v2678 = vsel %vm535, %v2554, -inf
    %v2679 = vmax.f32 %v2675, %v2678
    %v2680 = vsel %vm535, %v2556, -inf
    %v2681 = vmax.f32 %v2677, %v2680
    %v2682 = vsel %vm535, %v2558, -inf
    %v2683 = vmax.f32 %v2679, %v2682
    %v2684 = vsel %vm535, %v2560, -inf
    %v2685 = vmax.f32 %v2681, %v2684
    %v2686 = vsel %vm535, %v2562, -inf
    %v2687 = vmax.f32 %v2683, %v2686
    %v2688 = vsel %vm535, %v2564, -inf
    %v2689 = vmax.f32 %v2685, %v2688
    %v2690 = vsel %vm535, %v2566, -inf
    %v2691 = vmax.f32 %v2687, %v2690
    %v2692 = vsel %vm535, %v2568, -inf
    %v2693 = vmax.f32 %v2689, %v2692
    %v2694 = vsel %vm535, %v2570, -inf
    %v2695 = vmax.f32 %v2691, %v2694
    %v2696 = vsel %vm535, %v2572, -inf
    %v2697 = vmax.f32 %v2693, %v2696
    %v2698 = vsel %vm535, %v2574, -inf
    %v2699 = vmax.f32 %v2695, %v2698
    %v2700 = vsel %vm535, %v2576, -inf
    %v2701 = vmax.f32 %v2697, %v2700
    %v2702 = vsel %vm535, %v2578, -inf
    %v2703 = vmax.f32 %v2699, %v2702
    %v2704 = vsel %vm535, %v2580, -inf
    %v2705 = vmax.f32 %v2701, %v2704
    %v2706 = vsel %vm535, %v2582, -inf
    %v2707 = vmax.f32 %v2703, %v2706
    %v2708 = vsel %vm535, %v2584, -inf
    %v2709 = vmax.f32 %v2705, %v2708
    %v2710 = vsel %vm535, %v2586, -inf
    %v2711 = vmax.f32 %v2707, %v2710
    %v2712 = vsel %vm535, %v2588, -inf
    %v2713 = vmax.f32 %v2709, %v2712
    %v2714 = vsel %vm535, %v2590, -inf
    %v2715 = vmax.f32 %v2711, %v2714
    %v2716 = vsel %vm535, %v2592, -inf
    %v2717 = vmax.f32 %v2713, %v2716
    %v2718 = vsel %vm535, %v2594, -inf
    %v2719 = vmax.f32 %v2715, %v2718
    %v2720 = vsel %vm535, %v2596, -inf
    %v2721 = vmax.f32 %v2717, %v2720
    %v2722 = vsel %vm535, %v2598, -inf
    %v2723 = vmax.f32 %v2719, %v2722
    %v2724 = vsel %vm535, %v2600, -inf
    %v2725 = vmax.f32 %v2721, %v2724
    %v2726 = vsel %vm535, %v2602, -inf
    %v2727 = vmax.f32 %v2723, %v2726
    %v2728 = vsel %vm535, %v2604, -inf
    %v2729 = vmax.f32 %v2725, %v2728
    %v2730 = vsel %vm535, %v2606, -inf
    %v2731 = vmax.f32 %v2727, %v2730
    %v2732 = vsel %vm535, %v2608, -inf
    %v2733 = vmax.f32 %v2729, %v2732
    %v2734 = vmax.f32 %v2731, %v2733
    %v2735 = vmax.f32 %v2671, -1e+30
    %v2736 = vmax.f32 %v2734, -1e+30
    %2739 = vrot.lane.b32.xlu0 %v2543, 32
    %v2740 = vpop.permute.xlu0 %2739
    %2741 = vrot.lane.b32.xlu0 %v2544, 32
    %v2742 = vpop.permute.xlu0 %2741
    %2747 = vrot.lane.b32.xlu0 %v2735, 64
    %v2748 = vpop.permute.xlu0 %2747
    %2749 = vrot.lane.b32.xlu0 %v2736, 64
    %v2750 = vpop.permute.xlu0 %2749
    %2755 = vrot.lane.b32.xlu0 %v929, 96
    %v2756 = vpop.permute.xlu0 %2755
    %2757 = vrot.lane.b32.xlu0 %v936, 96
    %v2758 = vpop.permute.xlu0 %2757
    %v2761 = vsel %vm535, %v911, %v2740
    %v2762 = vsel %vm535, %v912, %v2742
    %vm2763 = vcmask 523264
    %v2764 = vsel %vm2763, %v2761, %v2748
    %v2765 = vsel %vm2763, %v2762, %v2750
    %vm2766 = vcmask 785408
    %v2767 = vsel %vm2766, %v2764, %v2756
    %v2768 = vsel %vm2766, %v2765, %v2758
    %v2769 = vld [vmem:[%s8] sm:$0xff]
    %v2770 = vld [vmem:[%s8 + $0x8] sm:$0xff]
    %v2771 = vld [vmem:[%s8 + $0x10] sm:$0xff]
    %v2772 = vld [vmem:[%s8 + $0x18] sm:$0xff]
    %v2773 = vld [vmem:[%s9] sm:$0xff]
    %v2774 = vld [vmem:[%s9 + $0x8] sm:$0xff]
    %v2775 = vld [vmem:[%s9 + $0x10] sm:$0xff]
    %v2776 = vld [vmem:[%s9 + $0x18] sm:$0xff]
    %v2777 = vld [vmem:[%s9 + $0x20] sm:$0xff]
    %v2778 = vld [vmem:[%s9 + $0x28] sm:$0xff]
    %v2779 = vld [vmem:[%s9 + $0x30] sm:$0xff]
    %v2780 = vld [vmem:[%s9 + $0x38] sm:$0xff]
    %v2781 = vld [vmem:[%s9 + $0x40] sm:$0xff]
    %v2782 = vld [vmem:[%s9 + $0x48] sm:$0xff]
    %v2783 = vld [vmem:[%s9 + $0x50] sm:$0xff]
    %v2784 = vld [vmem:[%s9 + $0x58] sm:$0xff]
    %v2785 = vld [vmem:[%s9 + $0x60] sm:$0xff]
    %v2786 = vld [vmem:[%s9 + $0x68] sm:$0xff]
    %v2787 = vld [vmem:[%s9 + $0x70] sm:$0xff]
    %v2788 = vld [vmem:[%s9 + $0x78] sm:$0xff]
    %2789 = vmatprep.subr.mxu0 0.0
    %2790 = vmatpush1.msra.mxu0 %v2773
    %2791 = vmatprep.subr.mxu0 0.0
    %2792 = vmatpush1.msra.mxu0 %v2774
    %2793 = vmatprep.subr.mxu0 0.0
    %2794 = vmatpush1.msra.mxu0 %v2775
    %2795 = vmatprep.subr.mxu0 0.0
    %2796 = vmatpush1.msra.mxu0 %v2776
    %2797 = vmatprep.subr.mxu0 0.0
    %2798 = vmatpush1.msra.mxu0 %v2777
    %2799 = vmatprep.subr.mxu0 0.0
    %2800 = vmatpush1.msra.mxu0 %v2778
    %2801 = vmatprep.subr.mxu0 0.0
    %2802 = vmatpush1.msra.mxu0 %v2779
    %2803 = vmatprep.subr.mxu0 0.0
    %2804 = vmatpush1.msra.mxu0 %v2780
    %2805 = vmatprep.subr.mxu0 0.0
    %2806 = vmatpush1.msra.mxu0 %v2781
    %2807 = vmatprep.subr.mxu0 0.0
    %2808 = vmatpush1.msra.mxu0 %v2782
    %2809 = vmatprep.subr.mxu0 0.0
    %2810 = vmatpush1.msra.mxu0 %v2783
    %2811 = vmatprep.subr.mxu0 0.0
    %2812 = vmatpush1.msra.mxu0 %v2784
    %2813 = vmatprep.subr.mxu0 0.0
    %2814 = vmatpush1.msra.mxu0 %v2785
    %2815 = vmatprep.subr.mxu0 0.0
    %2816 = vmatpush1.msra.mxu0 %v2786
    %2817 = vmatprep.subr.mxu0 0.0
    %2818 = vmatpush1.msra.mxu0 %v2787
    %2819 = vmatprep.subr.mxu0 0.0
    %2820 = vmatpush1.msra.mxu0 %v2788
    %2821 = vmatprep.subr.mxu0 0.0
    %2822 = vmatpush1.msra.mxu0 0.0
    %2823 = vmatprep.subr.mxu0 0.0
    %2824 = vmatpush1.msra.mxu0 0.0
    %2825 = vmatprep.subr.mxu0 0.0
    %2826 = vmatpush1.msra.mxu0 0.0
    %2827 = vmatprep.subr.mxu0 0.0
    %2828 = vmatpush1.msra.mxu0 0.0
    %2829 = vmatprep.subr.mxu0 0.0
    %2830 = vmatpush1.msra.mxu0 0.0
    %2831 = vmatprep.subr.mxu0 0.0
    %2832 = vmatpush1.msra.mxu0 0.0
    %2833 = vmatprep.subr.mxu0 0.0
    %2834 = vmatpush1.msra.mxu0 0.0
    %2835 = vmatprep.subr.mxu0 0.0
    %2836 = vmatpush1.msra.mxu0 0.0
    %2837 = vmatprep.subr.mxu0 0.0
    %2838 = vmatpush1.msra.mxu0 0.0
    %2839 = vmatprep.subr.mxu0 0.0
    %2840 = vmatpush1.msra.mxu0 0.0
    %2841 = vmatprep.subr.mxu0 0.0
    %2842 = vmatpush1.msra.mxu0 0.0
    %2843 = vmatprep.subr.mxu0 0.0
    %2844 = vmatpush1.msra.mxu0 0.0
    %2845 = vmatprep.subr.mxu0 0.0
    %2846 = vmatpush1.msra.mxu0 0.0
    %2847 = vmatprep.subr.mxu0 0.0
    %2848 = vmatpush1.msra.mxu0 0.0
    %2849 = vmatprep.subr.mxu0 0.0
    %2850 = vmatpush1.msra.mxu0 0.0
    %2851 = vmatprep.subr.mxu0 0.0
    %2852 = vmatpush1.msra.mxu0 0.0
    %2853 = vmatprep.mubr.f32.mxu0 0.0
    %2854 = vmatmul.mubr.f32.gmra.mrb[0].mxu0 %v2767
    %v2855 = vpop.f32.mrb[0].mxu0
    %v2856 = vadd.f32 0.0, %v2855
    %v2857 = vpop.f32.mrb[0].mxu0
    %2858 = vmatprep.mubr.f32.mxu0 0.0
    %2859 = vmatmul.mubr.f32.gmra.mrb[0].mxu0 %v2768
    %v2860 = vpop.f32.mrb[0].mxu0
    %v2861 = vadd.f32 0.0, %v2860
    %v2862 = vpop.f32.mrb[0].mxu0
    %2863 = vdwg.mxu0
    %v2865 = vsel %vm535, %v67, 0
    %v2868 = vsel %vm535, %v68, 0
    %2870 = vmatprep.subr.mxu0 0.0
    %2871 = vmatpush1.msra.mxu0 %v2769
    %2872 = vmatprep.subr.mxu0 0.0
    %2873 = vmatpush1.msra.mxu0 %v2770
    %2874 = vmatprep.subr.mxu0 0.0
    %2875 = vmatpush1.msra.mxu0 %v2771
    %2876 = vmatprep.subr.mxu0 0.0
    %2877 = vmatpush1.msra.mxu0 %v2772
    %2878 = vmatprep.subr.mxu0 0.0
    %2879 = vmatpush1.msra.mxu0 0.0
    %2880 = vmatprep.subr.mxu0 0.0
    %2881 = vmatpush1.msra.mxu0 0.0
    %2882 = vmatprep.subr.mxu0 0.0
    %2883 = vmatpush1.msra.mxu0 0.0
    %2884 = vmatprep.subr.mxu0 0.0
    %2885 = vmatpush1.msra.mxu0 0.0
    %2886 = vmatprep.subr.mxu0 0.0
    %2887 = vmatpush1.msra.mxu0 0.0
    %2888 = vmatprep.subr.mxu0 0.0
    %2889 = vmatpush1.msra.mxu0 0.0
    %2890 = vmatprep.subr.mxu0 0.0
    %2891 = vmatpush1.msra.mxu0 0.0
    %2892 = vmatprep.subr.mxu0 0.0
    %2893 = vmatpush1.msra.mxu0 0.0
    %2894 = vmatprep.subr.mxu0 0.0
    %2895 = vmatpush1.msra.mxu0 0.0
    %2896 = vmatprep.subr.mxu0 0.0
    %2897 = vmatpush1.msra.mxu0 0.0
    %2898 = vmatprep.subr.mxu0 0.0
    %2899 = vmatpush1.msra.mxu0 0.0
    %2900 = vmatprep.subr.mxu0 0.0
    %2901 = vmatpush1.msra.mxu0 0.0
    %2902 = vmatprep.subr.mxu0 0.0
    %2903 = vmatpush1.msra.mxu0 0.0
    %2904 = vmatprep.subr.mxu0 0.0
    %2905 = vmatpush1.msra.mxu0 0.0
    %2906 = vmatprep.subr.mxu0 0.0
    %2907 = vmatpush1.msra.mxu0 0.0
    %2908 = vmatprep.subr.mxu0 0.0
    %2909 = vmatpush1.msra.mxu0 0.0
    %2910 = vmatprep.subr.mxu0 0.0
    %2911 = vmatpush1.msra.mxu0 0.0
    %2912 = vmatprep.subr.mxu0 0.0
    %2913 = vmatpush1.msra.mxu0 0.0
    %2914 = vmatprep.subr.mxu0 0.0
    %2915 = vmatpush1.msra.mxu0 0.0
    %2916 = vmatprep.subr.mxu0 0.0
    %2917 = vmatpush1.msra.mxu0 0.0
    %2918 = vmatprep.subr.mxu0 0.0
    %2919 = vmatpush1.msra.mxu0 0.0
    %2920 = vmatprep.subr.mxu0 0.0
    %2921 = vmatpush1.msra.mxu0 0.0
    %2922 = vmatprep.subr.mxu0 0.0
    %2923 = vmatpush1.msra.mxu0 0.0
    %2924 = vmatprep.subr.mxu0 0.0
    %2925 = vmatpush1.msra.mxu0 0.0
    %2926 = vmatprep.subr.mxu0 0.0
    %2927 = vmatpush1.msra.mxu0 0.0
    %2928 = vmatprep.subr.mxu0 0.0
    %2929 = vmatpush1.msra.mxu0 0.0
    %2930 = vmatprep.subr.mxu0 0.0
    %2931 = vmatpush1.msra.mxu0 0.0
    %2932 = vmatprep.subr.mxu0 0.0
    %2933 = vmatpush1.msra.mxu0 0.0
    %2934 = vmatprep.mubr.f32.mxu0 0.0
    %2935 = vmatmul.mubr.f32.gmra.mrb[0].mxu0 %v2865
    %v2936 = vpop.f32.mrb[0].mxu0
    %v2937 = vadd.f32 %v2856, %v2936
    %v2938 = vpop.f32.mrb[0].mxu0
    %2939 = vmatprep.mubr.f32.mxu0 0.0
    %2940 = vmatmul.mubr.f32.gmra.mrb[0].mxu0 %v2868
    %v2941 = vpop.f32.mrb[0].mxu0
    %v2942 = vadd.f32 %v2861, %v2941
    %v2943 = vpop.f32.mrb[0].mxu0
    %2944 = vdwg.mxu0
    %2946 = vset.pattern.permute.xlu0 0
    %2947 = vperm.xlu0 %2946, %v87
    %v2948 = vpop.permute.xlu0 %2947
    %2951 = vset.pattern.permute.xlu0 0
    %2952 = vperm.xlu0 %2951, %v88
    %v2953 = vpop.permute.xlu0 %2952
    %v2955 = vmul.f32 %v2767, %v2948
    %v2956 = vmul.f32 %v2768, %v2953
    %v2957 = vld [vmem:[%s10] sm:$0xff]
    %v2958 = vld [vmem:[%s10 + $0x8] sm:$0xff]
    %v2959 = vld [vmem:[%s10 + $0x10] sm:$0xff]
    %v2960 = vld [vmem:[%s10 + $0x18] sm:$0xff]
    %v2961 = vld [vmem:[%s10 + $0x20] sm:$0xff]
    %v2962 = vld [vmem:[%s10 + $0x28] sm:$0xff]
    %v2963 = vld [vmem:[%s10 + $0x30] sm:$0xff]
    %v2964 = vld [vmem:[%s10 + $0x38] sm:$0xff]
    %v2965 = vld [vmem:[%s10 + $0x40] sm:$0xff]
    %v2966 = vld [vmem:[%s10 + $0x48] sm:$0xff]
    %v2967 = vld [vmem:[%s10 + $0x50] sm:$0xff]
    %v2968 = vld [vmem:[%s10 + $0x58] sm:$0xff]
    %v2969 = vld [vmem:[%s10 + $0x60] sm:$0xff]
    %v2970 = vld [vmem:[%s10 + $0x68] sm:$0xff]
    %v2971 = vld [vmem:[%s10 + $0x70] sm:$0xff]
    %v2972 = vld [vmem:[%s10 + $0x78] sm:$0xff]
    %2973 = vmatprep.subr.mxu0 0.0
    %2974 = vmatpush1.msra.mxu0 %v2957
    %2975 = vmatprep.subr.mxu0 0.0
    %2976 = vmatpush1.msra.mxu0 %v2958
    %2977 = vmatprep.subr.mxu0 0.0
    %2978 = vmatpush1.msra.mxu0 %v2959
    %2979 = vmatprep.subr.mxu0 0.0
    %2980 = vmatpush1.msra.mxu0 %v2960
    %2981 = vmatprep.subr.mxu0 0.0
    %2982 = vmatpush1.msra.mxu0 %v2961
    %2983 = vmatprep.subr.mxu0 0.0
    %2984 = vmatpush1.msra.mxu0 %v2962
    %2985 = vmatprep.subr.mxu0 0.0
    %2986 = vmatpush1.msra.mxu0 %v2963
    %2987 = vmatprep.subr.mxu0 0.0
    %2988 = vmatpush1.msra.mxu0 %v2964
    %2989 = vmatprep.subr.mxu0 0.0
    %2990 = vmatpush1.msra.mxu0 %v2965
    %2991 = vmatprep.subr.mxu0 0.0
    %2992 = vmatpush1.msra.mxu0 %v2966
    %2993 = vmatprep.subr.mxu0 0.0
    %2994 = vmatpush1.msra.mxu0 %v2967
    %2995 = vmatprep.subr.mxu0 0.0
    %2996 = vmatpush1.msra.mxu0 %v2968
    %2997 = vmatprep.subr.mxu0 0.0
    %2998 = vmatpush1.msra.mxu0 %v2969
    %2999 = vmatprep.subr.mxu0 0.0
    %3000 = vmatpush1.msra.mxu0 %v2970
    %3001 = vmatprep.subr.mxu0 0.0
    %3002 = vmatpush1.msra.mxu0 %v2971
    %3003 = vmatprep.subr.mxu0 0.0
    %3004 = vmatpush1.msra.mxu0 %v2972
    %3005 = vmatprep.subr.mxu0 0.0
    %3006 = vmatpush1.msra.mxu0 0.0
    %3007 = vmatprep.subr.mxu0 0.0
    %3008 = vmatpush1.msra.mxu0 0.0
    %3009 = vmatprep.subr.mxu0 0.0
    %3010 = vmatpush1.msra.mxu0 0.0
    %3011 = vmatprep.subr.mxu0 0.0
    %3012 = vmatpush1.msra.mxu0 0.0
    %3013 = vmatprep.subr.mxu0 0.0
    %3014 = vmatpush1.msra.mxu0 0.0
    %3015 = vmatprep.subr.mxu0 0.0
    %3016 = vmatpush1.msra.mxu0 0.0
    %3017 = vmatprep.subr.mxu0 0.0
    %3018 = vmatpush1.msra.mxu0 0.0
    %3019 = vmatprep.subr.mxu0 0.0
    %3020 = vmatpush1.msra.mxu0 0.0
    %3021 = vmatprep.subr.mxu0 0.0
    %3022 = vmatpush1.msra.mxu0 0.0
    %3023 = vmatprep.subr.mxu0 0.0
    %3024 = vmatpush1.msra.mxu0 0.0
    %3025 = vmatprep.subr.mxu0 0.0
    %3026 = vmatpush1.msra.mxu0 0.0
    %3027 = vmatprep.subr.mxu0 0.0
    %3028 = vmatpush1.msra.mxu0 0.0
    %3029 = vmatprep.subr.mxu0 0.0
    %3030 = vmatpush1.msra.mxu0 0.0
    %3031 = vmatprep.subr.mxu0 0.0
    %3032 = vmatpush1.msra.mxu0 0.0
    %3033 = vmatprep.subr.mxu0 0.0
    %3034 = vmatpush1.msra.mxu0 0.0
    %3035 = vmatprep.subr.mxu0 0.0
    %3036 = vmatpush1.msra.mxu0 0.0
    %3037 = vmatprep.mubr.f32.mxu0 0.0
    %3038 = vmatmul.mubr.f32.gmra.mrb[0].mxu0 %v2955
    %v3039 = vpop.f32.mrb[0].mxu0
    %v3040 = vadd.f32 0.0, %v3039
    %v3041 = vpop.f32.mrb[0].mxu0
    %3042 = vmatprep.mubr.f32.mxu0 0.0
    %3043 = vmatmul.mubr.f32.gmra.mrb[0].mxu0 %v2956
    %v3044 = vpop.f32.mrb[0].mxu0
    %v3045 = vadd.f32 0.0, %v3044
    %v3046 = vpop.f32.mrb[0].mxu0
    %3047 = vdwg.mxu0
    %v3048 = vadd.f32 %v2937, %v3040
    %v3049 = vadd.f32 %v2942, %v3045
    %3051 = vset.pattern.permute.xlu0 0
    %3052 = vperm.xlu0 %3051, %v91
    %v3053 = vpop.permute.xlu0 %3052
    %3056 = vset.pattern.permute.xlu0 0
    %3057 = vperm.xlu0 %3056, %v92
    %v3058 = vpop.permute.xlu0 %3057
    %v3060 = vmul.f32 %v2767, %v3053
    %v3061 = vmul.f32 %v2768, %v3058
    %v3062 = vld [vmem:[%s11] sm:$0xff]
    %v3063 = vld [vmem:[%s11 + $0x8] sm:$0xff]
    %v3064 = vld [vmem:[%s11 + $0x10] sm:$0xff]
    %v3065 = vld [vmem:[%s11 + $0x18] sm:$0xff]
    %v3066 = vld [vmem:[%s11 + $0x20] sm:$0xff]
    %v3067 = vld [vmem:[%s11 + $0x28] sm:$0xff]
    %v3068 = vld [vmem:[%s11 + $0x30] sm:$0xff]
    %v3069 = vld [vmem:[%s11 + $0x38] sm:$0xff]
    %v3070 = vld [vmem:[%s11 + $0x40] sm:$0xff]
    %v3071 = vld [vmem:[%s11 + $0x48] sm:$0xff]
    %v3072 = vld [vmem:[%s11 + $0x50] sm:$0xff]
    %v3073 = vld [vmem:[%s11 + $0x58] sm:$0xff]
    %v3074 = vld [vmem:[%s11 + $0x60] sm:$0xff]
    %v3075 = vld [vmem:[%s11 + $0x68] sm:$0xff]
    %v3076 = vld [vmem:[%s11 + $0x70] sm:$0xff]
    %v3077 = vld [vmem:[%s11 + $0x78] sm:$0xff]
    %3078 = vmatprep.subr.mxu0 0.0
    %3079 = vmatpush1.msra.mxu0 %v3062
    %3080 = vmatprep.subr.mxu0 0.0
    %3081 = vmatpush1.msra.mxu0 %v3063
    %3082 = vmatprep.subr.mxu0 0.0
    %3083 = vmatpush1.msra.mxu0 %v3064
    %3084 = vmatprep.subr.mxu0 0.0
    %3085 = vmatpush1.msra.mxu0 %v3065
    %3086 = vmatprep.subr.mxu0 0.0
    %3087 = vmatpush1.msra.mxu0 %v3066
    %3088 = vmatprep.subr.mxu0 0.0
    %3089 = vmatpush1.msra.mxu0 %v3067
    %3090 = vmatprep.subr.mxu0 0.0
    %3091 = vmatpush1.msra.mxu0 %v3068
    %3092 = vmatprep.subr.mxu0 0.0
    %3093 = vmatpush1.msra.mxu0 %v3069
    %3094 = vmatprep.subr.mxu0 0.0
    %3095 = vmatpush1.msra.mxu0 %v3070
    %3096 = vmatprep.subr.mxu0 0.0
    %3097 = vmatpush1.msra.mxu0 %v3071
    %3098 = vmatprep.subr.mxu0 0.0
    %3099 = vmatpush1.msra.mxu0 %v3072
    %3100 = vmatprep.subr.mxu0 0.0
    %3101 = vmatpush1.msra.mxu0 %v3073
    %3102 = vmatprep.subr.mxu0 0.0
    %3103 = vmatpush1.msra.mxu0 %v3074
    %3104 = vmatprep.subr.mxu0 0.0
    %3105 = vmatpush1.msra.mxu0 %v3075
    %3106 = vmatprep.subr.mxu0 0.0
    %3107 = vmatpush1.msra.mxu0 %v3076
    %3108 = vmatprep.subr.mxu0 0.0
    %3109 = vmatpush1.msra.mxu0 %v3077
    %3110 = vmatprep.subr.mxu0 0.0
    %3111 = vmatpush1.msra.mxu0 0.0
    %3112 = vmatprep.subr.mxu0 0.0
    %3113 = vmatpush1.msra.mxu0 0.0
    %3114 = vmatprep.subr.mxu0 0.0
    %3115 = vmatpush1.msra.mxu0 0.0
    %3116 = vmatprep.subr.mxu0 0.0
    %3117 = vmatpush1.msra.mxu0 0.0
    %3118 = vmatprep.subr.mxu0 0.0
    %3119 = vmatpush1.msra.mxu0 0.0
    %3120 = vmatprep.subr.mxu0 0.0
    %3121 = vmatpush1.msra.mxu0 0.0
    %3122 = vmatprep.subr.mxu0 0.0
    %3123 = vmatpush1.msra.mxu0 0.0
    %3124 = vmatprep.subr.mxu0 0.0
    %3125 = vmatpush1.msra.mxu0 0.0
    %3126 = vmatprep.subr.mxu0 0.0
    %3127 = vmatpush1.msra.mxu0 0.0
    %3128 = vmatprep.subr.mxu0 0.0
    %3129 = vmatpush1.msra.mxu0 0.0
    %3130 = vmatprep.subr.mxu0 0.0
    %3131 = vmatpush1.msra.mxu0 0.0
    %3132 = vmatprep.subr.mxu0 0.0
    %3133 = vmatpush1.msra.mxu0 0.0
    %3134 = vmatprep.subr.mxu0 0.0
    %3135 = vmatpush1.msra.mxu0 0.0
    %3136 = vmatprep.subr.mxu0 0.0
    %3137 = vmatpush1.msra.mxu0 0.0
    %3138 = vmatprep.subr.mxu0 0.0
    %3139 = vmatpush1.msra.mxu0 0.0
    %3140 = vmatprep.subr.mxu0 0.0
    %3141 = vmatpush1.msra.mxu0 0.0
    %3142 = vmatprep.mubr.f32.mxu0 0.0
    %3143 = vmatmul.mubr.f32.gmra.mrb[0].mxu0 %v3060
    %v3144 = vpop.f32.mrb[0].mxu0
    %v3145 = vadd.f32 0.0, %v3144
    %v3146 = vpop.f32.mrb[0].mxu0
    %3147 = vmatprep.mubr.f32.mxu0 0.0
    %3148 = vmatmul.mubr.f32.gmra.mrb[0].mxu0 %v3061
    %v3149 = vpop.f32.mrb[0].mxu0
    %v3150 = vadd.f32 0.0, %v3149
    %v3151 = vpop.f32.mrb[0].mxu0
    %3152 = vdwg.mxu0
    %v3153 = vadd.f32 %v3048, %v3145
    %v3154 = vadd.f32 %v3049, %v3150
    %v3155 = vld [vmem:[%s12] sm:$0x1]
    %v3157 = vlaneseq
    %v3158 = vshrl.u32 %v3157, 7
    %v3159 = vsub.s32 0, %v3158
    %v3160 = vrot.slane %v3155, %v3159
    %v3162 = vadd.f32 %v3153, %v3160
    %v3163 = vadd.f32 %v3154, %v3160
    %v3164 = vld [vmem:[%s13] sm:$0xff]
    %v3165 = vld [vmem:[%s13 + $0x8] sm:$0xff]
    %v3166 = vld [vmem:[%s13 + $0x10] sm:$0xff]
    %v3167 = vld [vmem:[%s13 + $0x18] sm:$0xff]
    %v3168 = vld [vmem:[%s14] sm:$0x1]
    %v3170 = vlaneseq
    %v3171 = vshrl.u32 %v3170, 7
    %v3172 = vsub.s32 0, %v3171
    %v3173 = vrot.slane %v3168, %v3172
    %v3176 = vsel %vm535, %v3162, 0
    %v3179 = vsel %vm535, %v3163, 0
    %3181 = vmatprep.subr.mxu0 0.0
    %3182 = vmatpush1.msra.mxu0 %v3164
    %3183 = vmatprep.subr.mxu0 0.0
    %3184 = vmatpush1.msra.mxu0 %v3165
    %3185 = vmatprep.subr.mxu0 0.0
    %3186 = vmatpush1.msra.mxu0 %v3166
    %3187 = vmatprep.subr.mxu0 0.0
    %3188 = vmatpush1.msra.mxu0 %v3167
    %3189 = vmatprep.subr.mxu0 0.0
    %3190 = vmatpush1.msra.mxu0 0.0
    %3191 = vmatprep.subr.mxu0 0.0
    %3192 = vmatpush1.msra.mxu0 0.0
    %3193 = vmatprep.subr.mxu0 0.0
    %3194 = vmatpush1.msra.mxu0 0.0
    %3195 = vmatprep.subr.mxu0 0.0
    %3196 = vmatpush1.msra.mxu0 0.0
    %3197 = vmatprep.subr.mxu0 0.0
    %3198 = vmatpush1.msra.mxu0 0.0
    %3199 = vmatprep.subr.mxu0 0.0
    %3200 = vmatpush1.msra.mxu0 0.0
    %3201 = vmatprep.subr.mxu0 0.0
    %3202 = vmatpush1.msra.mxu0 0.0
    %3203 = vmatprep.subr.mxu0 0.0
    %3204 = vmatpush1.msra.mxu0 0.0
    %3205 = vmatprep.subr.mxu0 0.0
    %3206 = vmatpush1.msra.mxu0 0.0
    %3207 = vmatprep.subr.mxu0 0.0
    %3208 = vmatpush1.msra.mxu0 0.0
    %3209 = vmatprep.subr.mxu0 0.0
    %3210 = vmatpush1.msra.mxu0 0.0
    %3211 = vmatprep.subr.mxu0 0.0
    %3212 = vmatpush1.msra.mxu0 0.0
    %3213 = vmatprep.subr.mxu0 0.0
    %3214 = vmatpush1.msra.mxu0 0.0
    %3215 = vmatprep.subr.mxu0 0.0
    %3216 = vmatpush1.msra.mxu0 0.0
    %3217 = vmatprep.subr.mxu0 0.0
    %3218 = vmatpush1.msra.mxu0 0.0
    %3219 = vmatprep.subr.mxu0 0.0
    %3220 = vmatpush1.msra.mxu0 0.0
    %3221 = vmatprep.subr.mxu0 0.0
    %3222 = vmatpush1.msra.mxu0 0.0
    %3223 = vmatprep.subr.mxu0 0.0
    %3224 = vmatpush1.msra.mxu0 0.0
    %3225 = vmatprep.subr.mxu0 0.0
    %3226 = vmatpush1.msra.mxu0 0.0
    %3227 = vmatprep.subr.mxu0 0.0
    %3228 = vmatpush1.msra.mxu0 0.0
    %3229 = vmatprep.subr.mxu0 0.0
    %3230 = vmatpush1.msra.mxu0 0.0
    %3231 = vmatprep.subr.mxu0 0.0
    %3232 = vmatpush1.msra.mxu0 0.0
    %3233 = vmatprep.subr.mxu0 0.0
    %3234 = vmatpush1.msra.mxu0 0.0
    %3235 = vmatprep.subr.mxu0 0.0
    %3236 = vmatpush1.msra.mxu0 0.0
    %3237 = vmatprep.subr.mxu0 0.0
    %3238 = vmatpush1.msra.mxu0 0.0
    %3239 = vmatprep.subr.mxu0 0.0
    %3240 = vmatpush1.msra.mxu0 0.0
    %3241 = vmatprep.subr.mxu0 0.0
    %3242 = vmatpush1.msra.mxu0 0.0
    %3243 = vmatprep.subr.mxu0 0.0
    %3244 = vmatpush1.msra.mxu0 0.0
    %3245 = vmatprep.mubr.f32.mxu0 0.0
    %3246 = vmatmul.mubr.f32.gmra.mrb[0].mxu0 %v3176
    %v3247 = vpop.f32.mrb[0].mxu0
    %v3248 = vadd.f32 %v3173, %v3247
    %v3249 = vpop.f32.mrb[0].mxu0
    %3250 = vmatprep.mubr.f32.mxu0 0.0
    %3251 = vmatmul.mubr.f32.gmra.mrb[0].mxu0 %v3179
    %v3252 = vpop.f32.mrb[0].mxu0
    %v3253 = vadd.f32 %v3173, %v3252
    %v3254 = vpop.f32.mrb[0].mxu0
    %3255 = vdwg.mxu0
    %v3256 = vld [vmem:[%s15] sm:$0x1]
    %v3258 = vlaneseq
    %v3259 = vshrl.u32 %v3258, 7
    %v3260 = vsub.s32 0, %v3259
    %v3261 = vrot.slane %v3256, %v3260
    %v3263 = vmul.f32 %v3248, %v3261
    %v3264 = vmul.f32 %v3253, %v3261
    %v3265 = vld [vmem:[%s16] sm:$0x1]
    %v3267 = vlaneseq
    %v3268 = vshrl.u32 %v3267, 7
    %v3269 = vsub.s32 0, %v3268
    %v3270 = vrot.slane %v3265, %v3269
    %v3272 = vadd.f32 %v3263, %v3270
    %v3273 = vadd.f32 %v3264, %v3270
    %v3274 = vmax.f32 %v3272, 0.0
    %v3275 = vmax.f32 %v3273, 0.0
    %v3276 = vadd.f32 %v67, %v3274
    %v3277 = vadd.f32 %v68, %v3275
    %v3278 = vpack.c.bf16 %v3277, %v3276
    %3279 = vmatprep.subr.bf16.mxu0 0
    %3280 = vmatpush1.bf16.msra.mxu0 %v3278
    %3281 = vmatprep.subr.bf16.mxu0 0
    %3282 = vmatpush1.bf16.msra.mxu0 0
    %3283 = vmatprep.subr.bf16.mxu0 0
    %3284 = vmatpush1.bf16.msra.mxu0 0
    %3285 = vmatprep.subr.bf16.mxu0 0
    %3286 = vmatpush1.bf16.msra.mxu0 0
    %3287 = vmatprep.subr.bf16.mxu0 0
    %3288 = vmatpush1.bf16.msra.mxu0 0
    %3289 = vmatprep.subr.bf16.mxu0 0
    %3290 = vmatpush1.bf16.msra.mxu0 0
    %3291 = vmatprep.subr.bf16.mxu0 0
    %3292 = vmatpush1.bf16.msra.mxu0 0
    %3293 = vmatprep.subr.bf16.mxu0 0
    %3294 = vmatpush1.bf16.msra.mxu0 0
    %3295 = vmatprep.subr.bf16.mxu0 0
    %3296 = vmatpush1.bf16.msra.mxu0 0
    %3297 = vmatprep.subr.bf16.mxu0 0
    %3298 = vmatpush1.bf16.msra.mxu0 0
    %3299 = vmatprep.subr.bf16.mxu0 0
    %3300 = vmatpush1.bf16.msra.mxu0 0
    %3301 = vmatprep.subr.bf16.mxu0 0
    %3302 = vmatpush1.bf16.msra.mxu0 0
    %3303 = vmatprep.subr.bf16.mxu0 0
    %3304 = vmatpush1.bf16.msra.mxu0 0
    %3305 = vmatprep.subr.bf16.mxu0 0
    %3306 = vmatpush1.bf16.msra.mxu0 0
    %3307 = vmatprep.subr.bf16.mxu0 0
    %3308 = vmatpush1.bf16.msra.mxu0 0
    %3309 = vmatprep.subr.bf16.mxu0 0
    %3310 = vmatpush1.bf16.msra.mxu0 0
    %3311 = vmatprep.mubr.bf16.mxu0 0
    %3312 = vmatmul.mubr.bf16.gmra.mrb[0].mxu0 %v420
    %v3313 = vpop.f32.mrb[0].mxu0
    %v3314 = vadd.f32 0.0, %v3313
    %v3315 = vpop.f32.mrb[0].mxu0
    %v3316 = vpop.f32.mrb[0].mxu0
    %v3317 = vadd.f32 0.0, %v3316
    %v3318 = vpop.f32.mrb[0].mxu0
    %3319 = vmatprep.mubr.bf16.mxu0 0
    %3320 = vmatmul.mubr.bf16.gmra.mrb[0].mxu0 %v423
    %v3321 = vpop.f32.mrb[0].mxu0
    %v3322 = vadd.f32 0.0, %v3321
    %v3323 = vpop.f32.mrb[0].mxu0
    %v3324 = vpop.f32.mrb[0].mxu0
    %v3325 = vadd.f32 0.0, %v3324
    %v3326 = vpop.f32.mrb[0].mxu0
    %3327 = vdwg.mxu0
    %3328 = vmatprep.subr.bf16.mxu0 0
    %3329 = vmatpush1.bf16.msra.mxu0 %v3278
    %3330 = vmatprep.subr.bf16.mxu0 0
    %3331 = vmatpush1.bf16.msra.mxu0 0
    %3332 = vmatprep.subr.bf16.mxu0 0
    %3333 = vmatpush1.bf16.msra.mxu0 0
    %3334 = vmatprep.subr.bf16.mxu0 0
    %3335 = vmatpush1.bf16.msra.mxu0 0
    %3336 = vmatprep.subr.bf16.mxu0 0
    %3337 = vmatpush1.bf16.msra.mxu0 0
    %3338 = vmatprep.subr.bf16.mxu0 0
    %3339 = vmatpush1.bf16.msra.mxu0 0
    %3340 = vmatprep.subr.bf16.mxu0 0
    %3341 = vmatpush1.bf16.msra.mxu0 0
    %3342 = vmatprep.subr.bf16.mxu0 0
    %3343 = vmatpush1.bf16.msra.mxu0 0
    %3344 = vmatprep.subr.bf16.mxu0 0
    %3345 = vmatpush1.bf16.msra.mxu0 0
    %3346 = vmatprep.subr.bf16.mxu0 0
    %3347 = vmatpush1.bf16.msra.mxu0 0
    %3348 = vmatprep.subr.bf16.mxu0 0
    %3349 = vmatpush1.bf16.msra.mxu0 0
    %3350 = vmatprep.subr.bf16.mxu0 0
    %3351 = vmatpush1.bf16.msra.mxu0 0
    %3352 = vmatprep.subr.bf16.mxu0 0
    %3353 = vmatpush1.bf16.msra.mxu0 0
    %3354 = vmatprep.subr.bf16.mxu0 0
    %3355 = vmatpush1.bf16.msra.mxu0 0
    %3356 = vmatprep.subr.bf16.mxu0 0
    %3357 = vmatpush1.bf16.msra.mxu0 0
    %3358 = vmatprep.subr.bf16.mxu0 0
    %3359 = vmatpush1.bf16.msra.mxu0 0
    %3360 = vmatprep.mubr.bf16.mxu0 0
    %3361 = vmatmul.mubr.bf16.gmra.mrb[0].mxu0 %v474
    %v3362 = vpop.f32.mrb[0].mxu0
    %v3363 = vadd.f32 0.0, %v3362
    %v3364 = vpop.f32.mrb[0].mxu0
    %v3365 = vpop.f32.mrb[0].mxu0
    %v3366 = vadd.f32 0.0, %v3365
    %v3367 = vpop.f32.mrb[0].mxu0
    %3368 = vmatprep.mubr.bf16.mxu0 0
    %3369 = vmatmul.mubr.bf16.gmra.mrb[0].mxu0 %v476
    %v3370 = vpop.f32.mrb[0].mxu0
    %v3371 = vadd.f32 0.0, %v3370
    %v3372 = vpop.f32.mrb[0].mxu0
    %v3373 = vpop.f32.mrb[0].mxu0
    %v3374 = vadd.f32 0.0, %v3373
    %v3375 = vpop.f32.mrb[0].mxu0
    %3376 = vdwg.mxu0
    %s3377 = scalar_lea.vmem %s5, 32
    %v3378 = vld [vmem:[%s3377] sm:$0xff]
    %v3379 = vld [vmem:[%s3377 + $0x8] sm:$0xff]
    %v3380 = vld [vmem:[%s3377 + $0x10] sm:$0xff]
    %v3381 = vld [vmem:[%s3377 + $0x18] sm:$0xff]
    %s3382 = scalar_lea.vmem %s6, 32
    %v3383 = vld [vmem:[%s3382] sm:$0xff]
    %v3384 = vld [vmem:[%s3382 + $0x8] sm:$0xff]
    %v3385 = vld [vmem:[%s3382 + $0x10] sm:$0xff]
    %v3386 = vld [vmem:[%s3382 + $0x18] sm:$0xff]
    %v3388 = vsel %vm535, %v3314, 0
    %v3391 = vsel %vm535, %v3317, 0
    %v3394 = vsel %vm535, %v3322, 0
    %v3397 = vsel %vm535, %v3325, 0
    %3399 = vmatprep.subr.mxu0 0.0
    %3400 = vmatpush1.msra.mxu0 %v3383
    %3401 = vmatprep.subr.mxu0 0.0
    %3402 = vmatpush1.msra.mxu0 %v3384
    %3403 = vmatprep.subr.mxu0 0.0
    %3404 = vmatpush1.msra.mxu0 %v3385
    %3405 = vmatprep.subr.mxu0 0.0
    %3406 = vmatpush1.msra.mxu0 %v3386
    %3407 = vmatprep.subr.mxu0 0.0
    %3408 = vmatpush1.msra.mxu0 0.0
    %3409 = vmatprep.subr.mxu0 0.0
    %3410 = vmatpush1.msra.mxu0 0.0
    %3411 = vmatprep.subr.mxu0 0.0
    %3412 = vmatpush1.msra.mxu0 0.0
    %3413 = vmatprep.subr.mxu0 0.0
    %3414 = vmatpush1.msra.mxu0 0.0
    %3415 = vmatprep.subr.mxu0 0.0
    %3416 = vmatpush1.msra.mxu0 0.0
    %3417 = vmatprep.subr.mxu0 0.0
    %3418 = vmatpush1.msra.mxu0 0.0
    %3419 = vmatprep.subr.mxu0 0.0
    %3420 = vmatpush1.msra.mxu0 0.0
    %3421 = vmatprep.subr.mxu0 0.0
    %3422 = vmatpush1.msra.mxu0 0.0
    %3423 = vmatprep.subr.mxu0 0.0
    %3424 = vmatpush1.msra.mxu0 0.0
    %3425 = vmatprep.subr.mxu0 0.0
    %3426 = vmatpush1.msra.mxu0 0.0
    %3427 = vmatprep.subr.mxu0 0.0
    %3428 = vmatpush1.msra.mxu0 0.0
    %3429 = vmatprep.subr.mxu0 0.0
    %3430 = vmatpush1.msra.mxu0 0.0
    %3431 = vmatprep.subr.mxu0 0.0
    %3432 = vmatpush1.msra.mxu0 0.0
    %3433 = vmatprep.subr.mxu0 0.0
    %3434 = vmatpush1.msra.mxu0 0.0
    %3435 = vmatprep.subr.mxu0 0.0
    %3436 = vmatpush1.msra.mxu0 0.0
    %3437 = vmatprep.subr.mxu0 0.0
    %3438 = vmatpush1.msra.mxu0 0.0
    %3439 = vmatprep.subr.mxu0 0.0
    %3440 = vmatpush1.msra.mxu0 0.0
    %3441 = vmatprep.subr.mxu0 0.0
    %3442 = vmatpush1.msra.mxu0 0.0
    %3443 = vmatprep.subr.mxu0 0.0
    %3444 = vmatpush1.msra.mxu0 0.0
    %3445 = vmatprep.subr.mxu0 0.0
    %3446 = vmatpush1.msra.mxu0 0.0
    %3447 = vmatprep.subr.mxu0 0.0
    %3448 = vmatpush1.msra.mxu0 0.0
    %3449 = vmatprep.subr.mxu0 0.0
    %3450 = vmatpush1.msra.mxu0 0.0
    %3451 = vmatprep.subr.mxu0 0.0
    %3452 = vmatpush1.msra.mxu0 0.0
    %3453 = vmatprep.subr.mxu0 0.0
    %3454 = vmatpush1.msra.mxu0 0.0
    %3455 = vmatprep.subr.mxu0 0.0
    %3456 = vmatpush1.msra.mxu0 0.0
    %3457 = vmatprep.subr.mxu0 0.0
    %3458 = vmatpush1.msra.mxu0 0.0
    %3459 = vmatprep.subr.mxu0 0.0
    %3460 = vmatpush1.msra.mxu0 0.0
    %3461 = vmatprep.subr.mxu0 0.0
    %3462 = vmatpush1.msra.mxu0 0.0
    %3463 = vmatprep.mubr.f32.mxu0 0.0
    %3464 = vmatmul.mubr.f32.gmra.mrb[0].mxu0 %v3388
    %v3465 = vpop.f32.mrb[0].mxu0
    %v3466 = vadd.f32 0.0, %v3465
    %v3467 = vpop.f32.mrb[0].mxu0
    %3468 = vmatprep.mubr.f32.mxu0 0.0
    %3469 = vmatmul.mubr.f32.gmra.mrb[0].mxu0 %v3391
    %v3470 = vpop.f32.mrb[0].mxu0
    %v3471 = vadd.f32 0.0, %v3470
    %v3472 = vpop.f32.mrb[0].mxu0
    %3473 = vmatprep.mubr.f32.mxu0 0.0
    %3474 = vmatmul.mubr.f32.gmra.mrb[0].mxu0 %v3394
    %v3475 = vpop.f32.mrb[0].mxu0
    %v3476 = vadd.f32 0.0, %v3475
    %v3477 = vpop.f32.mrb[0].mxu0
    %3478 = vmatprep.mubr.f32.mxu0 0.0
    %3479 = vmatmul.mubr.f32.gmra.mrb[0].mxu0 %v3397
    %v3480 = vpop.f32.mrb[0].mxu0
    %v3481 = vadd.f32 0.0, %v3480
    %v3482 = vpop.f32.mrb[0].mxu0
    %3483 = vdwg.mxu0
    %v3485 = vsel %vm535, %v3363, 0
    %v3488 = vsel %vm535, %v3366, 0
    %v3491 = vsel %vm535, %v3371, 0
    %v3494 = vsel %vm535, %v3374, 0
    %3496 = vmatprep.subr.mxu0 0.0
    %3497 = vmatpush1.msra.mxu0 %v3378
    %3498 = vmatprep.subr.mxu0 0.0
    %3499 = vmatpush1.msra.mxu0 %v3379
    %3500 = vmatprep.subr.mxu0 0.0
    %3501 = vmatpush1.msra.mxu0 %v3380
    %3502 = vmatprep.subr.mxu0 0.0
    %3503 = vmatpush1.msra.mxu0 %v3381
    %3504 = vmatprep.subr.mxu0 0.0
    %3505 = vmatpush1.msra.mxu0 0.0
    %3506 = vmatprep.subr.mxu0 0.0
    %3507 = vmatpush1.msra.mxu0 0.0
    %3508 = vmatprep.subr.mxu0 0.0
    %3509 = vmatpush1.msra.mxu0 0.0
    %3510 = vmatprep.subr.mxu0 0.0
    %3511 = vmatpush1.msra.mxu0 0.0
    %3512 = vmatprep.subr.mxu0 0.0
    %3513 = vmatpush1.msra.mxu0 0.0
    %3514 = vmatprep.subr.mxu0 0.0
    %3515 = vmatpush1.msra.mxu0 0.0
    %3516 = vmatprep.subr.mxu0 0.0
    %3517 = vmatpush1.msra.mxu0 0.0
    %3518 = vmatprep.subr.mxu0 0.0
    %3519 = vmatpush1.msra.mxu0 0.0
    %3520 = vmatprep.subr.mxu0 0.0
    %3521 = vmatpush1.msra.mxu0 0.0
    %3522 = vmatprep.subr.mxu0 0.0
    %3523 = vmatpush1.msra.mxu0 0.0
    %3524 = vmatprep.subr.mxu0 0.0
    %3525 = vmatpush1.msra.mxu0 0.0
    %3526 = vmatprep.subr.mxu0 0.0
    %3527 = vmatpush1.msra.mxu0 0.0
    %3528 = vmatprep.subr.mxu0 0.0
    %3529 = vmatpush1.msra.mxu0 0.0
    %3530 = vmatprep.subr.mxu0 0.0
    %3531 = vmatpush1.msra.mxu0 0.0
    %3532 = vmatprep.subr.mxu0 0.0
    %3533 = vmatpush1.msra.mxu0 0.0
    %3534 = vmatprep.subr.mxu0 0.0
    %3535 = vmatpush1.msra.mxu0 0.0
    %3536 = vmatprep.subr.mxu0 0.0
    %3537 = vmatpush1.msra.mxu0 0.0
    %3538 = vmatprep.subr.mxu0 0.0
    %3539 = vmatpush1.msra.mxu0 0.0
    %3540 = vmatprep.subr.mxu0 0.0
    %3541 = vmatpush1.msra.mxu0 0.0
    %3542 = vmatprep.subr.mxu0 0.0
    %3543 = vmatpush1.msra.mxu0 0.0
    %3544 = vmatprep.subr.mxu0 0.0
    %3545 = vmatpush1.msra.mxu0 0.0
    %3546 = vmatprep.subr.mxu0 0.0
    %3547 = vmatpush1.msra.mxu0 0.0
    %3548 = vmatprep.subr.mxu0 0.0
    %3549 = vmatpush1.msra.mxu0 0.0
    %3550 = vmatprep.subr.mxu0 0.0
    %3551 = vmatpush1.msra.mxu0 0.0
    %3552 = vmatprep.subr.mxu0 0.0
    %3553 = vmatpush1.msra.mxu0 0.0
    %3554 = vmatprep.subr.mxu0 0.0
    %3555 = vmatpush1.msra.mxu0 0.0
    %3556 = vmatprep.subr.mxu0 0.0
    %3557 = vmatpush1.msra.mxu0 0.0
    %3558 = vmatprep.subr.mxu0 0.0
    %3559 = vmatpush1.msra.mxu0 0.0
    %3560 = vmatprep.mubr.f32.mxu0 0.0
    %3561 = vmatmul.mubr.f32.gmra.mrb[0].mxu0 %v3485
    %v3562 = vpop.f32.mrb[0].mxu0
    %v3563 = vadd.f32 %v3466, %v3562
    %v3564 = vpop.f32.mrb[0].mxu0
    %3565 = vmatprep.mubr.f32.mxu0 0.0
    %3566 = vmatmul.mubr.f32.gmra.mrb[0].mxu0 %v3488
    %v3567 = vpop.f32.mrb[0].mxu0
    %v3568 = vadd.f32 %v3471, %v3567
    %v3569 = vpop.f32.mrb[0].mxu0
    %3570 = vmatprep.mubr.f32.mxu0 0.0
    %3571 = vmatmul.mubr.f32.gmra.mrb[0].mxu0 %v3491
    %v3572 = vpop.f32.mrb[0].mxu0
    %v3573 = vadd.f32 %v3476, %v3572
    %v3574 = vpop.f32.mrb[0].mxu0
    %3575 = vmatprep.mubr.f32.mxu0 0.0
    %3576 = vmatmul.mubr.f32.gmra.mrb[0].mxu0 %v3494
    %v3577 = vpop.f32.mrb[0].mxu0
    %v3578 = vadd.f32 %v3481, %v3577
    %v3579 = vpop.f32.mrb[0].mxu0
    %3580 = vdwg.mxu0
    %s3581 = scalar_lea.vmem %s7, 1
    %v3582 = vld [vmem:[%s3581] sm:$0x1]
    %v3584 = vlaneseq
    %v3585 = vshrl.u32 %v3584, 7
    %v3586 = vsub.s32 0, %v3585
    %v3587 = vrot.slane %v3582, %v3586
    %v3589 = vadd.f32 %v3563, %v3587
    %v3590 = vadd.f32 %v3568, %v3587
    %v3591 = vadd.f32 %v3573, %v3587
    %v3592 = vadd.f32 %v3578, %v3587
    %3593 = vmatprep.subr.mxu0 0.0
    %3594 = vmatpush1.msra.mxu0 %v3589
    %3595 = vmatprep.subr.mxu0 0.0
    %3596 = vmatpush1.msra.mxu0 %v3590
    %3597 = vmatprep.subr.mxu0 0.0
    %3598 = vmatpush1.msra.mxu0 %v3591
    %3599 = vmatprep.subr.mxu0 0.0
    %3600 = vmatpush1.msra.mxu0 %v3592
    %3601 = vmatprep.subr.mxu0 0.0
    %3602 = vmatpush1.msra.mxu0 0.0
    %3603 = vmatprep.subr.mxu0 0.0
    %3604 = vmatpush1.msra.mxu0 0.0
    %3605 = vmatprep.subr.mxu0 0.0
    %3606 = vmatpush1.msra.mxu0 0.0
    %3607 = vmatprep.subr.mxu0 0.0
    %3608 = vmatpush1.msra.mxu0 0.0
    %3609 = vmatprep.subr.mxu0 0.0
    %3610 = vmatpush1.msra.mxu0 0.0
    %3611 = vmatprep.subr.mxu0 0.0
    %3612 = vmatpush1.msra.mxu0 0.0
    %3613 = vmatprep.subr.mxu0 0.0
    %3614 = vmatpush1.msra.mxu0 0.0
    %3615 = vmatprep.subr.mxu0 0.0
    %3616 = vmatpush1.msra.mxu0 0.0
    %3617 = vmatprep.subr.mxu0 0.0
    %3618 = vmatpush1.msra.mxu0 0.0
    %3619 = vmatprep.subr.mxu0 0.0
    %3620 = vmatpush1.msra.mxu0 0.0
    %3621 = vmatprep.subr.mxu0 0.0
    %3622 = vmatpush1.msra.mxu0 0.0
    %3623 = vmatprep.subr.mxu0 0.0
    %3624 = vmatpush1.msra.mxu0 0.0
    %3625 = vmatprep.subr.mxu0 0.0
    %3626 = vmatpush1.msra.mxu0 0.0
    %3627 = vmatprep.subr.mxu0 0.0
    %3628 = vmatpush1.msra.mxu0 0.0
    %3629 = vmatprep.subr.mxu0 0.0
    %3630 = vmatpush1.msra.mxu0 0.0
    %3631 = vmatprep.subr.mxu0 0.0
    %3632 = vmatpush1.msra.mxu0 0.0
    %3633 = vmatprep.subr.mxu0 0.0
    %3634 = vmatpush1.msra.mxu0 0.0
    %3635 = vmatprep.subr.mxu0 0.0
    %3636 = vmatpush1.msra.mxu0 0.0
    %3637 = vmatprep.subr.mxu0 0.0
    %3638 = vmatpush1.msra.mxu0 0.0
    %3639 = vmatprep.subr.mxu0 0.0
    %3640 = vmatpush1.msra.mxu0 0.0
    %3641 = vmatprep.subr.mxu0 0.0
    %3642 = vmatpush1.msra.mxu0 0.0
    %3643 = vmatprep.subr.mxu0 0.0
    %3644 = vmatpush1.msra.mxu0 0.0
    %3645 = vmatprep.subr.mxu0 0.0
    %3646 = vmatpush1.msra.mxu0 0.0
    %3647 = vmatprep.subr.mxu0 0.0
    %3648 = vmatpush1.msra.mxu0 0.0
    %3649 = vmatprep.subr.mxu0 0.0
    %3650 = vmatpush1.msra.mxu0 0.0
    %3651 = vmatprep.subr.mxu0 0.0
    %3652 = vmatpush1.msra.mxu0 0.0
    %3653 = vmatprep.subr.mxu0 0.0
    %3654 = vmatpush1.msra.mxu0 0.0
    %3655 = vmatprep.subr.mxu0 0.0
    %3656 = vmatpush1.msra.mxu0 0.0
    %3657 = vmatprep.mubr.f32.mxu0 0.0
    %3658 = vmatmul.mubr.f32.gmra.mrb[0].mxu0 %v742
    %v3659 = vpop.f32.mrb[0].mxu0
    %v3660 = vadd.f32 0.0, %v3659
    %v3661 = vpop.f32.mrb[0].mxu0
    %3662 = vmatprep.mubr.f32.mxu0 0.0
    %3663 = vmatmul.mubr.f32.gmra.mrb[0].mxu0 %v745
    %v3664 = vpop.f32.mrb[0].mxu0
    %v3665 = vadd.f32 0.0, %v3664
    %v3666 = vpop.f32.mrb[0].mxu0
    %3667 = vdwg.mxu0
    %v3668 = vmul.f32 %v3589, %v3589
    %v3669 = vmul.f32 %v3590, %v3590
    %v3670 = vmul.f32 %v3591, %v3591
    %v3671 = vmul.f32 %v3592, %v3592
    %3672 = vmatprep.subr.mxu0 0.0
    %3673 = vmatpush1.msra.mxu0 %v3668
    %3674 = vmatprep.subr.mxu0 0.0
    %3675 = vmatpush1.msra.mxu0 %v3669
    %3676 = vmatprep.subr.mxu0 0.0
    %3677 = vmatpush1.msra.mxu0 %v3670
    %3678 = vmatprep.subr.mxu0 0.0
    %3679 = vmatpush1.msra.mxu0 %v3671
    %3680 = vmatprep.subr.mxu0 0.0
    %3681 = vmatpush1.msra.mxu0 0.0
    %3682 = vmatprep.subr.mxu0 0.0
    %3683 = vmatpush1.msra.mxu0 0.0
    %3684 = vmatprep.subr.mxu0 0.0
    %3685 = vmatpush1.msra.mxu0 0.0
    %3686 = vmatprep.subr.mxu0 0.0
    %3687 = vmatpush1.msra.mxu0 0.0
    %3688 = vmatprep.subr.mxu0 0.0
    %3689 = vmatpush1.msra.mxu0 0.0
    %3690 = vmatprep.subr.mxu0 0.0
    %3691 = vmatpush1.msra.mxu0 0.0
    %3692 = vmatprep.subr.mxu0 0.0
    %3693 = vmatpush1.msra.mxu0 0.0
    %3694 = vmatprep.subr.mxu0 0.0
    %3695 = vmatpush1.msra.mxu0 0.0
    %3696 = vmatprep.subr.mxu0 0.0
    %3697 = vmatpush1.msra.mxu0 0.0
    %3698 = vmatprep.subr.mxu0 0.0
    %3699 = vmatpush1.msra.mxu0 0.0
    %3700 = vmatprep.subr.mxu0 0.0
    %3701 = vmatpush1.msra.mxu0 0.0
    %3702 = vmatprep.subr.mxu0 0.0
    %3703 = vmatpush1.msra.mxu0 0.0
    %3704 = vmatprep.subr.mxu0 0.0
    %3705 = vmatpush1.msra.mxu0 0.0
    %3706 = vmatprep.subr.mxu0 0.0
    %3707 = vmatpush1.msra.mxu0 0.0
    %3708 = vmatprep.subr.mxu0 0.0
    %3709 = vmatpush1.msra.mxu0 0.0
    %3710 = vmatprep.subr.mxu0 0.0
    %3711 = vmatpush1.msra.mxu0 0.0
    %3712 = vmatprep.subr.mxu0 0.0
    %3713 = vmatpush1.msra.mxu0 0.0
    %3714 = vmatprep.subr.mxu0 0.0
    %3715 = vmatpush1.msra.mxu0 0.0
    %3716 = vmatprep.subr.mxu0 0.0
    %3717 = vmatpush1.msra.mxu0 0.0
    %3718 = vmatprep.subr.mxu0 0.0
    %3719 = vmatpush1.msra.mxu0 0.0
    %3720 = vmatprep.subr.mxu0 0.0
    %3721 = vmatpush1.msra.mxu0 0.0
    %3722 = vmatprep.subr.mxu0 0.0
    %3723 = vmatpush1.msra.mxu0 0.0
    %3724 = vmatprep.subr.mxu0 0.0
    %3725 = vmatpush1.msra.mxu0 0.0
    %3726 = vmatprep.subr.mxu0 0.0
    %3727 = vmatpush1.msra.mxu0 0.0
    %3728 = vmatprep.subr.mxu0 0.0
    %3729 = vmatpush1.msra.mxu0 0.0
    %3730 = vmatprep.subr.mxu0 0.0
    %3731 = vmatpush1.msra.mxu0 0.0
    %3732 = vmatprep.subr.mxu0 0.0
    %3733 = vmatpush1.msra.mxu0 0.0
    %3734 = vmatprep.subr.mxu0 0.0
    %3735 = vmatpush1.msra.mxu0 0.0
    %3736 = vmatprep.mubr.f32.mxu0 0.0
    %3737 = vmatmul.mubr.f32.gmra.mrb[0].mxu0 %v742
    %v3738 = vpop.f32.mrb[0].mxu0
    %v3739 = vadd.f32 0.0, %v3738
    %v3740 = vpop.f32.mrb[0].mxu0
    %3741 = vmatprep.mubr.f32.mxu0 0.0
    %3742 = vmatmul.mubr.f32.gmra.mrb[0].mxu0 %v745
    %v3743 = vpop.f32.mrb[0].mxu0
    %v3744 = vadd.f32 0.0, %v3743
    %v3745 = vpop.f32.mrb[0].mxu0
    %3746 = vdwg.mxu0
    %v3747 = vmul.f32 %v3660, %v904
    %v3748 = vmul.f32 %v3665, %v909
    %v3749 = vmul.f32 %v3739, %v904
    %v3750 = vmul.f32 %v3744, %v909
    %v3751 = vmul.f32 %v3747, %v3747
    %v3752 = vmul.f32 %v3748, %v3748
    %v3753 = vsub.f32 %v3749, %v3751
    %v3754 = vsub.f32 %v3750, %v3752
    %v3755 = vmax.f32 %v3753, 0.0
    %v3756 = vmax.f32 %v3754, 0.0
    %v3757 = vadd.f32 %v3755, 1e-05
    %v3758 = vadd.f32 %v3756, 1e-05
    %v3759 = vrsqrt.pop %v3757
    %v3760 = vmul.f32 %v3757, %v3759
    %vm3761 = vcmp.eq.f32.partialorder %v3757, inf
    %v3762 = vsel %vm3761, %v3757, %v3760
    %vm3763 = vcmp.eq.f32.partialorder %v3757, 0.0
    %v3764 = vand.u32 %v3757, 2147483648
    %v3765 = vsel %vm3763, %v3764, %v3762
    %v3766 = vrsqrt.pop %v3758
    %v3767 = vmul.f32 %v3758, %v3766
    %vm3768 = vcmp.eq.f32.partialorder %v3758, inf
    %v3769 = vsel %vm3768, %v3758, %v3767
    %vm3770 = vcmp.eq.f32.partialorder %v3758, 0.0
    %v3771 = vand.u32 %v3758, 2147483648
    %v3772 = vsel %vm3770, %v3771, %v3769
    %v3777 = vcombine.high %v3589, %v3589
    %v3779 = vunpack.c.l.s4 1966171168
    %v3780 = vunpack.c.0.s8 %v3779
    %v3781 = vlaneseq
    %v3782 = vshrl.u32 %v3781, 7
    %v3783 = vsub.s32 %v3780, %v3782
    %v3784 = vrot.slane %v3589, %v3783
    %v3786 = vunpack.c.l.s4 1966171168
    %v3787 = vunpack.c.0.s8 %v3786
    %v3788 = vlaneseq
    %v3789 = vshrl.u32 %v3788, 7
    %v3790 = vsub.s32 %v3787, %v3789
    %v3791 = vrot.slane %v3777, %v3790
    %v3792 = vcombine.high %v3784, %v3784
    %v3793 = vcombine.high %v3791, %v3791
    %v3795 = vunpack.c.l.s4 1966171168
    %v3796 = vunpack.c.0.s8 %v3795
    %v3797 = vlaneseq
    %v3798 = vshrl.u32 %v3797, 7
    %v3799 = vsub.s32 %v3796, %v3798
    %v3800 = vrot.slane %v3784, %v3799
    %v3802 = vunpack.c.l.s4 1966171168
    %v3803 = vunpack.c.0.s8 %v3802
    %v3804 = vlaneseq
    %v3805 = vshrl.u32 %v3804, 7
    %v3806 = vsub.s32 %v3803, %v3805
    %v3807 = vrot.slane %v3791, %v3806
    %v3809 = vunpack.c.l.s4 1966171168
    %v3810 = vunpack.c.0.s8 %v3809
    %v3811 = vlaneseq
    %v3812 = vshrl.u32 %v3811, 7
    %v3813 = vsub.s32 %v3810, %v3812
    %v3814 = vrot.slane %v3792, %v3813
    %v3816 = vunpack.c.l.s4 1966171168
    %v3817 = vunpack.c.0.s8 %v3816
    %v3818 = vlaneseq
    %v3819 = vshrl.u32 %v3818, 7
    %v3820 = vsub.s32 %v3817, %v3819
    %v3821 = vrot.slane %v3793, %v3820
    %v3822 = vcombine.high %v3800, %v3800
    %v3823 = vcombine.high %v3807, %v3807
    %v3824 = vcombine.high %v3814, %v3814
    %v3825 = vcombine.high %v3821, %v3821
    %v3826 = vcombine.high %v3590, %v3590
    %v3828 = vunpack.c.l.s4 1966171168
    %v3829 = vunpack.c.0.s8 %v3828
    %v3830 = vlaneseq
    %v3831 = vshrl.u32 %v3830, 7
    %v3832 = vsub.s32 %v3829, %v3831
    %v3833 = vrot.slane %v3590, %v3832
    %v3835 = vunpack.c.l.s4 1966171168
    %v3836 = vunpack.c.0.s8 %v3835
    %v3837 = vlaneseq
    %v3838 = vshrl.u32 %v3837, 7
    %v3839 = vsub.s32 %v3836, %v3838
    %v3840 = vrot.slane %v3826, %v3839
    %v3841 = vcombine.high %v3833, %v3833
    %v3842 = vcombine.high %v3840, %v3840
    %v3844 = vunpack.c.l.s4 1966171168
    %v3845 = vunpack.c.0.s8 %v3844
    %v3846 = vlaneseq
    %v3847 = vshrl.u32 %v3846, 7
    %v3848 = vsub.s32 %v3845, %v3847
    %v3849 = vrot.slane %v3833, %v3848
    %v3851 = vunpack.c.l.s4 1966171168
    %v3852 = vunpack.c.0.s8 %v3851
    %v3853 = vlaneseq
    %v3854 = vshrl.u32 %v3853, 7
    %v3855 = vsub.s32 %v3852, %v3854
    %v3856 = vrot.slane %v3840, %v3855
    %v3858 = vunpack.c.l.s4 1966171168
    %v3859 = vunpack.c.0.s8 %v3858
    %v3860 = vlaneseq
    %v3861 = vshrl.u32 %v3860, 7
    %v3862 = vsub.s32 %v3859, %v3861
    %v3863 = vrot.slane %v3841, %v3862
    %v3865 = vunpack.c.l.s4 1966171168
    %v3866 = vunpack.c.0.s8 %v3865
    %v3867 = vlaneseq
    %v3868 = vshrl.u32 %v3867, 7
    %v3869 = vsub.s32 %v3866, %v3868
    %v3870 = vrot.slane %v3842, %v3869
    %v3871 = vcombine.high %v3849, %v3849
    %v3872 = vcombine.high %v3856, %v3856
    %v3873 = vcombine.high %v3863, %v3863
    %v3874 = vcombine.high %v3870, %v3870
    %v3875 = vcombine.high %v3591, %v3591
    %v3877 = vunpack.c.l.s4 1966171168
    %v3878 = vunpack.c.0.s8 %v3877
    %v3879 = vlaneseq
    %v3880 = vshrl.u32 %v3879, 7
    %v3881 = vsub.s32 %v3878, %v3880
    %v3882 = vrot.slane %v3591, %v3881
    %v3884 = vunpack.c.l.s4 1966171168
    %v3885 = vunpack.c.0.s8 %v3884
    %v3886 = vlaneseq
    %v3887 = vshrl.u32 %v3886, 7
    %v3888 = vsub.s32 %v3885, %v3887
    %v3889 = vrot.slane %v3875, %v3888
    %v3890 = vcombine.high %v3882, %v3882
    %v3891 = vcombine.high %v3889, %v3889
    %v3893 = vunpack.c.l.s4 1966171168
    %v3894 = vunpack.c.0.s8 %v3893
    %v3895 = vlaneseq
    %v3896 = vshrl.u32 %v3895, 7
    %v3897 = vsub.s32 %v3894, %v3896
    %v3898 = vrot.slane %v3882, %v3897
    %v3900 = vunpack.c.l.s4 1966171168
    %v3901 = vunpack.c.0.s8 %v3900
    %v3902 = vlaneseq
    %v3903 = vshrl.u32 %v3902, 7
    %v3904 = vsub.s32 %v3901, %v3903
    %v3905 = vrot.slane %v3889, %v3904
    %v3907 = vunpack.c.l.s4 1966171168
    %v3908 = vunpack.c.0.s8 %v3907
    %v3909 = vlaneseq
    %v3910 = vshrl.u32 %v3909, 7
    %v3911 = vsub.s32 %v3908, %v3910
    %v3912 = vrot.slane %v3890, %v3911
    %v3914 = vunpack.c.l.s4 1966171168
    %v3915 = vunpack.c.0.s8 %v3914
    %v3916 = vlaneseq
    %v3917 = vshrl.u32 %v3916, 7
    %v3918 = vsub.s32 %v3915, %v3917
    %v3919 = vrot.slane %v3891, %v3918
    %v3920 = vcombine.high %v3898, %v3898
    %v3921 = vcombine.high %v3905, %v3905
    %v3922 = vcombine.high %v3912, %v3912
    %v3923 = vcombine.high %v3919, %v3919
    %v3924 = vcombine.high %v3592, %v3592
    %v3926 = vunpack.c.l.s4 1966171168
    %v3927 = vunpack.c.0.s8 %v3926
    %v3928 = vlaneseq
    %v3929 = vshrl.u32 %v3928, 7
    %v3930 = vsub.s32 %v3927, %v3929
    %v3931 = vrot.slane %v3592, %v3930
    %v3933 = vunpack.c.l.s4 1966171168
    %v3934 = vunpack.c.0.s8 %v3933
    %v3935 = vlaneseq
    %v3936 = vshrl.u32 %v3935, 7
    %v3937 = vsub.s32 %v3934, %v3936
    %v3938 = vrot.slane %v3924, %v3937
    %v3939 = vcombine.high %v3931, %v3931
    %v3940 = vcombine.high %v3938, %v3938
    %v3942 = vunpack.c.l.s4 1966171168
    %v3943 = vunpack.c.0.s8 %v3942
    %v3944 = vlaneseq
    %v3945 = vshrl.u32 %v3944, 7
    %v3946 = vsub.s32 %v3943, %v3945
    %v3947 = vrot.slane %v3931, %v3946
    %v3949 = vunpack.c.l.s4 1966171168
    %v3950 = vunpack.c.0.s8 %v3949
    %v3951 = vlaneseq
    %v3952 = vshrl.u32 %v3951, 7
    %v3953 = vsub.s32 %v3950, %v3952
    %v3954 = vrot.slane %v3938, %v3953
    %v3956 = vunpack.c.l.s4 1966171168
    %v3957 = vunpack.c.0.s8 %v3956
    %v3958 = vlaneseq
    %v3959 = vshrl.u32 %v3958, 7
    %v3960 = vsub.s32 %v3957, %v3959
    %v3961 = vrot.slane %v3939, %v3960
    %v3963 = vunpack.c.l.s4 1966171168
    %v3964 = vunpack.c.0.s8 %v3963
    %v3965 = vlaneseq
    %v3966 = vshrl.u32 %v3965, 7
    %v3967 = vsub.s32 %v3964, %v3966
    %v3968 = vrot.slane %v3940, %v3967
    %v3969 = vcombine.high %v3947, %v3947
    %v3970 = vcombine.high %v3954, %v3954
    %v3971 = vcombine.high %v3961, %v3961
    %v3972 = vcombine.high %v3968, %v3968
    %v3973 = vlaneseq
    %v3974 = vshrl.u32 %v3973, 7
    %v3975 = vsub.s32 0, %v3974
    %v3976 = vrot.slane %v3800, %v3975
    %v3977 = vlaneseq
    %v3978 = vshrl.u32 %v3977, 7
    %v3979 = vsub.s32 0, %v3978
    %v3980 = vrot.slane %v3814, %v3979
    %v3981 = vlaneseq
    %v3982 = vshrl.u32 %v3981, 7
    %v3983 = vsub.s32 0, %v3982
    %v3984 = vrot.slane %v3822, %v3983
    %v3985 = vlaneseq
    %v3986 = vshrl.u32 %v3985, 7
    %v3987 = vsub.s32 0, %v3986
    %v3988 = vrot.slane %v3824, %v3987
    %v3989 = vlaneseq
    %v3990 = vshrl.u32 %v3989, 7
    %v3991 = vsub.s32 0, %v3990
    %v3992 = vrot.slane %v3807, %v3991
    %v3993 = vlaneseq
    %v3994 = vshrl.u32 %v3993, 7
    %v3995 = vsub.s32 0, %v3994
    %v3996 = vrot.slane %v3821, %v3995
    %v3997 = vlaneseq
    %v3998 = vshrl.u32 %v3997, 7
    %v3999 = vsub.s32 0, %v3998
    %v4000 = vrot.slane %v3823, %v3999
    %v4001 = vlaneseq
    %v4002 = vshrl.u32 %v4001, 7
    %v4003 = vsub.s32 0, %v4002
    %v4004 = vrot.slane %v3825, %v4003
    %v4005 = vlaneseq
    %v4006 = vshrl.u32 %v4005, 7
    %v4007 = vsub.s32 0, %v4006
    %v4008 = vrot.slane %v3849, %v4007
    %v4009 = vlaneseq
    %v4010 = vshrl.u32 %v4009, 7
    %v4011 = vsub.s32 0, %v4010
    %v4012 = vrot.slane %v3863, %v4011
    %v4013 = vlaneseq
    %v4014 = vshrl.u32 %v4013, 7
    %v4015 = vsub.s32 0, %v4014
    %v4016 = vrot.slane %v3871, %v4015
    %v4017 = vlaneseq
    %v4018 = vshrl.u32 %v4017, 7
    %v4019 = vsub.s32 0, %v4018
    %v4020 = vrot.slane %v3873, %v4019
    %v4021 = vlaneseq
    %v4022 = vshrl.u32 %v4021, 7
    %v4023 = vsub.s32 0, %v4022
    %v4024 = vrot.slane %v3856, %v4023
    %v4025 = vlaneseq
    %v4026 = vshrl.u32 %v4025, 7
    %v4027 = vsub.s32 0, %v4026
    %v4028 = vrot.slane %v3870, %v4027
    %v4029 = vlaneseq
    %v4030 = vshrl.u32 %v4029, 7
    %v4031 = vsub.s32 0, %v4030
    %v4032 = vrot.slane %v3872, %v4031
    %v4033 = vlaneseq
    %v4034 = vshrl.u32 %v4033, 7
    %v4035 = vsub.s32 0, %v4034
    %v4036 = vrot.slane %v3874, %v4035
    %v4037 = vlaneseq
    %v4038 = vshrl.u32 %v4037, 7
    %v4039 = vsub.s32 0, %v4038
    %v4040 = vrot.slane %v3898, %v4039
    %v4041 = vlaneseq
    %v4042 = vshrl.u32 %v4041, 7
    %v4043 = vsub.s32 0, %v4042
    %v4044 = vrot.slane %v3912, %v4043
    %v4045 = vlaneseq
    %v4046 = vshrl.u32 %v4045, 7
    %v4047 = vsub.s32 0, %v4046
    %v4048 = vrot.slane %v3920, %v4047
    %v4049 = vlaneseq
    %v4050 = vshrl.u32 %v4049, 7
    %v4051 = vsub.s32 0, %v4050
    %v4052 = vrot.slane %v3922, %v4051
    %v4053 = vlaneseq
    %v4054 = vshrl.u32 %v4053, 7
    %v4055 = vsub.s32 0, %v4054
    %v4056 = vrot.slane %v3905, %v4055
    %v4057 = vlaneseq
    %v4058 = vshrl.u32 %v4057, 7
    %v4059 = vsub.s32 0, %v4058
    %v4060 = vrot.slane %v3919, %v4059
    %v4061 = vlaneseq
    %v4062 = vshrl.u32 %v4061, 7
    %v4063 = vsub.s32 0, %v4062
    %v4064 = vrot.slane %v3921, %v4063
    %v4065 = vlaneseq
    %v4066 = vshrl.u32 %v4065, 7
    %v4067 = vsub.s32 0, %v4066
    %v4068 = vrot.slane %v3923, %v4067
    %v4069 = vlaneseq
    %v4070 = vshrl.u32 %v4069, 7
    %v4071 = vsub.s32 0, %v4070
    %v4072 = vrot.slane %v3947, %v4071
    %v4073 = vlaneseq
    %v4074 = vshrl.u32 %v4073, 7
    %v4075 = vsub.s32 0, %v4074
    %v4076 = vrot.slane %v3961, %v4075
    %v4077 = vlaneseq
    %v4078 = vshrl.u32 %v4077, 7
    %v4079 = vsub.s32 0, %v4078
    %v4080 = vrot.slane %v3969, %v4079
    %v4081 = vlaneseq
    %v4082 = vshrl.u32 %v4081, 7
    %v4083 = vsub.s32 0, %v4082
    %v4084 = vrot.slane %v3971, %v4083
    %v4085 = vlaneseq
    %v4086 = vshrl.u32 %v4085, 7
    %v4087 = vsub.s32 0, %v4086
    %v4088 = vrot.slane %v3954, %v4087
    %v4089 = vlaneseq
    %v4090 = vshrl.u32 %v4089, 7
    %v4091 = vsub.s32 0, %v4090
    %v4092 = vrot.slane %v3968, %v4091
    %v4093 = vlaneseq
    %v4094 = vshrl.u32 %v4093, 7
    %v4095 = vsub.s32 0, %v4094
    %v4096 = vrot.slane %v3970, %v4095
    %v4097 = vlaneseq
    %v4098 = vshrl.u32 %v4097, 7
    %v4099 = vsub.s32 0, %v4098
    %v4100 = vrot.slane %v3972, %v4099
    %v4133 = vsel %vm2129, %v3976, 1e+30
    %v4134 = vsel %vm2130, %v3976, 1e+30
    %v4135 = vsel %vm2131, %v3980, 1e+30
    %v4136 = vsel %vm2132, %v3980, 1e+30
    %v4137 = vsel %vm2133, %v3984, 1e+30
    %v4138 = vsel %vm2134, %v3984, 1e+30
    %v4139 = vsel %vm2135, %v3988, 1e+30
    %v4140 = vsel %vm2136, %v3988, 1e+30
    %v4141 = vsel %vm2137, %v3992, 1e+30
    %v4142 = vsel %vm2138, %v3992, 1e+30
    %v4143 = vsel %vm2139, %v3996, 1e+30
    %v4144 = vsel %vm2140, %v3996, 1e+30
    %v4145 = vsel %vm2141, %v4000, 1e+30
    %v4146 = vsel %vm2142, %v4000, 1e+30
    %v4147 = vsel %vm2143, %v4004, 1e+30
    %v4148 = vsel %vm2144, %v4004, 1e+30
    %v4149 = vsel %vm2145, %v4008, 1e+30
    %v4150 = vsel %vm2146, %v4008, 1e+30
    %v4151 = vsel %vm2147, %v4012, 1e+30
    %v4152 = vsel %vm2148, %v4012, 1e+30
    %v4153 = vsel %vm2149, %v4016, 1e+30
    %v4154 = vsel %vm2150, %v4016, 1e+30
    %v4155 = vsel %vm2151, %v4020, 1e+30
    %v4156 = vsel %vm2152, %v4020, 1e+30
    %v4157 = vsel %vm2153, %v4024, 1e+30
    %v4158 = vsel %vm2154, %v4024, 1e+30
    %v4159 = vsel %vm2155, %v4028, 1e+30
    %v4160 = vsel %vm2156, %v4028, 1e+30
    %v4161 = vsel %vm2157, %v4032, 1e+30
    %v4162 = vsel %vm2158, %v4032, 1e+30
    %v4163 = vsel %vm2159, %v4036, 1e+30
    %v4164 = vsel %vm2160, %v4036, 1e+30
    %v4165 = vsel %vm2161, %v4040, 1e+30
    %v4166 = vsel %vm2162, %v4040, 1e+30
    %v4167 = vsel %vm2163, %v4044, 1e+30
    %v4168 = vsel %vm2164, %v4044, 1e+30
    %v4169 = vsel %vm2165, %v4048, 1e+30
    %v4170 = vsel %vm2166, %v4048, 1e+30
    %v4171 = vsel %vm2167, %v4052, 1e+30
    %v4172 = vsel %vm2168, %v4052, 1e+30
    %v4173 = vsel %vm2169, %v4056, 1e+30
    %v4174 = vsel %vm2170, %v4056, 1e+30
    %v4175 = vsel %vm2171, %v4060, 1e+30
    %v4176 = vsel %vm2172, %v4060, 1e+30
    %v4177 = vsel %vm2173, %v4064, 1e+30
    %v4178 = vsel %vm2174, %v4064, 1e+30
    %v4179 = vsel %vm2175, %v4068, 1e+30
    %v4180 = vsel %vm2176, %v4068, 1e+30
    %v4181 = vsel %vm2177, %v4072, 1e+30
    %v4182 = vsel %vm2178, %v4072, 1e+30
    %v4183 = vsel %vm2179, %v4076, 1e+30
    %v4184 = vsel %vm2180, %v4076, 1e+30
    %v4185 = vsel %vm2181, %v4080, 1e+30
    %v4186 = vsel %vm2182, %v4080, 1e+30
    %v4187 = vsel %vm2183, %v4084, 1e+30
    %v4188 = vsel %vm2184, %v4084, 1e+30
    %v4189 = vsel %vm2185, %v4088, 1e+30
    %v4190 = vsel %vm2186, %v4088, 1e+30
    %v4191 = vsel %vm2187, %v4092, 1e+30
    %v4192 = vsel %vm2188, %v4092, 1e+30
    %v4193 = vsel %vm2189, %v4096, 1e+30
    %v4194 = vsel %vm2190, %v4096, 1e+30
    %v4195 = vsel %vm2191, %v4100, 1e+30
    %v4196 = vsel %vm2192, %v4100, 1e+30
    %v4197 = vsel %vm535, %v4133, inf
    %v4198 = vsel %vm535, %v4135, inf
    %v4199 = vsel %vm535, %v4137, inf
    %v4200 = vmin.f32 %v4197, %v4199
    %v4201 = vsel %vm535, %v4139, inf
    %v4202 = vmin.f32 %v4198, %v4201
    %v4203 = vsel %vm535, %v4141, inf
    %v4204 = vmin.f32 %v4200, %v4203
    %v4205 = vsel %vm535, %v4143, inf
    %v4206 = vmin.f32 %v4202, %v4205
    %v4207 = vsel %vm535, %v4145, inf
    %v4208 = vmin.f32 %v4204, %v4207
    %v4209 = vsel %vm535, %v4147, inf
    %v4210 = vmin.f32 %v4206, %v4209
    %v4211 = vsel %vm535, %v4149, inf
    %v4212 = vmin.f32 %v4208, %v4211
    %v4213 = vsel %vm535, %v4151, inf
    %v4214 = vmin.f32 %v4210, %v4213
    %v4215 = vsel %vm535, %v4153, inf
    %v4216 = vmin.f32 %v4212, %v4215
    %v4217 = vsel %vm535, %v4155, inf
    %v4218 = vmin.f32 %v4214, %v4217
    %v4219 = vsel %vm535, %v4157, inf
    %v4220 = vmin.f32 %v4216, %v4219
    %v4221 = vsel %vm535, %v4159, inf
    %v4222 = vmin.f32 %v4218, %v4221
    %v4223 = vsel %vm535, %v4161, inf
    %v4224 = vmin.f32 %v4220, %v4223
    %v4225 = vsel %vm535, %v4163, inf
    %v4226 = vmin.f32 %v4222, %v4225
    %v4227 = vsel %vm535, %v4165, inf
    %v4228 = vmin.f32 %v4224, %v4227
    %v4229 = vsel %vm535, %v4167, inf
    %v4230 = vmin.f32 %v4226, %v4229
    %v4231 = vsel %vm535, %v4169, inf
    %v4232 = vmin.f32 %v4228, %v4231
    %v4233 = vsel %vm535, %v4171, inf
    %v4234 = vmin.f32 %v4230, %v4233
    %v4235 = vsel %vm535, %v4173, inf
    %v4236 = vmin.f32 %v4232, %v4235
    %v4237 = vsel %vm535, %v4175, inf
    %v4238 = vmin.f32 %v4234, %v4237
    %v4239 = vsel %vm535, %v4177, inf
    %v4240 = vmin.f32 %v4236, %v4239
    %v4241 = vsel %vm535, %v4179, inf
    %v4242 = vmin.f32 %v4238, %v4241
    %v4243 = vsel %vm535, %v4181, inf
    %v4244 = vmin.f32 %v4240, %v4243
    %v4245 = vsel %vm535, %v4183, inf
    %v4246 = vmin.f32 %v4242, %v4245
    %v4247 = vsel %vm535, %v4185, inf
    %v4248 = vmin.f32 %v4244, %v4247
    %v4249 = vsel %vm535, %v4187, inf
    %v4250 = vmin.f32 %v4246, %v4249
    %v4251 = vsel %vm535, %v4189, inf
    %v4252 = vmin.f32 %v4248, %v4251
    %v4253 = vsel %vm535, %v4191, inf
    %v4254 = vmin.f32 %v4250, %v4253
    %v4255 = vsel %vm535, %v4193, inf
    %v4256 = vmin.f32 %v4252, %v4255
    %v4257 = vsel %vm535, %v4195, inf
    %v4258 = vmin.f32 %v4254, %v4257
    %v4259 = vmin.f32 %v4256, %v4258
    %v4260 = vsel %vm535, %v4134, inf
    %v4261 = vsel %vm535, %v4136, inf
    %v4262 = vsel %vm535, %v4138, inf
    %v4263 = vmin.f32 %v4260, %v4262
    %v4264 = vsel %vm535, %v4140, inf
    %v4265 = vmin.f32 %v4261, %v4264
    %v4266 = vsel %vm535, %v4142, inf
    %v4267 = vmin.f32 %v4263, %v4266
    %v4268 = vsel %vm535, %v4144, inf
    %v4269 = vmin.f32 %v4265, %v4268
    %v4270 = vsel %vm535, %v4146, inf
    %v4271 = vmin.f32 %v4267, %v4270
    %v4272 = vsel %vm535, %v4148, inf
    %v4273 = vmin.f32 %v4269, %v4272
    %v4274 = vsel %vm535, %v4150, inf
    %v4275 = vmin.f32 %v4271, %v4274
    %v4276 = vsel %vm535, %v4152, inf
    %v4277 = vmin.f32 %v4273, %v4276
    %v4278 = vsel %vm535, %v4154, inf
    %v4279 = vmin.f32 %v4275, %v4278
    %v4280 = vsel %vm535, %v4156, inf
    %v4281 = vmin.f32 %v4277, %v4280
    %v4282 = vsel %vm535, %v4158, inf
    %v4283 = vmin.f32 %v4279, %v4282
    %v4284 = vsel %vm535, %v4160, inf
    %v4285 = vmin.f32 %v4281, %v4284
    %v4286 = vsel %vm535, %v4162, inf
    %v4287 = vmin.f32 %v4283, %v4286
    %v4288 = vsel %vm535, %v4164, inf
    %v4289 = vmin.f32 %v4285, %v4288
    %v4290 = vsel %vm535, %v4166, inf
    %v4291 = vmin.f32 %v4287, %v4290
    %v4292 = vsel %vm535, %v4168, inf
    %v4293 = vmin.f32 %v4289, %v4292
    %v4294 = vsel %vm535, %v4170, inf
    %v4295 = vmin.f32 %v4291, %v4294
    %v4296 = vsel %vm535, %v4172, inf
    %v4297 = vmin.f32 %v4293, %v4296
    %v4298 = vsel %vm535, %v4174, inf
    %v4299 = vmin.f32 %v4295, %v4298
    %v4300 = vsel %vm535, %v4176, inf
    %v4301 = vmin.f32 %v4297, %v4300
    %v4302 = vsel %vm535, %v4178, inf
    %v4303 = vmin.f32 %v4299, %v4302
    %v4304 = vsel %vm535, %v4180, inf
    %v4305 = vmin.f32 %v4301, %v4304
    %v4306 = vsel %vm535, %v4182, inf
    %v4307 = vmin.f32 %v4303, %v4306
    %v4308 = vsel %vm535, %v4184, inf
    %v4309 = vmin.f32 %v4305, %v4308
    %v4310 = vsel %vm535, %v4186, inf
    %v4311 = vmin.f32 %v4307, %v4310
    %v4312 = vsel %vm535, %v4188, inf
    %v4313 = vmin.f32 %v4309, %v4312
    %v4314 = vsel %vm535, %v4190, inf
    %v4315 = vmin.f32 %v4311, %v4314
    %v4316 = vsel %vm535, %v4192, inf
    %v4317 = vmin.f32 %v4313, %v4316
    %v4318 = vsel %vm535, %v4194, inf
    %v4319 = vmin.f32 %v4315, %v4318
    %v4320 = vsel %vm535, %v4196, inf
    %v4321 = vmin.f32 %v4317, %v4320
    %v4322 = vmin.f32 %v4319, %v4321
    %v4323 = vmin.f32 %v4259, 1e+30
    %v4324 = vmin.f32 %v4322, 1e+30
    %v4325 = vsel %vm2129, %v3976, -1e+30
    %v4326 = vsel %vm2130, %v3976, -1e+30
    %v4327 = vsel %vm2131, %v3980, -1e+30
    %v4328 = vsel %vm2132, %v3980, -1e+30
    %v4329 = vsel %vm2133, %v3984, -1e+30
    %v4330 = vsel %vm2134, %v3984, -1e+30
    %v4331 = vsel %vm2135, %v3988, -1e+30
    %v4332 = vsel %vm2136, %v3988, -1e+30
    %v4333 = vsel %vm2137, %v3992, -1e+30
    %v4334 = vsel %vm2138, %v3992, -1e+30
    %v4335 = vsel %vm2139, %v3996, -1e+30
    %v4336 = vsel %vm2140, %v3996, -1e+30
    %v4337 = vsel %vm2141, %v4000, -1e+30
    %v4338 = vsel %vm2142, %v4000, -1e+30
    %v4339 = vsel %vm2143, %v4004, -1e+30
    %v4340 = vsel %vm2144, %v4004, -1e+30
    %v4341 = vsel %vm2145, %v4008, -1e+30
    %v4342 = vsel %vm2146, %v4008, -1e+30
    %v4343 = vsel %vm2147, %v4012, -1e+30
    %v4344 = vsel %vm2148, %v4012, -1e+30
    %v4345 = vsel %vm2149, %v4016, -1e+30
    %v4346 = vsel %vm2150, %v4016, -1e+30
    %v4347 = vsel %vm2151, %v4020, -1e+30
    %v4348 = vsel %vm2152, %v4020, -1e+30
    %v4349 = vsel %vm2153, %v4024, -1e+30
    %v4350 = vsel %vm2154, %v4024, -1e+30
    %v4351 = vsel %vm2155, %v4028, -1e+30
    %v4352 = vsel %vm2156, %v4028, -1e+30
    %v4353 = vsel %vm2157, %v4032, -1e+30
    %v4354 = vsel %vm2158, %v4032, -1e+30
    %v4355 = vsel %vm2159, %v4036, -1e+30
    %v4356 = vsel %vm2160, %v4036, -1e+30
    %v4357 = vsel %vm2161, %v4040, -1e+30
    %v4358 = vsel %vm2162, %v4040, -1e+30
    %v4359 = vsel %vm2163, %v4044, -1e+30
    %v4360 = vsel %vm2164, %v4044, -1e+30
    %v4361 = vsel %vm2165, %v4048, -1e+30
    %v4362 = vsel %vm2166, %v4048, -1e+30
    %v4363 = vsel %vm2167, %v4052, -1e+30
    %v4364 = vsel %vm2168, %v4052, -1e+30
    %v4365 = vsel %vm2169, %v4056, -1e+30
    %v4366 = vsel %vm2170, %v4056, -1e+30
    %v4367 = vsel %vm2171, %v4060, -1e+30
    %v4368 = vsel %vm2172, %v4060, -1e+30
    %v4369 = vsel %vm2173, %v4064, -1e+30
    %v4370 = vsel %vm2174, %v4064, -1e+30
    %v4371 = vsel %vm2175, %v4068, -1e+30
    %v4372 = vsel %vm2176, %v4068, -1e+30
    %v4373 = vsel %vm2177, %v4072, -1e+30
    %v4374 = vsel %vm2178, %v4072, -1e+30
    %v4375 = vsel %vm2179, %v4076, -1e+30
    %v4376 = vsel %vm2180, %v4076, -1e+30
    %v4377 = vsel %vm2181, %v4080, -1e+30
    %v4378 = vsel %vm2182, %v4080, -1e+30
    %v4379 = vsel %vm2183, %v4084, -1e+30
    %v4380 = vsel %vm2184, %v4084, -1e+30
    %v4381 = vsel %vm2185, %v4088, -1e+30
    %v4382 = vsel %vm2186, %v4088, -1e+30
    %v4383 = vsel %vm2187, %v4092, -1e+30
    %v4384 = vsel %vm2188, %v4092, -1e+30
    %v4385 = vsel %vm2189, %v4096, -1e+30
    %v4386 = vsel %vm2190, %v4096, -1e+30
    %v4387 = vsel %vm2191, %v4100, -1e+30
    %v4388 = vsel %vm2192, %v4100, -1e+30
    %v4389 = vsel %vm535, %v4325, -inf
    %v4390 = vsel %vm535, %v4327, -inf
    %v4391 = vsel %vm535, %v4329, -inf
    %v4392 = vmax.f32 %v4389, %v4391
    %v4393 = vsel %vm535, %v4331, -inf
    %v4394 = vmax.f32 %v4390, %v4393
    %v4395 = vsel %vm535, %v4333, -inf
    %v4396 = vmax.f32 %v4392, %v4395
    %v4397 = vsel %vm535, %v4335, -inf
    %v4398 = vmax.f32 %v4394, %v4397
    %v4399 = vsel %vm535, %v4337, -inf
    %v4400 = vmax.f32 %v4396, %v4399
    %v4401 = vsel %vm535, %v4339, -inf
    %v4402 = vmax.f32 %v4398, %v4401
    %v4403 = vsel %vm535, %v4341, -inf
    %v4404 = vmax.f32 %v4400, %v4403
    %v4405 = vsel %vm535, %v4343, -inf
    %v4406 = vmax.f32 %v4402, %v4405
    %v4407 = vsel %vm535, %v4345, -inf
    %v4408 = vmax.f32 %v4404, %v4407
    %v4409 = vsel %vm535, %v4347, -inf
    %v4410 = vmax.f32 %v4406, %v4409
    %v4411 = vsel %vm535, %v4349, -inf
    %v4412 = vmax.f32 %v4408, %v4411
    %v4413 = vsel %vm535, %v4351, -inf
    %v4414 = vmax.f32 %v4410, %v4413
    %v4415 = vsel %vm535, %v4353, -inf
    %v4416 = vmax.f32 %v4412, %v4415
    %v4417 = vsel %vm535, %v4355, -inf
    %v4418 = vmax.f32 %v4414, %v4417
    %v4419 = vsel %vm535, %v4357, -inf
    %v4420 = vmax.f32 %v4416, %v4419
    %v4421 = vsel %vm535, %v4359, -inf
    %v4422 = vmax.f32 %v4418, %v4421
    %v4423 = vsel %vm535, %v4361, -inf
    %v4424 = vmax.f32 %v4420, %v4423
    %v4425 = vsel %vm535, %v4363, -inf
    %v4426 = vmax.f32 %v4422, %v4425
    %v4427 = vsel %vm535, %v4365, -inf
    %v4428 = vmax.f32 %v4424, %v4427
    %v4429 = vsel %vm535, %v4367, -inf
    %v4430 = vmax.f32 %v4426, %v4429
    %v4431 = vsel %vm535, %v4369, -inf
    %v4432 = vmax.f32 %v4428, %v4431
    %v4433 = vsel %vm535, %v4371, -inf
    %v4434 = vmax.f32 %v4430, %v4433
    %v4435 = vsel %vm535, %v4373, -inf
    %v4436 = vmax.f32 %v4432, %v4435
    %v4437 = vsel %vm535, %v4375, -inf
    %v4438 = vmax.f32 %v4434, %v4437
    %v4439 = vsel %vm535, %v4377, -inf
    %v4440 = vmax.f32 %v4436, %v4439
    %v4441 = vsel %vm535, %v4379, -inf
    %v4442 = vmax.f32 %v4438, %v4441
    %v4443 = vsel %vm535, %v4381, -inf
    %v4444 = vmax.f32 %v4440, %v4443
    %v4445 = vsel %vm535, %v4383, -inf
    %v4446 = vmax.f32 %v4442, %v4445
    %v4447 = vsel %vm535, %v4385, -inf
    %v4448 = vmax.f32 %v4444, %v4447
    %v4449 = vsel %vm535, %v4387, -inf
    %v4450 = vmax.f32 %v4446, %v4449
    %v4451 = vmax.f32 %v4448, %v4450
    %v4452 = vsel %vm535, %v4326, -inf
    %v4453 = vsel %vm535, %v4328, -inf
    %v4454 = vsel %vm535, %v4330, -inf
    %v4455 = vmax.f32 %v4452, %v4454
    %v4456 = vsel %vm535, %v4332, -inf
    %v4457 = vmax.f32 %v4453, %v4456
    %v4458 = vsel %vm535, %v4334, -inf
    %v4459 = vmax.f32 %v4455, %v4458
    %v4460 = vsel %vm535, %v4336, -inf
    %v4461 = vmax.f32 %v4457, %v4460
    %v4462 = vsel %vm535, %v4338, -inf
    %v4463 = vmax.f32 %v4459, %v4462
    %v4464 = vsel %vm535, %v4340, -inf
    %v4465 = vmax.f32 %v4461, %v4464
    %v4466 = vsel %vm535, %v4342, -inf
    %v4467 = vmax.f32 %v4463, %v4466
    %v4468 = vsel %vm535, %v4344, -inf
    %v4469 = vmax.f32 %v4465, %v4468
    %v4470 = vsel %vm535, %v4346, -inf
    %v4471 = vmax.f32 %v4467, %v4470
    %v4472 = vsel %vm535, %v4348, -inf
    %v4473 = vmax.f32 %v4469, %v4472
    %v4474 = vsel %vm535, %v4350, -inf
    %v4475 = vmax.f32 %v4471, %v4474
    %v4476 = vsel %vm535, %v4352, -inf
    %v4477 = vmax.f32 %v4473, %v4476
    %v4478 = vsel %vm535, %v4354, -inf
    %v4479 = vmax.f32 %v4475, %v4478
    %v4480 = vsel %vm535, %v4356, -inf
    %v4481 = vmax.f32 %v4477, %v4480
    %v4482 = vsel %vm535, %v4358, -inf
    %v4483 = vmax.f32 %v4479, %v4482
    %v4484 = vsel %vm535, %v4360, -inf
    %v4485 = vmax.f32 %v4481, %v4484
    %v4486 = vsel %vm535, %v4362, -inf
    %v4487 = vmax.f32 %v4483, %v4486
    %v4488 = vsel %vm535, %v4364, -inf
    %v4489 = vmax.f32 %v4485, %v4488
    %v4490 = vsel %vm535, %v4366, -inf
    %v4491 = vmax.f32 %v4487, %v4490
    %v4492 = vsel %vm535, %v4368, -inf
    %v4493 = vmax.f32 %v4489, %v4492
    %v4494 = vsel %vm535, %v4370, -inf
    %v4495 = vmax.f32 %v4491, %v4494
    %v4496 = vsel %vm535, %v4372, -inf
    %v4497 = vmax.f32 %v4493, %v4496
    %v4498 = vsel %vm535, %v4374, -inf
    %v4499 = vmax.f32 %v4495, %v4498
    %v4500 = vsel %vm535, %v4376, -inf
    %v4501 = vmax.f32 %v4497, %v4500
    %v4502 = vsel %vm535, %v4378, -inf
    %v4503 = vmax.f32 %v4499, %v4502
    %v4504 = vsel %vm535, %v4380, -inf
    %v4505 = vmax.f32 %v4501, %v4504
    %v4506 = vsel %vm535, %v4382, -inf
    %v4507 = vmax.f32 %v4503, %v4506
    %v4508 = vsel %vm535, %v4384, -inf
    %v4509 = vmax.f32 %v4505, %v4508
    %v4510 = vsel %vm535, %v4386, -inf
    %v4511 = vmax.f32 %v4507, %v4510
    %v4512 = vsel %vm535, %v4388, -inf
    %v4513 = vmax.f32 %v4509, %v4512
    %v4514 = vmax.f32 %v4511, %v4513
    %v4515 = vmax.f32 %v4451, -1e+30
    %v4516 = vmax.f32 %v4514, -1e+30
    %4519 = vrot.lane.b32.xlu0 %v4323, 32
    %v4520 = vpop.permute.xlu0 %4519
    %4521 = vrot.lane.b32.xlu0 %v4324, 32
    %v4522 = vpop.permute.xlu0 %4521
    %4527 = vrot.lane.b32.xlu0 %v4515, 64
    %v4528 = vpop.permute.xlu0 %4527
    %4529 = vrot.lane.b32.xlu0 %v4516, 64
    %v4530 = vpop.permute.xlu0 %4529
    %4535 = vrot.lane.b32.xlu0 %v3765, 96
    %v4536 = vpop.permute.xlu0 %4535
    %4537 = vrot.lane.b32.xlu0 %v3772, 96
    %v4538 = vpop.permute.xlu0 %4537
    %v4541 = vsel %vm535, %v3747, %v4520
    %v4542 = vsel %vm535, %v3748, %v4522
    %v4543 = vsel %vm2763, %v4541, %v4528
    %v4544 = vsel %vm2763, %v4542, %v4530
    %v4545 = vsel %vm2766, %v4543, %v4536
    %v4546 = vsel %vm2766, %v4544, %v4538
    %s4547 = scalar_lea.vmem %s8, 32
    %v4548 = vld [vmem:[%s4547] sm:$0xff]
    %v4549 = vld [vmem:[%s4547 + $0x8] sm:$0xff]
    %v4550 = vld [vmem:[%s4547 + $0x10] sm:$0xff]
    %v4551 = vld [vmem:[%s4547 + $0x18] sm:$0xff]
    %s4552 = scalar_lea.vmem %s9, 128
    %v4553 = vld [vmem:[%s4552] sm:$0xff]
    %v4554 = vld [vmem:[%s4552 + $0x8] sm:$0xff]
    %v4555 = vld [vmem:[%s4552 + $0x10] sm:$0xff]
    %v4556 = vld [vmem:[%s4552 + $0x18] sm:$0xff]
    %v4557 = vld [vmem:[%s4552 + $0x20] sm:$0xff]
    %v4558 = vld [vmem:[%s4552 + $0x28] sm:$0xff]
    %v4559 = vld [vmem:[%s4552 + $0x30] sm:$0xff]
    %v4560 = vld [vmem:[%s4552 + $0x38] sm:$0xff]
    %v4561 = vld [vmem:[%s4552 + $0x40] sm:$0xff]
    %v4562 = vld [vmem:[%s4552 + $0x48] sm:$0xff]
    %v4563 = vld [vmem:[%s4552 + $0x50] sm:$0xff]
    %v4564 = vld [vmem:[%s4552 + $0x58] sm:$0xff]
    %v4565 = vld [vmem:[%s4552 + $0x60] sm:$0xff]
    %v4566 = vld [vmem:[%s4552 + $0x68] sm:$0xff]
    %v4567 = vld [vmem:[%s4552 + $0x70] sm:$0xff]
    %v4568 = vld [vmem:[%s4552 + $0x78] sm:$0xff]
    %4569 = vmatprep.subr.mxu0 0.0
    %4570 = vmatpush1.msra.mxu0 %v4553
    %4571 = vmatprep.subr.mxu0 0.0
    %4572 = vmatpush1.msra.mxu0 %v4554
    %4573 = vmatprep.subr.mxu0 0.0
    %4574 = vmatpush1.msra.mxu0 %v4555
    %4575 = vmatprep.subr.mxu0 0.0
    %4576 = vmatpush1.msra.mxu0 %v4556
    %4577 = vmatprep.subr.mxu0 0.0
    %4578 = vmatpush1.msra.mxu0 %v4557
    %4579 = vmatprep.subr.mxu0 0.0
    %4580 = vmatpush1.msra.mxu0 %v4558
    %4581 = vmatprep.subr.mxu0 0.0
    %4582 = vmatpush1.msra.mxu0 %v4559
    %4583 = vmatprep.subr.mxu0 0.0
    %4584 = vmatpush1.msra.mxu0 %v4560
    %4585 = vmatprep.subr.mxu0 0.0
    %4586 = vmatpush1.msra.mxu0 %v4561
    %4587 = vmatprep.subr.mxu0 0.0
    %4588 = vmatpush1.msra.mxu0 %v4562
    %4589 = vmatprep.subr.mxu0 0.0
    %4590 = vmatpush1.msra.mxu0 %v4563
    %4591 = vmatprep.subr.mxu0 0.0
    %4592 = vmatpush1.msra.mxu0 %v4564
    %4593 = vmatprep.subr.mxu0 0.0
    %4594 = vmatpush1.msra.mxu0 %v4565
    %4595 = vmatprep.subr.mxu0 0.0
    %4596 = vmatpush1.msra.mxu0 %v4566
    %4597 = vmatprep.subr.mxu0 0.0
    %4598 = vmatpush1.msra.mxu0 %v4567
    %4599 = vmatprep.subr.mxu0 0.0
    %4600 = vmatpush1.msra.mxu0 %v4568
    %4601 = vmatprep.subr.mxu0 0.0
    %4602 = vmatpush1.msra.mxu0 0.0
    %4603 = vmatprep.subr.mxu0 0.0
    %4604 = vmatpush1.msra.mxu0 0.0
    %4605 = vmatprep.subr.mxu0 0.0
    %4606 = vmatpush1.msra.mxu0 0.0
    %4607 = vmatprep.subr.mxu0 0.0
    %4608 = vmatpush1.msra.mxu0 0.0
    %4609 = vmatprep.subr.mxu0 0.0
    %4610 = vmatpush1.msra.mxu0 0.0
    %4611 = vmatprep.subr.mxu0 0.0
    %4612 = vmatpush1.msra.mxu0 0.0
    %4613 = vmatprep.subr.mxu0 0.0
    %4614 = vmatpush1.msra.mxu0 0.0
    %4615 = vmatprep.subr.mxu0 0.0
    %4616 = vmatpush1.msra.mxu0 0.0
    %4617 = vmatprep.subr.mxu0 0.0
    %4618 = vmatpush1.msra.mxu0 0.0
    %4619 = vmatprep.subr.mxu0 0.0
    %4620 = vmatpush1.msra.mxu0 0.0
    %4621 = vmatprep.subr.mxu0 0.0
    %4622 = vmatpush1.msra.mxu0 0.0
    %4623 = vmatprep.subr.mxu0 0.0
    %4624 = vmatpush1.msra.mxu0 0.0
    %4625 = vmatprep.subr.mxu0 0.0
    %4626 = vmatpush1.msra.mxu0 0.0
    %4627 = vmatprep.subr.mxu0 0.0
    %4628 = vmatpush1.msra.mxu0 0.0
    %4629 = vmatprep.subr.mxu0 0.0
    %4630 = vmatpush1.msra.mxu0 0.0
    %4631 = vmatprep.subr.mxu0 0.0
    %4632 = vmatpush1.msra.mxu0 0.0
    %4633 = vmatprep.mubr.f32.mxu0 0.0
    %4634 = vmatmul.mubr.f32.gmra.mrb[0].mxu0 %v4545
    %v4635 = vpop.f32.mrb[0].mxu0
    %v4636 = vadd.f32 0.0, %v4635
    %v4637 = vpop.f32.mrb[0].mxu0
    %4638 = vmatprep.mubr.f32.mxu0 0.0
    %4639 = vmatmul.mubr.f32.gmra.mrb[0].mxu0 %v4546
    %v4640 = vpop.f32.mrb[0].mxu0
    %v4641 = vadd.f32 0.0, %v4640
    %v4642 = vpop.f32.mrb[0].mxu0
    %4643 = vdwg.mxu0
    %v4645 = vsel %vm535, %v3276, 0
    %v4648 = vsel %vm535, %v3277, 0
    %4650 = vmatprep.subr.mxu0 0.0
    %4651 = vmatpush1.msra.mxu0 %v4548
    %4652 = vmatprep.subr.mxu0 0.0
    %4653 = vmatpush1.msra.mxu0 %v4549
    %4654 = vmatprep.subr.mxu0 0.0
    %4655 = vmatpush1.msra.mxu0 %v4550
    %4656 = vmatprep.subr.mxu0 0.0
    %4657 = vmatpush1.msra.mxu0 %v4551
    %4658 = vmatprep.subr.mxu0 0.0
    %4659 = vmatpush1.msra.mxu0 0.0
    %4660 = vmatprep.subr.mxu0 0.0
    %4661 = vmatpush1.msra.mxu0 0.0
    %4662 = vmatprep.subr.mxu0 0.0
    %4663 = vmatpush1.msra.mxu0 0.0
    %4664 = vmatprep.subr.mxu0 0.0
    %4665 = vmatpush1.msra.mxu0 0.0
    %4666 = vmatprep.subr.mxu0 0.0
    %4667 = vmatpush1.msra.mxu0 0.0
    %4668 = vmatprep.subr.mxu0 0.0
    %4669 = vmatpush1.msra.mxu0 0.0
    %4670 = vmatprep.subr.mxu0 0.0
    %4671 = vmatpush1.msra.mxu0 0.0
    %4672 = vmatprep.subr.mxu0 0.0
    %4673 = vmatpush1.msra.mxu0 0.0
    %4674 = vmatprep.subr.mxu0 0.0
    %4675 = vmatpush1.msra.mxu0 0.0
    %4676 = vmatprep.subr.mxu0 0.0
    %4677 = vmatpush1.msra.mxu0 0.0
    %4678 = vmatprep.subr.mxu0 0.0
    %4679 = vmatpush1.msra.mxu0 0.0
    %4680 = vmatprep.subr.mxu0 0.0
    %4681 = vmatpush1.msra.mxu0 0.0
    %4682 = vmatprep.subr.mxu0 0.0
    %4683 = vmatpush1.msra.mxu0 0.0
    %4684 = vmatprep.subr.mxu0 0.0
    %4685 = vmatpush1.msra.mxu0 0.0
    %4686 = vmatprep.subr.mxu0 0.0
    %4687 = vmatpush1.msra.mxu0 0.0
    %4688 = vmatprep.subr.mxu0 0.0
    %4689 = vmatpush1.msra.mxu0 0.0
    %4690 = vmatprep.subr.mxu0 0.0
    %4691 = vmatpush1.msra.mxu0 0.0
    %4692 = vmatprep.subr.mxu0 0.0
    %4693 = vmatpush1.msra.mxu0 0.0
    %4694 = vmatprep.subr.mxu0 0.0
    %4695 = vmatpush1.msra.mxu0 0.0
    %4696 = vmatprep.subr.mxu0 0.0
    %4697 = vmatpush1.msra.mxu0 0.0
    %4698 = vmatprep.subr.mxu0 0.0
    %4699 = vmatpush1.msra.mxu0 0.0
    %4700 = vmatprep.subr.mxu0 0.0
    %4701 = vmatpush1.msra.mxu0 0.0
    %4702 = vmatprep.subr.mxu0 0.0
    %4703 = vmatpush1.msra.mxu0 0.0
    %4704 = vmatprep.subr.mxu0 0.0
    %4705 = vmatpush1.msra.mxu0 0.0
    %4706 = vmatprep.subr.mxu0 0.0
    %4707 = vmatpush1.msra.mxu0 0.0
    %4708 = vmatprep.subr.mxu0 0.0
    %4709 = vmatpush1.msra.mxu0 0.0
    %4710 = vmatprep.subr.mxu0 0.0
    %4711 = vmatpush1.msra.mxu0 0.0
    %4712 = vmatprep.subr.mxu0 0.0
    %4713 = vmatpush1.msra.mxu0 0.0
    %4714 = vmatprep.mubr.f32.mxu0 0.0
    %4715 = vmatmul.mubr.f32.gmra.mrb[0].mxu0 %v4645
    %v4716 = vpop.f32.mrb[0].mxu0
    %v4717 = vadd.f32 %v4636, %v4716
    %v4718 = vpop.f32.mrb[0].mxu0
    %4719 = vmatprep.mubr.f32.mxu0 0.0
    %4720 = vmatmul.mubr.f32.gmra.mrb[0].mxu0 %v4648
    %v4721 = vpop.f32.mrb[0].mxu0
    %v4722 = vadd.f32 %v4641, %v4721
    %v4723 = vpop.f32.mrb[0].mxu0
    %4724 = vdwg.mxu0
    %v4725 = vmul.f32 %v4545, %v2948
    %v4726 = vmul.f32 %v4546, %v2953
    %s4727 = scalar_lea.vmem %s10, 128
    %v4728 = vld [vmem:[%s4727] sm:$0xff]
    %v4729 = vld [vmem:[%s4727 + $0x8] sm:$0xff]
    %v4730 = vld [vmem:[%s4727 + $0x10] sm:$0xff]
    %v4731 = vld [vmem:[%s4727 + $0x18] sm:$0xff]
    %v4732 = vld [vmem:[%s4727 + $0x20] sm:$0xff]
    %v4733 = vld [vmem:[%s4727 + $0x28] sm:$0xff]
    %v4734 = vld [vmem:[%s4727 + $0x30] sm:$0xff]
    %v4735 = vld [vmem:[%s4727 + $0x38] sm:$0xff]
    %v4736 = vld [vmem:[%s4727 + $0x40] sm:$0xff]
    %v4737 = vld [vmem:[%s4727 + $0x48] sm:$0xff]
    %v4738 = vld [vmem:[%s4727 + $0x50] sm:$0xff]
    %v4739 = vld [vmem:[%s4727 + $0x58] sm:$0xff]
    %v4740 = vld [vmem:[%s4727 + $0x60] sm:$0xff]
    %v4741 = vld [vmem:[%s4727 + $0x68] sm:$0xff]
    %v4742 = vld [vmem:[%s4727 + $0x70] sm:$0xff]
    %v4743 = vld [vmem:[%s4727 + $0x78] sm:$0xff]
    %4744 = vmatprep.subr.mxu0 0.0
    %4745 = vmatpush1.msra.mxu0 %v4728
    %4746 = vmatprep.subr.mxu0 0.0
    %4747 = vmatpush1.msra.mxu0 %v4729
    %4748 = vmatprep.subr.mxu0 0.0
    %4749 = vmatpush1.msra.mxu0 %v4730
    %4750 = vmatprep.subr.mxu0 0.0
    %4751 = vmatpush1.msra.mxu0 %v4731
    %4752 = vmatprep.subr.mxu0 0.0
    %4753 = vmatpush1.msra.mxu0 %v4732
    %4754 = vmatprep.subr.mxu0 0.0
    %4755 = vmatpush1.msra.mxu0 %v4733
    %4756 = vmatprep.subr.mxu0 0.0
    %4757 = vmatpush1.msra.mxu0 %v4734
    %4758 = vmatprep.subr.mxu0 0.0
    %4759 = vmatpush1.msra.mxu0 %v4735
    %4760 = vmatprep.subr.mxu0 0.0
    %4761 = vmatpush1.msra.mxu0 %v4736
    %4762 = vmatprep.subr.mxu0 0.0
    %4763 = vmatpush1.msra.mxu0 %v4737
    %4764 = vmatprep.subr.mxu0 0.0
    %4765 = vmatpush1.msra.mxu0 %v4738
    %4766 = vmatprep.subr.mxu0 0.0
    %4767 = vmatpush1.msra.mxu0 %v4739
    %4768 = vmatprep.subr.mxu0 0.0
    %4769 = vmatpush1.msra.mxu0 %v4740
    %4770 = vmatprep.subr.mxu0 0.0
    %4771 = vmatpush1.msra.mxu0 %v4741
    %4772 = vmatprep.subr.mxu0 0.0
    %4773 = vmatpush1.msra.mxu0 %v4742
    %4774 = vmatprep.subr.mxu0 0.0
    %4775 = vmatpush1.msra.mxu0 %v4743
    %4776 = vmatprep.subr.mxu0 0.0
    %4777 = vmatpush1.msra.mxu0 0.0
    %4778 = vmatprep.subr.mxu0 0.0
    %4779 = vmatpush1.msra.mxu0 0.0
    %4780 = vmatprep.subr.mxu0 0.0
    %4781 = vmatpush1.msra.mxu0 0.0
    %4782 = vmatprep.subr.mxu0 0.0
    %4783 = vmatpush1.msra.mxu0 0.0
    %4784 = vmatprep.subr.mxu0 0.0
    %4785 = vmatpush1.msra.mxu0 0.0
    %4786 = vmatprep.subr.mxu0 0.0
    %4787 = vmatpush1.msra.mxu0 0.0
    %4788 = vmatprep.subr.mxu0 0.0
    %4789 = vmatpush1.msra.mxu0 0.0
    %4790 = vmatprep.subr.mxu0 0.0
    %4791 = vmatpush1.msra.mxu0 0.0
    %4792 = vmatprep.subr.mxu0 0.0
    %4793 = vmatpush1.msra.mxu0 0.0
    %4794 = vmatprep.subr.mxu0 0.0
    %4795 = vmatpush1.msra.mxu0 0.0
    %4796 = vmatprep.subr.mxu0 0.0
    %4797 = vmatpush1.msra.mxu0 0.0
    %4798 = vmatprep.subr.mxu0 0.0
    %4799 = vmatpush1.msra.mxu0 0.0
    %4800 = vmatprep.subr.mxu0 0.0
    %4801 = vmatpush1.msra.mxu0 0.0
    %4802 = vmatprep.subr.mxu0 0.0
    %4803 = vmatpush1.msra.mxu0 0.0
    %4804 = vmatprep.subr.mxu0 0.0
    %4805 = vmatpush1.msra.mxu0 0.0
    %4806 = vmatprep.subr.mxu0 0.0
    %4807 = vmatpush1.msra.mxu0 0.0
    %4808 = vmatprep.mubr.f32.mxu0 0.0
    %4809 = vmatmul.mubr.f32.gmra.mrb[0].mxu0 %v4725
    %v4810 = vpop.f32.mrb[0].mxu0
    %v4811 = vadd.f32 0.0, %v4810
    %v4812 = vpop.f32.mrb[0].mxu0
    %4813 = vmatprep.mubr.f32.mxu0 0.0
    %4814 = vmatmul.mubr.f32.gmra.mrb[0].mxu0 %v4726
    %v4815 = vpop.f32.mrb[0].mxu0
    %v4816 = vadd.f32 0.0, %v4815
    %v4817 = vpop.f32.mrb[0].mxu0
    %4818 = vdwg.mxu0
    %v4819 = vadd.f32 %v4717, %v4811
    %v4820 = vadd.f32 %v4722, %v4816
    %v4821 = vmul.f32 %v4545, %v3053
    %v4822 = vmul.f32 %v4546, %v3058
    %s4823 = scalar_lea.vmem %s11, 128
    %v4824 = vld [vmem:[%s4823] sm:$0xff]
    %v4825 = vld [vmem:[%s4823 + $0x8] sm:$0xff]
    %v4826 = vld [vmem:[%s4823 + $0x10] sm:$0xff]
    %v4827 = vld [vmem:[%s4823 + $0x18] sm:$0xff]
    %v4828 = vld [vmem:[%s4823 + $0x20] sm:$0xff]
    %v4829 = vld [vmem:[%s4823 + $0x28] sm:$0xff]
    %v4830 = vld [vmem:[%s4823 + $0x30] sm:$0xff]
    %v4831 = vld [vmem:[%s4823 + $0x38] sm:$0xff]
    %v4832 = vld [vmem:[%s4823 + $0x40] sm:$0xff]
    %v4833 = vld [vmem:[%s4823 + $0x48] sm:$0xff]
    %v4834 = vld [vmem:[%s4823 + $0x50] sm:$0xff]
    %v4835 = vld [vmem:[%s4823 + $0x58] sm:$0xff]
    %v4836 = vld [vmem:[%s4823 + $0x60] sm:$0xff]
    %v4837 = vld [vmem:[%s4823 + $0x68] sm:$0xff]
    %v4838 = vld [vmem:[%s4823 + $0x70] sm:$0xff]
    %v4839 = vld [vmem:[%s4823 + $0x78] sm:$0xff]
    %4840 = vmatprep.subr.mxu0 0.0
    %4841 = vmatpush1.msra.mxu0 %v4824
    %4842 = vmatprep.subr.mxu0 0.0
    %4843 = vmatpush1.msra.mxu0 %v4825
    %4844 = vmatprep.subr.mxu0 0.0
    %4845 = vmatpush1.msra.mxu0 %v4826
    %4846 = vmatprep.subr.mxu0 0.0
    %4847 = vmatpush1.msra.mxu0 %v4827
    %4848 = vmatprep.subr.mxu0 0.0
    %4849 = vmatpush1.msra.mxu0 %v4828
    %4850 = vmatprep.subr.mxu0 0.0
    %4851 = vmatpush1.msra.mxu0 %v4829
    %4852 = vmatprep.subr.mxu0 0.0
    %4853 = vmatpush1.msra.mxu0 %v4830
    %4854 = vmatprep.subr.mxu0 0.0
    %4855 = vmatpush1.msra.mxu0 %v4831
    %4856 = vmatprep.subr.mxu0 0.0
    %4857 = vmatpush1.msra.mxu0 %v4832
    %4858 = vmatprep.subr.mxu0 0.0
    %4859 = vmatpush1.msra.mxu0 %v4833
    %4860 = vmatprep.subr.mxu0 0.0
    %4861 = vmatpush1.msra.mxu0 %v4834
    %4862 = vmatprep.subr.mxu0 0.0
    %4863 = vmatpush1.msra.mxu0 %v4835
    %4864 = vmatprep.subr.mxu0 0.0
    %4865 = vmatpush1.msra.mxu0 %v4836
    %4866 = vmatprep.subr.mxu0 0.0
    %4867 = vmatpush1.msra.mxu0 %v4837
    %4868 = vmatprep.subr.mxu0 0.0
    %4869 = vmatpush1.msra.mxu0 %v4838
    %4870 = vmatprep.subr.mxu0 0.0
    %4871 = vmatpush1.msra.mxu0 %v4839
    %4872 = vmatprep.subr.mxu0 0.0
    %4873 = vmatpush1.msra.mxu0 0.0
    %4874 = vmatprep.subr.mxu0 0.0
    %4875 = vmatpush1.msra.mxu0 0.0
    %4876 = vmatprep.subr.mxu0 0.0
    %4877 = vmatpush1.msra.mxu0 0.0
    %4878 = vmatprep.subr.mxu0 0.0
    %4879 = vmatpush1.msra.mxu0 0.0
    %4880 = vmatprep.subr.mxu0 0.0
    %4881 = vmatpush1.msra.mxu0 0.0
    %4882 = vmatprep.subr.mxu0 0.0
    %4883 = vmatpush1.msra.mxu0 0.0
    %4884 = vmatprep.subr.mxu0 0.0
    %4885 = vmatpush1.msra.mxu0 0.0
    %4886 = vmatprep.subr.mxu0 0.0
    %4887 = vmatpush1.msra.mxu0 0.0
    %4888 = vmatprep.subr.mxu0 0.0
    %4889 = vmatpush1.msra.mxu0 0.0
    %4890 = vmatprep.subr.mxu0 0.0
    %4891 = vmatpush1.msra.mxu0 0.0
    %4892 = vmatprep.subr.mxu0 0.0
    %4893 = vmatpush1.msra.mxu0 0.0
    %4894 = vmatprep.subr.mxu0 0.0
    %4895 = vmatpush1.msra.mxu0 0.0
    %4896 = vmatprep.subr.mxu0 0.0
    %4897 = vmatpush1.msra.mxu0 0.0
    %4898 = vmatprep.subr.mxu0 0.0
    %4899 = vmatpush1.msra.mxu0 0.0
    %4900 = vmatprep.subr.mxu0 0.0
    %4901 = vmatpush1.msra.mxu0 0.0
    %4902 = vmatprep.subr.mxu0 0.0
    %4903 = vmatpush1.msra.mxu0 0.0
    %4904 = vmatprep.mubr.f32.mxu0 0.0
    %4905 = vmatmul.mubr.f32.gmra.mrb[0].mxu0 %v4821
    %v4906 = vpop.f32.mrb[0].mxu0
    %v4907 = vadd.f32 0.0, %v4906
    %v4908 = vpop.f32.mrb[0].mxu0
    %4909 = vmatprep.mubr.f32.mxu0 0.0
    %4910 = vmatmul.mubr.f32.gmra.mrb[0].mxu0 %v4822
    %v4911 = vpop.f32.mrb[0].mxu0
    %v4912 = vadd.f32 0.0, %v4911
    %v4913 = vpop.f32.mrb[0].mxu0
    %4914 = vdwg.mxu0
    %v4915 = vadd.f32 %v4819, %v4907
    %v4916 = vadd.f32 %v4820, %v4912
    %s4917 = scalar_lea.vmem %s12, 1
    %v4918 = vld [vmem:[%s4917] sm:$0x1]
    %v4920 = vlaneseq
    %v4921 = vshrl.u32 %v4920, 7
    %v4922 = vsub.s32 0, %v4921
    %v4923 = vrot.slane %v4918, %v4922
    %v4925 = vadd.f32 %v4915, %v4923
    %v4926 = vadd.f32 %v4916, %v4923
    %s4927 = scalar_lea.vmem %s13, 32
    %v4928 = vld [vmem:[%s4927] sm:$0xff]
    %v4929 = vld [vmem:[%s4927 + $0x8] sm:$0xff]
    %v4930 = vld [vmem:[%s4927 + $0x10] sm:$0xff]
    %v4931 = vld [vmem:[%s4927 + $0x18] sm:$0xff]
    %s4932 = scalar_lea.vmem %s14, 1
    %v4933 = vld [vmem:[%s4932] sm:$0x1]
    %v4935 = vlaneseq
    %v4936 = vshrl.u32 %v4935, 7
    %v4937 = vsub.s32 0, %v4936
    %v4938 = vrot.slane %v4933, %v4937
    %v4941 = vsel %vm535, %v4925, 0
    %v4944 = vsel %vm535, %v4926, 0
    %4946 = vmatprep.subr.mxu0 0.0
    %4947 = vmatpush1.msra.mxu0 %v4928
    %4948 = vmatprep.subr.mxu0 0.0
    %4949 = vmatpush1.msra.mxu0 %v4929
    %4950 = vmatprep.subr.mxu0 0.0
    %4951 = vmatpush1.msra.mxu0 %v4930
    %4952 = vmatprep.subr.mxu0 0.0
    %4953 = vmatpush1.msra.mxu0 %v4931
    %4954 = vmatprep.subr.mxu0 0.0
    %4955 = vmatpush1.msra.mxu0 0.0
    %4956 = vmatprep.subr.mxu0 0.0
    %4957 = vmatpush1.msra.mxu0 0.0
    %4958 = vmatprep.subr.mxu0 0.0
    %4959 = vmatpush1.msra.mxu0 0.0
    %4960 = vmatprep.subr.mxu0 0.0
    %4961 = vmatpush1.msra.mxu0 0.0
    %4962 = vmatprep.subr.mxu0 0.0
    %4963 = vmatpush1.msra.mxu0 0.0
    %4964 = vmatprep.subr.mxu0 0.0
    %4965 = vmatpush1.msra.mxu0 0.0
    %4966 = vmatprep.subr.mxu0 0.0
    %4967 = vmatpush1.msra.mxu0 0.0
    %4968 = vmatprep.subr.mxu0 0.0
    %4969 = vmatpush1.msra.mxu0 0.0
    %4970 = vmatprep.subr.mxu0 0.0
    %4971 = vmatpush1.msra.mxu0 0.0
    %4972 = vmatprep.subr.mxu0 0.0
    %4973 = vmatpush1.msra.mxu0 0.0
    %4974 = vmatprep.subr.mxu0 0.0
    %4975 = vmatpush1.msra.mxu0 0.0
    %4976 = vmatprep.subr.mxu0 0.0
    %4977 = vmatpush1.msra.mxu0 0.0
    %4978 = vmatprep.subr.mxu0 0.0
    %4979 = vmatpush1.msra.mxu0 0.0
    %4980 = vmatprep.subr.mxu0 0.0
    %4981 = vmatpush1.msra.mxu0 0.0
    %4982 = vmatprep.subr.mxu0 0.0
    %4983 = vmatpush1.msra.mxu0 0.0
    %4984 = vmatprep.subr.mxu0 0.0
    %4985 = vmatpush1.msra.mxu0 0.0
    %4986 = vmatprep.subr.mxu0 0.0
    %4987 = vmatpush1.msra.mxu0 0.0
    %4988 = vmatprep.subr.mxu0 0.0
    %4989 = vmatpush1.msra.mxu0 0.0
    %4990 = vmatprep.subr.mxu0 0.0
    %4991 = vmatpush1.msra.mxu0 0.0
    %4992 = vmatprep.subr.mxu0 0.0
    %4993 = vmatpush1.msra.mxu0 0.0
    %4994 = vmatprep.subr.mxu0 0.0
    %4995 = vmatpush1.msra.mxu0 0.0
    %4996 = vmatprep.subr.mxu0 0.0
    %4997 = vmatpush1.msra.mxu0 0.0
    %4998 = vmatprep.subr.mxu0 0.0
    %4999 = vmatpush1.msra.mxu0 0.0
    %5000 = vmatprep.subr.mxu0 0.0
    %5001 = vmatpush1.msra.mxu0 0.0
    %5002 = vmatprep.subr.mxu0 0.0
    %5003 = vmatpush1.msra.mxu0 0.0
    %5004 = vmatprep.subr.mxu0 0.0
    %5005 = vmatpush1.msra.mxu0 0.0
    %5006 = vmatprep.subr.mxu0 0.0
    %5007 = vmatpush1.msra.mxu0 0.0
    %5008 = vmatprep.subr.mxu0 0.0
    %5009 = vmatpush1.msra.mxu0 0.0
    %5010 = vmatprep.mubr.f32.mxu0 0.0
    %5011 = vmatmul.mubr.f32.gmra.mrb[0].mxu0 %v4941
    %v5012 = vpop.f32.mrb[0].mxu0
    %v5013 = vadd.f32 %v4938, %v5012
    %v5014 = vpop.f32.mrb[0].mxu0
    %5015 = vmatprep.mubr.f32.mxu0 0.0
    %5016 = vmatmul.mubr.f32.gmra.mrb[0].mxu0 %v4944
    %v5017 = vpop.f32.mrb[0].mxu0
    %v5018 = vadd.f32 %v4938, %v5017
    %v5019 = vpop.f32.mrb[0].mxu0
    %5020 = vdwg.mxu0
    %s5021 = scalar_lea.vmem %s15, 1
    %v5022 = vld [vmem:[%s5021] sm:$0x1]
    %v5024 = vlaneseq
    %v5025 = vshrl.u32 %v5024, 7
    %v5026 = vsub.s32 0, %v5025
    %v5027 = vrot.slane %v5022, %v5026
    %v5029 = vmul.f32 %v5013, %v5027
    %v5030 = vmul.f32 %v5018, %v5027
    %s5031 = scalar_lea.vmem %s16, 1
    %v5032 = vld [vmem:[%s5031] sm:$0x1]
    %v5034 = vlaneseq
    %v5035 = vshrl.u32 %v5034, 7
    %v5036 = vsub.s32 0, %v5035
    %v5037 = vrot.slane %v5032, %v5036
    %v5039 = vadd.f32 %v5029, %v5037
    %v5040 = vadd.f32 %v5030, %v5037
    %v5041 = vmax.f32 %v5039, 0.0
    %v5042 = vmax.f32 %v5040, 0.0
    %v5043 = vadd.f32 %v3276, %v5041
    %v5044 = vadd.f32 %v3277, %v5042
    %v5045 = vld [vmem:[%s4] sm:$0x3]
    %v5047 = vsel %vm418, %v5045, 0
    %5049 = vmatprep.subr.mxu0 0.0
    %5050 = vmatpush1.msra.mxu0 %v5043
    %5051 = vmatprep.subr.mxu0 0.0
    %5052 = vmatpush1.msra.mxu0 %v5044
    %5053 = vmatprep.subr.mxu0 0.0
    %5054 = vmatpush1.msra.mxu0 0.0
    %5055 = vmatprep.subr.mxu0 0.0
    %5056 = vmatpush1.msra.mxu0 0.0
    %5057 = vmatprep.subr.mxu0 0.0
    %5058 = vmatpush1.msra.mxu0 0.0
    %5059 = vmatprep.subr.mxu0 0.0
    %5060 = vmatpush1.msra.mxu0 0.0
    %5061 = vmatprep.subr.mxu0 0.0
    %5062 = vmatpush1.msra.mxu0 0.0
    %5063 = vmatprep.subr.mxu0 0.0
    %5064 = vmatpush1.msra.mxu0 0.0
    %5065 = vmatprep.subr.mxu0 0.0
    %5066 = vmatpush1.msra.mxu0 0.0
    %5067 = vmatprep.subr.mxu0 0.0
    %5068 = vmatpush1.msra.mxu0 0.0
    %5069 = vmatprep.subr.mxu0 0.0
    %5070 = vmatpush1.msra.mxu0 0.0
    %5071 = vmatprep.subr.mxu0 0.0
    %5072 = vmatpush1.msra.mxu0 0.0
    %5073 = vmatprep.subr.mxu0 0.0
    %5074 = vmatpush1.msra.mxu0 0.0
    %5075 = vmatprep.subr.mxu0 0.0
    %5076 = vmatpush1.msra.mxu0 0.0
    %5077 = vmatprep.subr.mxu0 0.0
    %5078 = vmatpush1.msra.mxu0 0.0
    %5079 = vmatprep.subr.mxu0 0.0
    %5080 = vmatpush1.msra.mxu0 0.0
    %5081 = vmatprep.subr.mxu0 0.0
    %5082 = vmatpush1.msra.mxu0 0.0
    %5083 = vmatprep.subr.mxu0 0.0
    %5084 = vmatpush1.msra.mxu0 0.0
    %5085 = vmatprep.subr.mxu0 0.0
    %5086 = vmatpush1.msra.mxu0 0.0
    %5087 = vmatprep.subr.mxu0 0.0
    %5088 = vmatpush1.msra.mxu0 0.0
    %5089 = vmatprep.subr.mxu0 0.0
    %5090 = vmatpush1.msra.mxu0 0.0
    %5091 = vmatprep.subr.mxu0 0.0
    %5092 = vmatpush1.msra.mxu0 0.0
    %5093 = vmatprep.subr.mxu0 0.0
    %5094 = vmatpush1.msra.mxu0 0.0
    %5095 = vmatprep.subr.mxu0 0.0
    %5096 = vmatpush1.msra.mxu0 0.0
    %5097 = vmatprep.subr.mxu0 0.0
    %5098 = vmatpush1.msra.mxu0 0.0
    %5099 = vmatprep.subr.mxu0 0.0
    %5100 = vmatpush1.msra.mxu0 0.0
    %5101 = vmatprep.subr.mxu0 0.0
    %5102 = vmatpush1.msra.mxu0 0.0
    %5103 = vmatprep.subr.mxu0 0.0
    %5104 = vmatpush1.msra.mxu0 0.0
    %5105 = vmatprep.subr.mxu0 0.0
    %5106 = vmatpush1.msra.mxu0 0.0
    %5107 = vmatprep.subr.mxu0 0.0
    %5108 = vmatpush1.msra.mxu0 0.0
    %5109 = vmatprep.subr.mxu0 0.0
    %5110 = vmatpush1.msra.mxu0 0.0
    %5111 = vmatprep.subr.mxu0 0.0
    %5112 = vmatpush1.msra.mxu0 0.0
    %5113 = vmatprep.mubr.f32.mxu0 0.0
    %5114 = vmatmul.mubr.f32.gmra.mrb[0].mxu0 %v5047
    %v5115 = vpop.f32.mrb[0].mxu0
    %v5116 = vadd.f32 0.0, %v5115
    %v5117 = vpop.f32.mrb[0].mxu0
    %5118 = vdwg.mxu0
    %v5119 = vld [vmem:[%s17] sm:$0xff]
    %v5120 = vld [vmem:[%s17 + $0x8] sm:$0xff]
    %v5121 = vld [vmem:[%s17 + $0x10] sm:$0xff]
    %v5122 = vld [vmem:[%s17 + $0x18] sm:$0xff]
    %v5123 = vld [vmem:[%s18] sm:$0x1]
    %v5125 = vlaneseq
    %v5126 = vshrl.u32 %v5125, 7
    %v5127 = vsub.s32 0, %v5126
    %v5128 = vrot.slane %v5123, %v5127
    %v5131 = vsel %vm535, %v5116, 0
    %5133 = vmatprep.subr.mxu0 0.0
    %5134 = vmatpush1.msra.mxu0 %v5119
    %5135 = vmatprep.subr.mxu0 0.0
    %5136 = vmatpush1.msra.mxu0 %v5120
    %5137 = vmatprep.subr.mxu0 0.0
    %5138 = vmatpush1.msra.mxu0 %v5121
    %5139 = vmatprep.subr.mxu0 0.0
    %5140 = vmatpush1.msra.mxu0 %v5122
    %5141 = vmatprep.subr.mxu0 0.0
    %5142 = vmatpush1.msra.mxu0 0.0
    %5143 = vmatprep.subr.mxu0 0.0
    %5144 = vmatpush1.msra.mxu0 0.0
    %5145 = vmatprep.subr.mxu0 0.0
    %5146 = vmatpush1.msra.mxu0 0.0
    %5147 = vmatprep.subr.mxu0 0.0
    %5148 = vmatpush1.msra.mxu0 0.0
    %5149 = vmatprep.subr.mxu0 0.0
    %5150 = vmatpush1.msra.mxu0 0.0
    %5151 = vmatprep.subr.mxu0 0.0
    %5152 = vmatpush1.msra.mxu0 0.0
    %5153 = vmatprep.subr.mxu0 0.0
    %5154 = vmatpush1.msra.mxu0 0.0
    %5155 = vmatprep.subr.mxu0 0.0
    %5156 = vmatpush1.msra.mxu0 0.0
    %5157 = vmatprep.subr.mxu0 0.0
    %5158 = vmatpush1.msra.mxu0 0.0
    %5159 = vmatprep.subr.mxu0 0.0
    %5160 = vmatpush1.msra.mxu0 0.0
    %5161 = vmatprep.subr.mxu0 0.0
    %5162 = vmatpush1.msra.mxu0 0.0
    %5163 = vmatprep.subr.mxu0 0.0
    %5164 = vmatpush1.msra.mxu0 0.0
    %5165 = vmatprep.subr.mxu0 0.0
    %5166 = vmatpush1.msra.mxu0 0.0
    %5167 = vmatprep.subr.mxu0 0.0
    %5168 = vmatpush1.msra.mxu0 0.0
    %5169 = vmatprep.subr.mxu0 0.0
    %5170 = vmatpush1.msra.mxu0 0.0
    %5171 = vmatprep.subr.mxu0 0.0
    %5172 = vmatpush1.msra.mxu0 0.0
    %5173 = vmatprep.subr.mxu0 0.0
    %5174 = vmatpush1.msra.mxu0 0.0
    %5175 = vmatprep.subr.mxu0 0.0
    %5176 = vmatpush1.msra.mxu0 0.0
    %5177 = vmatprep.subr.mxu0 0.0
    %5178 = vmatpush1.msra.mxu0 0.0
    %5179 = vmatprep.subr.mxu0 0.0
    %5180 = vmatpush1.msra.mxu0 0.0
    %5181 = vmatprep.subr.mxu0 0.0
    %5182 = vmatpush1.msra.mxu0 0.0
    %5183 = vmatprep.subr.mxu0 0.0
    %5184 = vmatpush1.msra.mxu0 0.0
    %5185 = vmatprep.subr.mxu0 0.0
    %5186 = vmatpush1.msra.mxu0 0.0
    %5187 = vmatprep.subr.mxu0 0.0
    %5188 = vmatpush1.msra.mxu0 0.0
    %5189 = vmatprep.subr.mxu0 0.0
    %5190 = vmatpush1.msra.mxu0 0.0
    %5191 = vmatprep.subr.mxu0 0.0
    %5192 = vmatpush1.msra.mxu0 0.0
    %5193 = vmatprep.subr.mxu0 0.0
    %5194 = vmatpush1.msra.mxu0 0.0
    %5195 = vmatprep.subr.mxu0 0.0
    %5196 = vmatpush1.msra.mxu0 0.0
    %5197 = vmatprep.mubr.f32.mxu0 0.0
    %5198 = vmatmul.mubr.f32.gmra.mrb[0].mxu0 %v5131
    %v5199 = vpop.f32.mrb[0].mxu0
    %v5200 = vadd.f32 %v5128, %v5199
    %v5201 = vpop.f32.mrb[0].mxu0
    %5202 = vdwg.mxu0
    %vm5203 = vcmask 58368
    %5204 = vst.msk [vmem:[#allocation2] sm:$0x3] %vm5203, %v5200
    // Predicated region
    $region78: #{tpu_custom_call.1} parent=1 // pred_check
      _
    $region79: #{tpu_custom_call.1} parent=1 // pred_check_branch
      %5206 = sbr.rel (0) target = $region81
    $region80: #{tpu_custom_call.1} parent=1 // pred_region
      %s5208 = ssub.s32 32, 32
      %5209 = vsyncadd [#allocation3], %s5208
      %s5211 = sshll.u32 [#allocation2], 4
      %s5212 = int_to_ptr.vmem [resolvable:$true] %s5211
      %5214 = dma.vmem_to_hbm [thread:$0]  %s5212, 32, %s19, [#allocation3]
    $region81: #{tpu_custom_call.1} parent=1 // pred_fallthru
      _
    // Predicated region
    $region82: #{tpu_custom_call.1} parent=1 // pred_check
      _
    $region83: #{tpu_custom_call.1} parent=1 // pred_check_branch
      %5216 = sbr.rel (0) target = $region85
    $region84: #{tpu_custom_call.1} parent=1 // pred_region
      %5217 = dma.done [#allocation3], 32
    $region85: #{tpu_custom_call.1} parent=1 // pred_fallthru
      _
    %5218 = vsyncpa [#allocation3], 1

</llo_original>
